<compile_context>
chip_gen: v7x
topology: tpu7x:2x2x1
jax: 0.10.0
libtpu: 0.0.40
codegen_flags: <defaults>
</compile_context>

<pallas_src>
import functools

import jax
import jax.numpy as jnp
from jax.experimental import pallas as pl
from jax.experimental.pallas import tpu as pltpu


# ----------------------------------------------------------------------------
# Model config (synthetic small BERT; no checkpoint load)
# ----------------------------------------------------------------------------

VOCAB = 128
HIDDEN = 32
NUM_HEADS = 2
HEAD_DIM = HIDDEN // NUM_HEADS
INTERMEDIATE = 64
NUM_LAYERS = 2
MAX_POS = 64
NUM_CLASS = 7
PAD_CLASS = 128   # lane-dense classifier output; sliced back to NUM_CLASS in the wrapper

# Row layout of the single packed weight blob (all rows 128-lane padded):
#   per layer: wqkv (HIDDEN rows), wo (HIDDEN), w1 (HIDDEN), w2 (INTERMEDIATE)
#   then:      fc_w (HIDDEN), tok_emb (VOCAB), pos+type0 emb (MAX_POS)
LAYER_ROWS = 3 * HIDDEN + INTERMEDIATE
FC_ROW = NUM_LAYERS * LAYER_ROWS
TOK_ROW = FC_ROW + HIDDEN
POS_ROW = TOK_ROW + VOCAB
WBLOB_ROWS = POS_ROW + MAX_POS


# ----------------------------------------------------------------------------
# Fused Pallas kernel: embedding gather -> emb-LN -> [encoder layer]*L -> slice -> classifier
# ----------------------------------------------------------------------------

def _bert_ner_kernel(ids_ref, vecs_ref, gvecs_ref, wblob_ref, out_ref, *, batch, seq, mt):
    H, I, HD = HIDDEN, INTERMEDIATE, HEAD_DIM
    n = batch * seq

    def layer_norm(x, g, b, eps=1e-12):
        # var = E[x^2] - mean^2: the two cross-lane reductions are independent -> overlap on XLU.
        m = jnp.mean(x, axis=-1, keepdims=True)
        ex2 = jnp.mean(x * x, axis=-1, keepdims=True)
        var = jnp.maximum(ex2 - m * m, 0.0)
        return (x - m) * jax.lax.rsqrt(var + eps) * g + b

    # --- embeddings: one-hot gather on the MXU + (position + token-type-0) rows ---
    ids = ids_ref[...]                                                        # (n, 1) int32
    onehot = (jax.lax.broadcasted_iota(jnp.int32, (n, VOCAB), 1) == ids).astype(jnp.float32)
    tok_tbl = wblob_ref[TOK_ROW:TOK_ROW + VOCAB, 0:H]                         # (VOCAB, H)
    emb = jnp.dot(onehot, tok_tbl, preferred_element_type=jnp.float32)        # (n, H)
    pos = wblob_ref[POS_ROW:POS_ROW + seq, 0:H]                               # (seq, H)
    emb = emb + jnp.concatenate([pos] * batch, axis=0)

    h = layer_norm(emb, gvecs_ref[0:1, 0:H], gvecs_ref[1:2, 0:H])

    # --- encoder layers (statically unrolled; weights sliced from the packed blob) ---
    for li in range(NUM_LAYERS):
        base = li * LAYER_ROWS
        wqkv = wblob_ref[base:base + H, 0:3 * H]                # (H, 3H); Q columns pre-scaled
        w1 = wblob_ref[base + 2 * H:base + 3 * H, 0:I]          # (H, I)
        w2 = wblob_ref[base + 3 * H:base + 3 * H + I, 0:H]      # (I, H)
        bqkv = vecs_ref[li, 0:1, 0:3 * H]
        bo = vecs_ref[li, 1:2, 0:H]
        ln1g = vecs_ref[li, 2:3, 0:H]
        ln1b = vecs_ref[li, 3:4, 0:H]
        b1 = vecs_ref[li, 4:5, 0:I]
        b2 = vecs_ref[li, 5:6, 0:H]
        ln2g = vecs_ref[li, 6:7, 0:H]
        ln2b = vecs_ref[li, 7:8, 0:H]

        qkv = jnp.dot(h, wqkv, preferred_element_type=jnp.float32) + bqkv     # (n, 3H)

        # Multi-head attention: one batched contraction per head (batch dim = B);
        # each head's context feeds its slice of the output projection (no concatenates).
        # TODO(synk): no attention_mask (the reference forward only receives x).
        attn = jnp.zeros((n, H), jnp.float32)
        for hd_i in range(NUM_HEADS):
            c0 = hd_i * HD
            qh = qkv[:, c0:c0 + HD].reshape(batch, seq, HD)
            kh = qkv[:, H + c0:H + c0 + HD].reshape(batch, seq, HD)
            vh = qkv[:, 2 * H + c0:2 * H + c0 + HD].reshape(batch, seq, HD)
            s = jnp.einsum('bqd,bkd->bqk', qh, kh, preferred_element_type=jnp.float32)
            s = s - jnp.max(s, axis=-1, keepdims=True)
            p = jnp.exp(s)
            p = p * pl.reciprocal(jnp.sum(p, axis=-1, keepdims=True), approx=True)
            ctx = jnp.einsum('bqk,bkd->bqd', p, vh, preferred_element_type=jnp.float32)
            wo_h = wblob_ref[base + H + c0:base + H + c0 + HD, 0:H]           # (HD, H)
            attn = attn + jnp.dot(ctx.reshape(n, HD), wo_h,
                                  preferred_element_type=jnp.float32)
        attn = attn + bo

        h1 = layer_norm(h + attn, ln1g, ln1b)
        # TODO(synk): HF BERT uses exact (erf) GELU; tanh approximation kept here.
        ffn = jax.nn.gelu(jnp.dot(h1, w1, preferred_element_type=jnp.float32) + b1,
                          approximate=True)
        ffn = jnp.dot(ffn, w2, preferred_element_type=jnp.float32) + b2
        h = layer_norm(h1 + ffn, ln2g, ln2b)

    # --- select target tokens [1 : mt+1] per batch, then classifier (lane-dense 128 store) ---
    fc_w = wblob_ref[FC_ROW:FC_ROW + H, :]     # (H, 128); only first NUM_CLASS columns nonzero
    fc_b = gvecs_ref[2:3, :]                   # (1, 128)
    for b in range(batch):
        hb = h[b * seq + 1:b * seq + 1 + mt, :]                               # (mt, H)
        logits = jnp.dot(hb, fc_w, preferred_element_type=jnp.float32) + fc_b
        out_ref[b, :, :] = logits.astype(out_ref.dtype)


def _vmem_spec(shape):
    zeros = (0,) * len(shape)
    return pl.BlockSpec(shape, lambda i, _z=zeros: _z)


# ----------------------------------------------------------------------------
# Deterministic parameter init (packed weight blob / vector packs)
# ----------------------------------------------------------------------------

def init_params(key):
    def nrm(k, shape, scale=0.02):
        return (scale * jax.random.normal(k, shape)).astype(jnp.float32)

    keys = iter(jax.random.split(key, 4 + NUM_LAYERS * 6))
    H, I = HIDDEN, INTERMEDIATE
    att_scale = 1.0 / (HEAD_DIM ** 0.5)

    # --- single weight blob: all matmul weights + embedding tables, 128-lane padded ---
    wblob = jnp.zeros((WBLOB_ROWS, 128), jnp.float32)
    for li in range(NUM_LAYERS):
        base = li * LAYER_ROWS
        wq = nrm(next(keys), (H, H)) * att_scale      # fold 1/sqrt(head_dim) into Q projection
        wk = nrm(next(keys), (H, H))
        wv = nrm(next(keys), (H, H))
        wblob = wblob.at[base:base + H, 0:3 * H].set(jnp.concatenate([wq, wk, wv], axis=1))
        wblob = wblob.at[base + H:base + 2 * H, 0:H].set(nrm(next(keys), (H, H)))           # wo
        wblob = wblob.at[base + 2 * H:base + 3 * H, 0:I].set(nrm(next(keys), (H, I)))       # w1
        wblob = wblob.at[base + 3 * H:base + 3 * H + I, 0:H].set(nrm(next(keys), (I, H)))   # w2
    wblob = wblob.at[FC_ROW:FC_ROW + H, 0:NUM_CLASS].set(nrm(next(keys), (H, NUM_CLASS)))
    wblob = wblob.at[TOK_ROW:TOK_ROW + VOCAB, 0:H].set(nrm(next(keys), (VOCAB, H)))
    pos_emb = nrm(next(keys), (MAX_POS, H))
    type_emb = nrm(next(keys), (2, H))
    # token_type_ids are all zero -> fold type_emb[0] into the position rows.
    wblob = wblob.at[POS_ROW:POS_ROW + MAX_POS, 0:H].set(pos_emb + type_emb[0][None, :])

    # --- packed per-layer bias / LayerNorm vectors (one DMA for all of them) ---
    # rows: 0=bqkv, 1=bo, 2=ln1_g, 3=ln1_b, 4=b1, 5=b2, 6=ln2_g, 7=ln2_b
    vecs = jnp.zeros((NUM_LAYERS, 8, 128), jnp.float32)
    vecs = vecs.at[:, 2, 0:H].set(1.0)   # ln1 gamma
    vecs = vecs.at[:, 6, 0:H].set(1.0)   # ln2 gamma
    # Linear biases stay zero (BERT-style init).  NOTE: if a nonzero Q bias is ever loaded,
    # it must also be multiplied by att_scale since the scale is folded into the Q weights.

    # --- global small vectors: row 0=emb_ln_g, 1=emb_ln_b, 2=fc_b (lane-padded to 128) ---
    gvecs = jnp.zeros((8, 128), jnp.float32)
    gvecs = gvecs.at[0, 0:H].set(1.0)

    return {"wblob": wblob, "vecs": vecs, "gvecs": gvecs}


# ----------------------------------------------------------------------------
# Forward pass: everything (including the embedding gather) in ONE Pallas kernel
# ----------------------------------------------------------------------------

def bert_ner_forward(params, input_ids, max_target_length):
    B, S = input_ids.shape
    assert S <= MAX_POS and max_target_length + 1 <= S
    ids = input_ids.reshape(B * S, 1).astype(jnp.int32)

    kernel = functools.partial(_bert_ner_kernel, batch=B, seq=S, mt=max_target_length)
    vecs, gvecs, wblob = params["vecs"], params["gvecs"], params["wblob"]

    out = pl.pallas_call(
        kernel,
        out_shape=jax.ShapeDtypeStruct((B, max_target_length, PAD_CLASS), jnp.float32),
        grid=(1,),
        in_specs=[_vmem_spec(ids.shape), _vmem_spec(vecs.shape),
                  _vmem_spec(gvecs.shape), _vmem_spec(wblob.shape)],
        out_specs=_vmem_spec((B, max_target_length, PAD_CLASS)),
        # TODO(synk): on v7x, split the batch over a parallel grid axis to use both
        # TensorCores; grid=(1,) is optimal on single-TC v5e/v6e at these sizes.
        compiler_params=pltpu.CompilerParams(dimension_semantics=("arbitrary",)),
    )(ids, vecs, gvecs, wblob)

    # hidden_states[:, 1:max_target_length+1, :] -> fc (both done in-kernel) -> dropout
    # TODO(synk): nn.Dropout(0.1) is identity at inference; training-mode dropout not applied.
    return out[:, :, :NUM_CLASS]


if __name__ == "__main__":
    key = jax.random.PRNGKey(0)
    pkey, dkey = jax.random.split(key)
    params = init_params(pkey)

    BATCH, SEQ = 2, 8
    MAX_TARGET_LENGTH = 6
    input_ids = jax.random.randint(dkey, (BATCH, SEQ), 0, VOCAB, dtype=jnp.int32)

    out = bert_ner_forward(params, input_ids, MAX_TARGET_LENGTH)
    out = jax.block_until_ready(out)
    assert out.shape == (BATCH, MAX_TARGET_LENGTH, NUM_CLASS), out.shape
    print("KERNEL_OK")
</pallas_src>

<mosaic_0001>
module attributes {stable_mosaic.version = 11 : i64} {
  func.func @_bert_ner_kernel(%arg0: i32, %arg1: memref<16x1xi32, #tpu.memory_space<vmem>>, %arg2: memref<2x8x128xf32, #tpu.memory_space<vmem>>, %arg3: memref<8x128xf32, #tpu.memory_space<vmem>>, %arg4: memref<544x128xf32, #tpu.memory_space<vmem>>, %arg5: memref<2x6x128xf32, #tpu.memory_space<vmem>>) attributes {dimension_semantics = [#tpu.dimension_semantics<arbitrary>], iteration_bounds = array<i64: 1>, scalar_prefetch = 0 : i64, scratch_operands = 0 : i64, tpu.core_type = #tpu.core_type<tc>, window_params = [{pipeline_mode = #tpu.pipeline_mode<synchronous>, transform_indices = @transform_0, window_bounds = array<i64: 16, 1>}, {pipeline_mode = #tpu.pipeline_mode<synchronous>, transform_indices = @transform_1, window_bounds = array<i64: 2, 8, 128>}, {pipeline_mode = #tpu.pipeline_mode<synchronous>, transform_indices = @transform_2, window_bounds = array<i64: 8, 128>}, {pipeline_mode = #tpu.pipeline_mode<synchronous>, transform_indices = @transform_3, window_bounds = array<i64: 544, 128>}, {pipeline_mode = #tpu.pipeline_mode<synchronous>, transform_indices = @transform_4, window_bounds = array<i64: 2, 6, 128>}]} {
    %c0 = arith.constant 0 : index
    %c0_0 = arith.constant 0 : index
    %0 = vector.load %arg1[%c0, %c0_0] : memref<16x1xi32, #tpu.memory_space<vmem>>, vector<16x1xi32>
    %1 = tpu.iota {dimensions = array<i32: 1>} : vector<16x128xi32>
    %2 = vector.broadcast %0 : vector<16x1xi32> to vector<16x128xi32>
    %3 = arith.cmpi eq, %1, %2 : vector<16x128xi32>
    %4 = arith.extui %3 : vector<16x128xi1> to vector<16x128xi32>
    %5 = arith.sitofp %4 : vector<16x128xi32> to vector<16x128xf32>
    %c352 = arith.constant 352 : index
    %c0_1 = arith.constant 0 : index
    %6 = vector.load %arg4[%c352, %c0_1] : memref<544x128xf32, #tpu.memory_space<vmem>>, vector<128x32xf32>
    %cst = arith.constant dense<0.000000e+00> : vector<16x32xf32>
    %7 = tpu.matmul %5, %6, %cst {dimension_numbers = #tpu.dot_dimension_numbers<[1], [0], [0], [1], [0, 0, 1, 1], [], []>} : vector<16x128xf32>, vector<128x32xf32>, vector<16x32xf32> -> vector<16x32xf32>
    %c480 = arith.constant 480 : index
    %c0_2 = arith.constant 0 : index
    %8 = vector.load %arg4[%c480, %c0_2] : memref<544x128xf32, #tpu.memory_space<vmem>>, vector<8x32xf32>
    %9 = tpu.concatenate %8, %8 in 0 : vector<8x32xf32>, vector<8x32xf32> -> vector<16x32xf32>
    %10 = arith.addf %7, %9 : vector<16x32xf32>
    %c0_3 = arith.constant 0 : index
    %c0_4 = arith.constant 0 : index
    %11 = vector.load %arg3[%c0_3, %c0_4] : memref<8x128xf32, #tpu.memory_space<vmem>>, vector<1x32xf32>
    %c1 = arith.constant 1 : index
    %c0_5 = arith.constant 0 : index
    %12 = vector.load %arg3[%c1, %c0_5] : memref<8x128xf32, #tpu.memory_space<vmem>>, vector<1x32xf32>
    %cst_6 = arith.constant dense<0.000000e+00> : vector<16xf32>
    %13 = vector.multi_reduction <add>, %10, %cst_6 [1] : vector<16x32xf32> to vector<16xf32>
    %14 = vector.shape_cast %13 : vector<16xf32> to vector<16x1xf32>
    %cst_7 = arith.constant 3.200000e+01 : f32
    %15 = vector.broadcast %cst_7 : f32 to vector<16x1xf32>
    %16 = arith.divf %14, %15 : vector<16x1xf32>
    %17 = arith.mulf %10, %10 : vector<16x32xf32>
    %cst_8 = arith.constant dense<0.000000e+00> : vector<16xf32>
    %18 = vector.multi_reduction <add>, %17, %cst_8 [1] : vector<16x32xf32> to vector<16xf32>
    %19 = vector.shape_cast %18 : vector<16xf32> to vector<16x1xf32>
    %cst_9 = arith.constant 3.200000e+01 : f32
    %20 = vector.broadcast %cst_9 : f32 to vector<16x1xf32>
    %21 = arith.divf %19, %20 : vector<16x1xf32>
    %22 = arith.mulf %16, %16 : vector<16x1xf32>
    %23 = arith.subf %21, %22 : vector<16x1xf32>
    %cst_10 = arith.constant 0.000000e+00 : f32
    %24 = vector.broadcast %cst_10 : f32 to vector<16x1xf32>
    %25 = arith.maximumf %23, %24 : vector<16x1xf32>
    %26 = vector.broadcast %16 : vector<16x1xf32> to vector<16x32xf32>
    %27 = arith.subf %10, %26 : vector<16x32xf32>
    %cst_11 = arith.constant 9.99999996E-13 : f32
    %28 = vector.broadcast %cst_11 : f32 to vector<16x1xf32>
    %29 = arith.addf %25, %28 : vector<16x1xf32>
    %30 = math.rsqrt %29 : vector<16x1xf32>
    %31 = vector.broadcast %30 : vector<16x1xf32> to vector<16x32xf32>
    %32 = arith.mulf %27, %31 : vector<16x32xf32>
    %33 = vector.broadcast %11 : vector<1x32xf32> to vector<16x32xf32>
    %34 = arith.mulf %32, %33 : vector<16x32xf32>
    %35 = vector.broadcast %12 : vector<1x32xf32> to vector<16x32xf32>
    %36 = arith.addf %34, %35 : vector<16x32xf32>
    %c0_12 = arith.constant 0 : index
    %c0_13 = arith.constant 0 : index
    %37 = vector.load %arg4[%c0_12, %c0_13] : memref<544x128xf32, #tpu.memory_space<vmem>>, vector<32x96xf32>
    %c64 = arith.constant 64 : index
    %c0_14 = arith.constant 0 : index
    %38 = vector.load %arg4[%c64, %c0_14] : memref<544x128xf32, #tpu.memory_space<vmem>>, vector<32x64xf32>
    %c96 = arith.constant 96 : index
    %c0_15 = arith.constant 0 : index
    %39 = vector.load %arg4[%c96, %c0_15] : memref<544x128xf32, #tpu.memory_space<vmem>>, vector<64x32xf32>
    %c0_16 = arith.constant 0 : index
    %c0_17 = arith.constant 0 : index
    %c0_18 = arith.constant 0 : index
    %40 = vector.load %arg2[%c0_16, %c0_17, %c0_18] : memref<2x8x128xf32, #tpu.memory_space<vmem>>, vector<1x1x96xf32>
    %41 = vector.shape_cast %40 : vector<1x1x96xf32> to vector<1x96xf32>
    %c0_19 = arith.constant 0 : index
    %c1_20 = arith.constant 1 : index
    %c0_21 = arith.constant 0 : index
    %42 = vector.load %arg2[%c0_19, %c1_20, %c0_21] : memref<2x8x128xf32, #tpu.memory_space<vmem>>, vector<1x1x32xf32>
    %43 = vector.shape_cast %42 : vector<1x1x32xf32> to vector<1x32xf32>
    %c0_22 = arith.constant 0 : index
    %c2 = arith.constant 2 : index
    %c0_23 = arith.constant 0 : index
    %44 = vector.load %arg2[%c0_22, %c2, %c0_23] : memref<2x8x128xf32, #tpu.memory_space<vmem>>, vector<1x1x32xf32>
    %45 = vector.shape_cast %44 : vector<1x1x32xf32> to vector<1x32xf32>
    %c0_24 = arith.constant 0 : index
    %c3 = arith.constant 3 : index
    %c0_25 = arith.constant 0 : index
    %46 = vector.load %arg2[%c0_24, %c3, %c0_25] : memref<2x8x128xf32, #tpu.memory_space<vmem>>, vector<1x1x32xf32>
    %47 = vector.shape_cast %46 : vector<1x1x32xf32> to vector<1x32xf32>
    %c0_26 = arith.constant 0 : index
    %c4 = arith.constant 4 : index
    %c0_27 = arith.constant 0 : index
    %48 = vector.load %arg2[%c0_26, %c4, %c0_27] : memref<2x8x128xf32, #tpu.memory_space<vmem>>, vector<1x1x64xf32>
    %49 = vector.shape_cast %48 : vector<1x1x64xf32> to vector<1x64xf32>
    %c0_28 = arith.constant 0 : index
    %c5 = arith.constant 5 : index
    %c0_29 = arith.constant 0 : index
    %50 = vector.load %arg2[%c0_28, %c5, %c0_29] : memref<2x8x128xf32, #tpu.memory_space<vmem>>, vector<1x1x32xf32>
    %51 = vector.shape_cast %50 : vector<1x1x32xf32> to vector<1x32xf32>
    %c0_30 = arith.constant 0 : index
    %c6 = arith.constant 6 : index
    %c0_31 = arith.constant 0 : index
    %52 = vector.load %arg2[%c0_30, %c6, %c0_31] : memref<2x8x128xf32, #tpu.memory_space<vmem>>, vector<1x1x32xf32>
    %53 = vector.shape_cast %52 : vector<1x1x32xf32> to vector<1x32xf32>
    %c0_32 = arith.constant 0 : index
    %c7 = arith.constant 7 : index
    %c0_33 = arith.constant 0 : index
    %54 = vector.load %arg2[%c0_32, %c7, %c0_33] : memref<2x8x128xf32, #tpu.memory_space<vmem>>, vector<1x1x32xf32>
    %55 = vector.shape_cast %54 : vector<1x1x32xf32> to vector<1x32xf32>
    %cst_34 = arith.constant dense<0.000000e+00> : vector<16x96xf32>
    %56 = tpu.matmul %36, %37, %cst_34 {dimension_numbers = #tpu.dot_dimension_numbers<[1], [0], [0], [1], [0, 0, 1, 1], [], []>} : vector<16x32xf32>, vector<32x96xf32>, vector<16x96xf32> -> vector<16x96xf32>
    %57 = vector.broadcast %41 : vector<1x96xf32> to vector<16x96xf32>
    %58 = arith.addf %56, %57 : vector<16x96xf32>
    %cst_35 = arith.constant 0.000000e+00 : f32
    %59 = vector.broadcast %cst_35 : f32 to vector<16x32xf32>
    %60 = vector.extract_strided_slice %58 {offsets = [0, 0], sizes = [16, 16], strides = [1, 1]} : vector<16x96xf32> to vector<16x16xf32>
    %61 = vector.shape_cast %60 : vector<16x16xf32> to vector<2x8x16xf32>
    %62 = vector.extract_strided_slice %58 {offsets = [0, 32], sizes = [16, 16], strides = [1, 1]} : vector<16x96xf32> to vector<16x16xf32>
    %63 = vector.shape_cast %62 : vector<16x16xf32> to vector<2x8x16xf32>
    %64 = vector.extract_strided_slice %58 {offsets = [0, 64], sizes = [16, 16], strides = [1, 1]} : vector<16x96xf32> to vector<16x16xf32>
    %65 = vector.shape_cast %64 : vector<16x16xf32> to vector<2x8x16xf32>
    "tpu.trace_start"() <{level = 10 : i32, message = "bqd,bkd->bqk"}> : () -> ()
    %cst_36 = arith.constant dense<0.000000e+00> : vector<2x8x8xf32>
    %66 = tpu.matmul %61, %63, %cst_36 {dimension_numbers = #tpu.dot_dimension_numbers<[2], [2], [1], [1], [0, 0, 0, 1, 1, 1], [0], [0]>} : vector<2x8x16xf32>, vector<2x8x16xf32>, vector<2x8x8xf32> -> vector<2x8x8xf32>
    "tpu.trace_stop"() : () -> ()
    %cst_37 = arith.constant dense<0xFF800000> : vector<2x8xf32>
    %67 = vector.multi_reduction <maximumf>, %66, %cst_37 [2] : vector<2x8x8xf32> to vector<2x8xf32>
    %68 = vector.shape_cast %67 : vector<2x8xf32> to vector<2x8x1xf32>
    %69 = vector.broadcast %68 : vector<2x8x1xf32> to vector<2x8x8xf32>
    %70 = arith.subf %66, %69 : vector<2x8x8xf32>
    %71 = math.exp %70 : vector<2x8x8xf32>
    %cst_38 = arith.constant dense<0.000000e+00> : vector<2x8xf32>
    %72 = vector.multi_reduction <add>, %71, %cst_38 [2] : vector<2x8x8xf32> to vector<2x8xf32>
    %73 = vector.shape_cast %72 : vector<2x8xf32> to vector<2x8x1xf32>
    %74 = tpu.reciprocal %73 {approx = true} : vector<2x8x1xf32> -> vector<2x8x1xf32>
    %75 = vector.broadcast %74 : vector<2x8x1xf32> to vector<2x8x8xf32>
    %76 = arith.mulf %71, %75 : vector<2x8x8xf32>
    "tpu.trace_start"() <{level = 10 : i32, message = "bqk,bkd->bqd"}> : () -> ()
    %cst_39 = arith.constant dense<0.000000e+00> : vector<2x8x16xf32>
    %77 = tpu.matmul %76, %65, %cst_39 {dimension_numbers = #tpu.dot_dimension_numbers<[2], [1], [1], [2], [0, 0, 0, 1, 1, 2], [0], [0]>} : vector<2x8x8xf32>, vector<2x8x16xf32>, vector<2x8x16xf32> -> vector<2x8x16xf32>
    "tpu.trace_stop"() : () -> ()
    %c32 = arith.constant 32 : index
    %c0_40 = arith.constant 0 : index
    %78 = vector.load %arg4[%c32, %c0_40] : memref<544x128xf32, #tpu.memory_space<vmem>>, vector<16x32xf32>
    %79 = vector.shape_cast %77 : vector<2x8x16xf32> to vector<16x16xf32>
    %cst_41 = arith.constant dense<0.000000e+00> : vector<16x32xf32>
    %80 = tpu.matmul %79, %78, %cst_41 {dimension_numbers = #tpu.dot_dimension_numbers<[1], [0], [0], [1], [0, 0, 1, 1], [], []>} : vector<16x16xf32>, vector<16x32xf32>, vector<16x32xf32> -> vector<16x32xf32>
    %81 = arith.addf %59, %80 : vector<16x32xf32>
    %82 = vector.extract_strided_slice %58 {offsets = [0, 16], sizes = [16, 16], strides = [1, 1]} : vector<16x96xf32> to vector<16x16xf32>
    %83 = vector.shape_cast %82 : vector<16x16xf32> to vector<2x8x16xf32>
    %84 = vector.extract_strided_slice %58 {offsets = [0, 48], sizes = [16, 16], strides = [1, 1]} : vector<16x96xf32> to vector<16x16xf32>
    %85 = vector.shape_cast %84 : vector<16x16xf32> to vector<2x8x16xf32>
    %86 = vector.extract_strided_slice %58 {offsets = [0, 80], sizes = [16, 16], strides = [1, 1]} : vector<16x96xf32> to vector<16x16xf32>
    %87 = vector.shape_cast %86 : vector<16x16xf32> to vector<2x8x16xf32>
    "tpu.trace_start"() <{level = 10 : i32, message = "bqd,bkd->bqk"}> : () -> ()
    %cst_42 = arith.constant dense<0.000000e+00> : vector<2x8x8xf32>
    %88 = tpu.matmul %83, %85, %cst_42 {dimension_numbers = #tpu.dot_dimension_numbers<[2], [2], [1], [1], [0, 0, 0, 1, 1, 1], [0], [0]>} : vector<2x8x16xf32>, vector<2x8x16xf32>, vector<2x8x8xf32> -> vector<2x8x8xf32>
    "tpu.trace_stop"() : () -> ()
    %cst_43 = arith.constant dense<0xFF800000> : vector<2x8xf32>
    %89 = vector.multi_reduction <maximumf>, %88, %cst_43 [2] : vector<2x8x8xf32> to vector<2x8xf32>
    %90 = vector.shape_cast %89 : vector<2x8xf32> to vector<2x8x1xf32>
    %91 = vector.broadcast %90 : vector<2x8x1xf32> to vector<2x8x8xf32>
    %92 = arith.subf %88, %91 : vector<2x8x8xf32>
    %93 = math.exp %92 : vector<2x8x8xf32>
    %cst_44 = arith.constant dense<0.000000e+00> : vector<2x8xf32>
    %94 = vector.multi_reduction <add>, %93, %cst_44 [2] : vector<2x8x8xf32> to vector<2x8xf32>
    %95 = vector.shape_cast %94 : vector<2x8xf32> to vector<2x8x1xf32>
    %96 = tpu.reciprocal %95 {approx = true} : vector<2x8x1xf32> -> vector<2x8x1xf32>
    %97 = vector.broadcast %96 : vector<2x8x1xf32> to vector<2x8x8xf32>
    %98 = arith.mulf %93, %97 : vector<2x8x8xf32>
    "tpu.trace_start"() <{level = 10 : i32, message = "bqk,bkd->bqd"}> : () -> ()
    %cst_45 = arith.constant dense<0.000000e+00> : vector<2x8x16xf32>
    %99 = tpu.matmul %98, %87, %cst_45 {dimension_numbers = #tpu.dot_dimension_numbers<[2], [1], [1], [2], [0, 0, 0, 1, 1, 2], [0], [0]>} : vector<2x8x8xf32>, vector<2x8x16xf32>, vector<2x8x16xf32> -> vector<2x8x16xf32>
    "tpu.trace_stop"() : () -> ()
    %c48 = arith.constant 48 : index
    %c0_46 = arith.constant 0 : index
    %100 = vector.load %arg4[%c48, %c0_46] : memref<544x128xf32, #tpu.memory_space<vmem>>, vector<16x32xf32>
    %101 = vector.shape_cast %99 : vector<2x8x16xf32> to vector<16x16xf32>
    %cst_47 = arith.constant dense<0.000000e+00> : vector<16x32xf32>
    %102 = tpu.matmul %101, %100, %cst_47 {dimension_numbers = #tpu.dot_dimension_numbers<[1], [0], [0], [1], [0, 0, 1, 1], [], []>} : vector<16x16xf32>, vector<16x32xf32>, vector<16x32xf32> -> vector<16x32xf32>
    %103 = arith.addf %81, %102 : vector<16x32xf32>
    %104 = vector.broadcast %43 : vector<1x32xf32> to vector<16x32xf32>
    %105 = arith.addf %103, %104 : vector<16x32xf32>
    %106 = arith.addf %36, %105 : vector<16x32xf32>
    %cst_48 = arith.constant dense<0.000000e+00> : vector<16xf32>
    %107 = vector.multi_reduction <add>, %106, %cst_48 [1] : vector<16x32xf32> to vector<16xf32>
    %108 = vector.shape_cast %107 : vector<16xf32> to vector<16x1xf32>
    %cst_49 = arith.constant 3.200000e+01 : f32
    %109 = vector.broadcast %cst_49 : f32 to vector<16x1xf32>
    %110 = arith.divf %108, %109 : vector<16x1xf32>
    %111 = arith.mulf %106, %106 : vector<16x32xf32>
    %cst_50 = arith.constant dense<0.000000e+00> : vector<16xf32>
    %112 = vector.multi_reduction <add>, %111, %cst_50 [1] : vector<16x32xf32> to vector<16xf32>
    %113 = vector.shape_cast %112 : vector<16xf32> to vector<16x1xf32>
    %cst_51 = arith.constant 3.200000e+01 : f32
    %114 = vector.broadcast %cst_51 : f32 to vector<16x1xf32>
    %115 = arith.divf %113, %114 : vector<16x1xf32>
    %116 = arith.mulf %110, %110 : vector<16x1xf32>
    %117 = arith.subf %115, %116 : vector<16x1xf32>
    %cst_52 = arith.constant 0.000000e+00 : f32
    %118 = vector.broadcast %cst_52 : f32 to vector<16x1xf32>
    %119 = arith.maximumf %117, %118 : vector<16x1xf32>
    %120 = vector.broadcast %110 : vector<16x1xf32> to vector<16x32xf32>
    %121 = arith.subf %106, %120 : vector<16x32xf32>
    %cst_53 = arith.constant 9.99999996E-13 : f32
    %122 = vector.broadcast %cst_53 : f32 to vector<16x1xf32>
    %123 = arith.addf %119, %122 : vector<16x1xf32>
    %124 = math.rsqrt %123 : vector<16x1xf32>
    %125 = vector.broadcast %124 : vector<16x1xf32> to vector<16x32xf32>
    %126 = arith.mulf %121, %125 : vector<16x32xf32>
    %127 = vector.broadcast %45 : vector<1x32xf32> to vector<16x32xf32>
    %128 = arith.mulf %126, %127 : vector<16x32xf32>
    %129 = vector.broadcast %47 : vector<1x32xf32> to vector<16x32xf32>
    %130 = arith.addf %128, %129 : vector<16x32xf32>
    %cst_54 = arith.constant dense<0.000000e+00> : vector<16x64xf32>
    %131 = tpu.matmul %130, %38, %cst_54 {dimension_numbers = #tpu.dot_dimension_numbers<[1], [0], [0], [1], [0, 0, 1, 1], [], []>} : vector<16x32xf32>, vector<32x64xf32>, vector<16x64xf32> -> vector<16x64xf32>
    %132 = vector.broadcast %49 : vector<1x64xf32> to vector<16x64xf32>
    %133 = arith.addf %131, %132 : vector<16x64xf32>
    %134 = arith.mulf %133, %133 : vector<16x64xf32>
    %135 = arith.mulf %133, %134 : vector<16x64xf32>
    %cst_55 = arith.constant 4.471500e-02 : f32
    %136 = vector.broadcast %cst_55 : f32 to vector<16x64xf32>
    %137 = arith.mulf %136, %135 : vector<16x64xf32>
    %138 = arith.addf %133, %137 : vector<16x64xf32>
    %cst_56 = arith.constant 0.797884583 : f32
    %139 = vector.broadcast %cst_56 : f32 to vector<16x64xf32>
    %140 = arith.mulf %139, %138 : vector<16x64xf32>
    %141 = math.tanh %140 : vector<16x64xf32>
    %cst_57 = arith.constant 1.000000e+00 : f32
    %142 = vector.broadcast %cst_57 : f32 to vector<16x64xf32>
    %143 = arith.addf %142, %141 : vector<16x64xf32>
    %cst_58 = arith.constant 5.000000e-01 : f32
    %144 = vector.broadcast %cst_58 : f32 to vector<16x64xf32>
    %145 = arith.mulf %144, %143 : vector<16x64xf32>
    %146 = arith.mulf %133, %145 : vector<16x64xf32>
    %cst_59 = arith.constant dense<0.000000e+00> : vector<16x32xf32>
    %147 = tpu.matmul %146, %39, %cst_59 {dimension_numbers = #tpu.dot_dimension_numbers<[1], [0], [0], [1], [0, 0, 1, 1], [], []>} : vector<16x64xf32>, vector<64x32xf32>, vector<16x32xf32> -> vector<16x32xf32>
    %148 = vector.broadcast %51 : vector<1x32xf32> to vector<16x32xf32>
    %149 = arith.addf %147, %148 : vector<16x32xf32>
    %150 = arith.addf %130, %149 : vector<16x32xf32>
    %cst_60 = arith.constant dense<0.000000e+00> : vector<16xf32>
    %151 = vector.multi_reduction <add>, %150, %cst_60 [1] : vector<16x32xf32> to vector<16xf32>
    %152 = vector.shape_cast %151 : vector<16xf32> to vector<16x1xf32>
    %cst_61 = arith.constant 3.200000e+01 : f32
    %153 = vector.broadcast %cst_61 : f32 to vector<16x1xf32>
    %154 = arith.divf %152, %153 : vector<16x1xf32>
    %155 = arith.mulf %150, %150 : vector<16x32xf32>
    %cst_62 = arith.constant dense<0.000000e+00> : vector<16xf32>
    %156 = vector.multi_reduction <add>, %155, %cst_62 [1] : vector<16x32xf32> to vector<16xf32>
    %157 = vector.shape_cast %156 : vector<16xf32> to vector<16x1xf32>
    %cst_63 = arith.constant 3.200000e+01 : f32
    %158 = vector.broadcast %cst_63 : f32 to vector<16x1xf32>
    %159 = arith.divf %157, %158 : vector<16x1xf32>
    %160 = arith.mulf %154, %154 : vector<16x1xf32>
    %161 = arith.subf %159, %160 : vector<16x1xf32>
    %cst_64 = arith.constant 0.000000e+00 : f32
    %162 = vector.broadcast %cst_64 : f32 to vector<16x1xf32>
    %163 = arith.maximumf %161, %162 : vector<16x1xf32>
    %164 = vector.broadcast %154 : vector<16x1xf32> to vector<16x32xf32>
    %165 = arith.subf %150, %164 : vector<16x32xf32>
    %cst_65 = arith.constant 9.99999996E-13 : f32
    %166 = vector.broadcast %cst_65 : f32 to vector<16x1xf32>
    %167 = arith.addf %163, %166 : vector<16x1xf32>
    %168 = math.rsqrt %167 : vector<16x1xf32>
    %169 = vector.broadcast %168 : vector<16x1xf32> to vector<16x32xf32>
    %170 = arith.mulf %165, %169 : vector<16x32xf32>
    %171 = vector.broadcast %53 : vector<1x32xf32> to vector<16x32xf32>
    %172 = arith.mulf %170, %171 : vector<16x32xf32>
    %173 = vector.broadcast %55 : vector<1x32xf32> to vector<16x32xf32>
    %174 = arith.addf %172, %173 : vector<16x32xf32>
    %c160 = arith.constant 160 : index
    %c0_66 = arith.constant 0 : index
    %175 = vector.load %arg4[%c160, %c0_66] : memref<544x128xf32, #tpu.memory_space<vmem>>, vector<32x96xf32>
    %c224 = arith.constant 224 : index
    %c0_67 = arith.constant 0 : index
    %176 = vector.load %arg4[%c224, %c0_67] : memref<544x128xf32, #tpu.memory_space<vmem>>, vector<32x64xf32>
    %c256 = arith.constant 256 : index
    %c0_68 = arith.constant 0 : index
    %177 = vector.load %arg4[%c256, %c0_68] : memref<544x128xf32, #tpu.memory_space<vmem>>, vector<64x32xf32>
    %c1_69 = arith.constant 1 : index
    %c0_70 = arith.constant 0 : index
    %c0_71 = arith.constant 0 : index
    %178 = vector.load %arg2[%c1_69, %c0_70, %c0_71] : memref<2x8x128xf32, #tpu.memory_space<vmem>>, vector<1x1x96xf32>
    %179 = vector.shape_cast %178 : vector<1x1x96xf32> to vector<1x96xf32>
    %c1_72 = arith.constant 1 : index
    %c1_73 = arith.constant 1 : index
    %c0_74 = arith.constant 0 : index
    %180 = vector.load %arg2[%c1_72, %c1_73, %c0_74] : memref<2x8x128xf32, #tpu.memory_space<vmem>>, vector<1x1x32xf32>
    %181 = vector.shape_cast %180 : vector<1x1x32xf32> to vector<1x32xf32>
    %c1_75 = arith.constant 1 : index
    %c2_76 = arith.constant 2 : index
    %c0_77 = arith.constant 0 : index
    %182 = vector.load %arg2[%c1_75, %c2_76, %c0_77] : memref<2x8x128xf32, #tpu.memory_space<vmem>>, vector<1x1x32xf32>
    %183 = vector.shape_cast %182 : vector<1x1x32xf32> to vector<1x32xf32>
    %c1_78 = arith.constant 1 : index
    %c3_79 = arith.constant 3 : index
    %c0_80 = arith.constant 0 : index
    %184 = vector.load %arg2[%c1_78, %c3_79, %c0_80] : memref<2x8x128xf32, #tpu.memory_space<vmem>>, vector<1x1x32xf32>
    %185 = vector.shape_cast %184 : vector<1x1x32xf32> to vector<1x32xf32>
    %c1_81 = arith.constant 1 : index
    %c4_82 = arith.constant 4 : index
    %c0_83 = arith.constant 0 : index
    %186 = vector.load %arg2[%c1_81, %c4_82, %c0_83] : memref<2x8x128xf32, #tpu.memory_space<vmem>>, vector<1x1x64xf32>
    %187 = vector.shape_cast %186 : vector<1x1x64xf32> to vector<1x64xf32>
    %c1_84 = arith.constant 1 : index
    %c5_85 = arith.constant 5 : index
    %c0_86 = arith.constant 0 : index
    %188 = vector.load %arg2[%c1_84, %c5_85, %c0_86] : memref<2x8x128xf32, #tpu.memory_space<vmem>>, vector<1x1x32xf32>
    %189 = vector.shape_cast %188 : vector<1x1x32xf32> to vector<1x32xf32>
    %c1_87 = arith.constant 1 : index
    %c6_88 = arith.constant 6 : index
    %c0_89 = arith.constant 0 : index
    %190 = vector.load %arg2[%c1_87, %c6_88, %c0_89] : memref<2x8x128xf32, #tpu.memory_space<vmem>>, vector<1x1x32xf32>
    %191 = vector.shape_cast %190 : vector<1x1x32xf32> to vector<1x32xf32>
    %c1_90 = arith.constant 1 : index
    %c7_91 = arith.constant 7 : index
    %c0_92 = arith.constant 0 : index
    %192 = vector.load %arg2[%c1_90, %c7_91, %c0_92] : memref<2x8x128xf32, #tpu.memory_space<vmem>>, vector<1x1x32xf32>
    %193 = vector.shape_cast %192 : vector<1x1x32xf32> to vector<1x32xf32>
    %cst_93 = arith.constant dense<0.000000e+00> : vector<16x96xf32>
    %194 = tpu.matmul %174, %175, %cst_93 {dimension_numbers = #tpu.dot_dimension_numbers<[1], [0], [0], [1], [0, 0, 1, 1], [], []>} : vector<16x32xf32>, vector<32x96xf32>, vector<16x96xf32> -> vector<16x96xf32>
    %195 = vector.broadcast %179 : vector<1x96xf32> to vector<16x96xf32>
    %196 = arith.addf %194, %195 : vector<16x96xf32>
    %cst_94 = arith.constant 0.000000e+00 : f32
    %197 = vector.broadcast %cst_94 : f32 to vector<16x32xf32>
    %198 = vector.extract_strided_slice %196 {offsets = [0, 0], sizes = [16, 16], strides = [1, 1]} : vector<16x96xf32> to vector<16x16xf32>
    %199 = vector.shape_cast %198 : vector<16x16xf32> to vector<2x8x16xf32>
    %200 = vector.extract_strided_slice %196 {offsets = [0, 32], sizes = [16, 16], strides = [1, 1]} : vector<16x96xf32> to vector<16x16xf32>
    %201 = vector.shape_cast %200 : vector<16x16xf32> to vector<2x8x16xf32>
    %202 = vector.extract_strided_slice %196 {offsets = [0, 64], sizes = [16, 16], strides = [1, 1]} : vector<16x96xf32> to vector<16x16xf32>
    %203 = vector.shape_cast %202 : vector<16x16xf32> to vector<2x8x16xf32>
    "tpu.trace_start"() <{level = 10 : i32, message = "bqd,bkd->bqk"}> : () -> ()
    %cst_95 = arith.constant dense<0.000000e+00> : vector<2x8x8xf32>
    %204 = tpu.matmul %199, %201, %cst_95 {dimension_numbers = #tpu.dot_dimension_numbers<[2], [2], [1], [1], [0, 0, 0, 1, 1, 1], [0], [0]>} : vector<2x8x16xf32>, vector<2x8x16xf32>, vector<2x8x8xf32> -> vector<2x8x8xf32>
    "tpu.trace_stop"() : () -> ()
    %cst_96 = arith.constant dense<0xFF800000> : vector<2x8xf32>
    %205 = vector.multi_reduction <maximumf>, %204, %cst_96 [2] : vector<2x8x8xf32> to vector<2x8xf32>
    %206 = vector.shape_cast %205 : vector<2x8xf32> to vector<2x8x1xf32>
    %207 = vector.broadcast %206 : vector<2x8x1xf32> to vector<2x8x8xf32>
    %208 = arith.subf %204, %207 : vector<2x8x8xf32>
    %209 = math.exp %208 : vector<2x8x8xf32>
    %cst_97 = arith.constant dense<0.000000e+00> : vector<2x8xf32>
    %210 = vector.multi_reduction <add>, %209, %cst_97 [2] : vector<2x8x8xf32> to vector<2x8xf32>
    %211 = vector.shape_cast %210 : vector<2x8xf32> to vector<2x8x1xf32>
    %212 = tpu.reciprocal %211 {approx = true} : vector<2x8x1xf32> -> vector<2x8x1xf32>
    %213 = vector.broadcast %212 : vector<2x8x1xf32> to vector<2x8x8xf32>
    %214 = arith.mulf %209, %213 : vector<2x8x8xf32>
    "tpu.trace_start"() <{level = 10 : i32, message = "bqk,bkd->bqd"}> : () -> ()
    %cst_98 = arith.constant dense<0.000000e+00> : vector<2x8x16xf32>
    %215 = tpu.matmul %214, %203, %cst_98 {dimension_numbers = #tpu.dot_dimension_numbers<[2], [1], [1], [2], [0, 0, 0, 1, 1, 2], [0], [0]>} : vector<2x8x8xf32>, vector<2x8x16xf32>, vector<2x8x16xf32> -> vector<2x8x16xf32>
    "tpu.trace_stop"() : () -> ()
    %c192 = arith.constant 192 : index
    %c0_99 = arith.constant 0 : index
    %216 = vector.load %arg4[%c192, %c0_99] : memref<544x128xf32, #tpu.memory_space<vmem>>, vector<16x32xf32>
    %217 = vector.shape_cast %215 : vector<2x8x16xf32> to vector<16x16xf32>
    %cst_100 = arith.constant dense<0.000000e+00> : vector<16x32xf32>
    %218 = tpu.matmul %217, %216, %cst_100 {dimension_numbers = #tpu.dot_dimension_numbers<[1], [0], [0], [1], [0, 0, 1, 1], [], []>} : vector<16x16xf32>, vector<16x32xf32>, vector<16x32xf32> -> vector<16x32xf32>
    %219 = arith.addf %197, %218 : vector<16x32xf32>
    %220 = vector.extract_strided_slice %196 {offsets = [0, 16], sizes = [16, 16], strides = [1, 1]} : vector<16x96xf32> to vector<16x16xf32>
    %221 = vector.shape_cast %220 : vector<16x16xf32> to vector<2x8x16xf32>
    %222 = vector.extract_strided_slice %196 {offsets = [0, 48], sizes = [16, 16], strides = [1, 1]} : vector<16x96xf32> to vector<16x16xf32>
    %223 = vector.shape_cast %222 : vector<16x16xf32> to vector<2x8x16xf32>
    %224 = vector.extract_strided_slice %196 {offsets = [0, 80], sizes = [16, 16], strides = [1, 1]} : vector<16x96xf32> to vector<16x16xf32>
    %225 = vector.shape_cast %224 : vector<16x16xf32> to vector<2x8x16xf32>
    "tpu.trace_start"() <{level = 10 : i32, message = "bqd,bkd->bqk"}> : () -> ()
    %cst_101 = arith.constant dense<0.000000e+00> : vector<2x8x8xf32>
    %226 = tpu.matmul %221, %223, %cst_101 {dimension_numbers = #tpu.dot_dimension_numbers<[2], [2], [1], [1], [0, 0, 0, 1, 1, 1], [0], [0]>} : vector<2x8x16xf32>, vector<2x8x16xf32>, vector<2x8x8xf32> -> vector<2x8x8xf32>
    "tpu.trace_stop"() : () -> ()
    %cst_102 = arith.constant dense<0xFF800000> : vector<2x8xf32>
    %227 = vector.multi_reduction <maximumf>, %226, %cst_102 [2] : vector<2x8x8xf32> to vector<2x8xf32>
    %228 = vector.shape_cast %227 : vector<2x8xf32> to vector<2x8x1xf32>
    %229 = vector.broadcast %228 : vector<2x8x1xf32> to vector<2x8x8xf32>
    %230 = arith.subf %226, %229 : vector<2x8x8xf32>
    %231 = math.exp %230 : vector<2x8x8xf32>
    %cst_103 = arith.constant dense<0.000000e+00> : vector<2x8xf32>
    %232 = vector.multi_reduction <add>, %231, %cst_103 [2] : vector<2x8x8xf32> to vector<2x8xf32>
    %233 = vector.shape_cast %232 : vector<2x8xf32> to vector<2x8x1xf32>
    %234 = tpu.reciprocal %233 {approx = true} : vector<2x8x1xf32> -> vector<2x8x1xf32>
    %235 = vector.broadcast %234 : vector<2x8x1xf32> to vector<2x8x8xf32>
    %236 = arith.mulf %231, %235 : vector<2x8x8xf32>
    "tpu.trace_start"() <{level = 10 : i32, message = "bqk,bkd->bqd"}> : () -> ()
    %cst_104 = arith.constant dense<0.000000e+00> : vector<2x8x16xf32>
    %237 = tpu.matmul %236, %225, %cst_104 {dimension_numbers = #tpu.dot_dimension_numbers<[2], [1], [1], [2], [0, 0, 0, 1, 1, 2], [0], [0]>} : vector<2x8x8xf32>, vector<2x8x16xf32>, vector<2x8x16xf32> -> vector<2x8x16xf32>
    "tpu.trace_stop"() : () -> ()
    %c208 = arith.constant 208 : index
    %c0_105 = arith.constant 0 : index
    %238 = vector.load %arg4[%c208, %c0_105] : memref<544x128xf32, #tpu.memory_space<vmem>>, vector<16x32xf32>
    %239 = vector.shape_cast %237 : vector<2x8x16xf32> to vector<16x16xf32>
    %cst_106 = arith.constant dense<0.000000e+00> : vector<16x32xf32>
    %240 = tpu.matmul %239, %238, %cst_106 {dimension_numbers = #tpu.dot_dimension_numbers<[1], [0], [0], [1], [0, 0, 1, 1], [], []>} : vector<16x16xf32>, vector<16x32xf32>, vector<16x32xf32> -> vector<16x32xf32>
    %241 = arith.addf %219, %240 : vector<16x32xf32>
    %242 = vector.broadcast %181 : vector<1x32xf32> to vector<16x32xf32>
    %243 = arith.addf %241, %242 : vector<16x32xf32>
    %244 = arith.addf %174, %243 : vector<16x32xf32>
    %cst_107 = arith.constant dense<0.000000e+00> : vector<16xf32>
    %245 = vector.multi_reduction <add>, %244, %cst_107 [1] : vector<16x32xf32> to vector<16xf32>
    %246 = vector.shape_cast %245 : vector<16xf32> to vector<16x1xf32>
    %cst_108 = arith.constant 3.200000e+01 : f32
    %247 = vector.broadcast %cst_108 : f32 to vector<16x1xf32>
    %248 = arith.divf %246, %247 : vector<16x1xf32>
    %249 = arith.mulf %244, %244 : vector<16x32xf32>
    %cst_109 = arith.constant dense<0.000000e+00> : vector<16xf32>
    %250 = vector.multi_reduction <add>, %249, %cst_109 [1] : vector<16x32xf32> to vector<16xf32>
    %251 = vector.shape_cast %250 : vector<16xf32> to vector<16x1xf32>
    %cst_110 = arith.constant 3.200000e+01 : f32
    %252 = vector.broadcast %cst_110 : f32 to vector<16x1xf32>
    %253 = arith.divf %251, %252 : vector<16x1xf32>
    %254 = arith.mulf %248, %248 : vector<16x1xf32>
    %255 = arith.subf %253, %254 : vector<16x1xf32>
    %cst_111 = arith.constant 0.000000e+00 : f32
    %256 = vector.broadcast %cst_111 : f32 to vector<16x1xf32>
    %257 = arith.maximumf %255, %256 : vector<16x1xf32>
    %258 = vector.broadcast %248 : vector<16x1xf32> to vector<16x32xf32>
    %259 = arith.subf %244, %258 : vector<16x32xf32>
    %cst_112 = arith.constant 9.99999996E-13 : f32
    %260 = vector.broadcast %cst_112 : f32 to vector<16x1xf32>
    %261 = arith.addf %257, %260 : vector<16x1xf32>
    %262 = math.rsqrt %261 : vector<16x1xf32>
    %263 = vector.broadcast %262 : vector<16x1xf32> to vector<16x32xf32>
    %264 = arith.mulf %259, %263 : vector<16x32xf32>
    %265 = vector.broadcast %183 : vector<1x32xf32> to vector<16x32xf32>
    %266 = arith.mulf %264, %265 : vector<16x32xf32>
    %267 = vector.broadcast %185 : vector<1x32xf32> to vector<16x32xf32>
    %268 = arith.addf %266, %267 : vector<16x32xf32>
    %cst_113 = arith.constant dense<0.000000e+00> : vector<16x64xf32>
    %269 = tpu.matmul %268, %176, %cst_113 {dimension_numbers = #tpu.dot_dimension_numbers<[1], [0], [0], [1], [0, 0, 1, 1], [], []>} : vector<16x32xf32>, vector<32x64xf32>, vector<16x64xf32> -> vector<16x64xf32>
    %270 = vector.broadcast %187 : vector<1x64xf32> to vector<16x64xf32>
    %271 = arith.addf %269, %270 : vector<16x64xf32>
    %272 = arith.mulf %271, %271 : vector<16x64xf32>
    %273 = arith.mulf %271, %272 : vector<16x64xf32>
    %cst_114 = arith.constant 4.471500e-02 : f32
    %274 = vector.broadcast %cst_114 : f32 to vector<16x64xf32>
    %275 = arith.mulf %274, %273 : vector<16x64xf32>
    %276 = arith.addf %271, %275 : vector<16x64xf32>
    %cst_115 = arith.constant 0.797884583 : f32
    %277 = vector.broadcast %cst_115 : f32 to vector<16x64xf32>
    %278 = arith.mulf %277, %276 : vector<16x64xf32>
    %279 = math.tanh %278 : vector<16x64xf32>
    %cst_116 = arith.constant 1.000000e+00 : f32
    %280 = vector.broadcast %cst_116 : f32 to vector<16x64xf32>
    %281 = arith.addf %280, %279 : vector<16x64xf32>
    %cst_117 = arith.constant 5.000000e-01 : f32
    %282 = vector.broadcast %cst_117 : f32 to vector<16x64xf32>
    %283 = arith.mulf %282, %281 : vector<16x64xf32>
    %284 = arith.mulf %271, %283 : vector<16x64xf32>
    %cst_118 = arith.constant dense<0.000000e+00> : vector<16x32xf32>
    %285 = tpu.matmul %284, %177, %cst_118 {dimension_numbers = #tpu.dot_dimension_numbers<[1], [0], [0], [1], [0, 0, 1, 1], [], []>} : vector<16x64xf32>, vector<64x32xf32>, vector<16x32xf32> -> vector<16x32xf32>
    %286 = vector.broadcast %189 : vector<1x32xf32> to vector<16x32xf32>
    %287 = arith.addf %285, %286 : vector<16x32xf32>
    %288 = arith.addf %268, %287 : vector<16x32xf32>
    %cst_119 = arith.constant dense<0.000000e+00> : vector<16xf32>
    %289 = vector.multi_reduction <add>, %288, %cst_119 [1] : vector<16x32xf32> to vector<16xf32>
    %290 = vector.shape_cast %289 : vector<16xf32> to vector<16x1xf32>
    %cst_120 = arith.constant 3.200000e+01 : f32
    %291 = vector.broadcast %cst_120 : f32 to vector<16x1xf32>
    %292 = arith.divf %290, %291 : vector<16x1xf32>
    %293 = arith.mulf %288, %288 : vector<16x32xf32>
    %cst_121 = arith.constant dense<0.000000e+00> : vector<16xf32>
    %294 = vector.multi_reduction <add>, %293, %cst_121 [1] : vector<16x32xf32> to vector<16xf32>
    %295 = vector.shape_cast %294 : vector<16xf32> to vector<16x1xf32>
    %cst_122 = arith.constant 3.200000e+01 : f32
    %296 = vector.broadcast %cst_122 : f32 to vector<16x1xf32>
    %297 = arith.divf %295, %296 : vector<16x1xf32>
    %298 = arith.mulf %292, %292 : vector<16x1xf32>
    %299 = arith.subf %297, %298 : vector<16x1xf32>
    %cst_123 = arith.constant 0.000000e+00 : f32
    %300 = vector.broadcast %cst_123 : f32 to vector<16x1xf32>
    %301 = arith.maximumf %299, %300 : vector<16x1xf32>
    %302 = vector.broadcast %292 : vector<16x1xf32> to vector<16x32xf32>
    %303 = arith.subf %288, %302 : vector<16x32xf32>
    %cst_124 = arith.constant 9.99999996E-13 : f32
    %304 = vector.broadcast %cst_124 : f32 to vector<16x1xf32>
    %305 = arith.addf %301, %304 : vector<16x1xf32>
    %306 = math.rsqrt %305 : vector<16x1xf32>
    %307 = vector.broadcast %306 : vector<16x1xf32> to vector<16x32xf32>
    %308 = arith.mulf %303, %307 : vector<16x32xf32>
    %309 = vector.broadcast %191 : vector<1x32xf32> to vector<16x32xf32>
    %310 = arith.mulf %308, %309 : vector<16x32xf32>
    %311 = vector.broadcast %193 : vector<1x32xf32> to vector<16x32xf32>
    %312 = arith.addf %310, %311 : vector<16x32xf32>
    %c320 = arith.constant 320 : index
    %c0_125 = arith.constant 0 : index
    %313 = vector.load %arg4[%c320, %c0_125] : memref<544x128xf32, #tpu.memory_space<vmem>>, vector<32x128xf32>
    %c2_126 = arith.constant 2 : index
    %c0_127 = arith.constant 0 : index
    %314 = vector.load %arg3[%c2_126, %c0_127] : memref<8x128xf32, #tpu.memory_space<vmem>>, vector<1x128xf32>
    %315 = vector.extract_strided_slice %312 {offsets = [1, 0], sizes = [6, 32], strides = [1, 1]} : vector<16x32xf32> to vector<6x32xf32>
    %cst_128 = arith.constant dense<0.000000e+00> : vector<6x128xf32>
    %316 = tpu.matmul %315, %313, %cst_128 {dimension_numbers = #tpu.dot_dimension_numbers<[1], [0], [0], [1], [0, 0, 1, 1], [], []>} : vector<6x32xf32>, vector<32x128xf32>, vector<6x128xf32> -> vector<6x128xf32>
    %317 = vector.broadcast %314 : vector<1x128xf32> to vector<6x128xf32>
    %318 = arith.addf %316, %317 : vector<6x128xf32>
    %c0_129 = arith.constant 0 : index
    %c0_130 = arith.constant 0 : index
    %c0_131 = arith.constant 0 : index
    %319 = vector.load %arg5[%c0_129, %c0_130, %c0_131] : memref<2x6x128xf32, #tpu.memory_space<vmem>>, vector<1x6x128xf32>
    %320 = vector.shape_cast %319 : vector<1x6x128xf32> to vector<6x128xf32>
    %321 = vector.shape_cast %318 : vector<6x128xf32> to vector<1x6x128xf32>
    tpu.vector_store %arg5[%c0_129, %c0_130, %c0_131], %321 {strides = array<i32>} : memref<2x6x128xf32, #tpu.memory_space<vmem>>, vector<1x6x128xf32>,
    %322 = vector.extract_strided_slice %312 {offsets = [9, 0], sizes = [6, 32], strides = [1, 1]} : vector<16x32xf32> to vector<6x32xf32>
    %cst_132 = arith.constant dense<0.000000e+00> : vector<6x128xf32>
    %323 = tpu.matmul %322, %313, %cst_132 {dimension_numbers = #tpu.dot_dimension_numbers<[1], [0], [0], [1], [0, 0, 1, 1], [], []>} : vector<6x32xf32>, vector<32x128xf32>, vector<6x128xf32> -> vector<6x128xf32>
    %324 = vector.broadcast %314 : vector<1x128xf32> to vector<6x128xf32>
    %325 = arith.addf %323, %324 : vector<6x128xf32>
    %c1_133 = arith.constant 1 : index
    %c0_134 = arith.constant 0 : index
    %c0_135 = arith.constant 0 : index
    %326 = vector.load %arg5[%c1_133, %c0_134, %c0_135] : memref<2x6x128xf32, #tpu.memory_space<vmem>>, vector<1x6x128xf32>
    %327 = vector.shape_cast %326 : vector<1x6x128xf32> to vector<6x128xf32>
    %328 = vector.shape_cast %325 : vector<6x128xf32> to vector<1x6x128xf32>
    tpu.vector_store %arg5[%c1_133, %c0_134, %c0_135], %328 {strides = array<i32>} : memref<2x6x128xf32, #tpu.memory_space<vmem>>, vector<1x6x128xf32>,
    return
  }
  func.func @transform_0(%arg0: i32) -> (i32, i32) {
    %c0_i32 = arith.constant 0 : i32
    %c0_i32_0 = arith.constant 0 : i32
    %c0_i32_1 = arith.constant 0 : i32
    return %c0_i32, %c0_i32_0 : i32, i32
  }
  func.func @transform_1(%arg0: i32) -> (i32, i32, i32) {
    %c0_i32 = arith.constant 0 : i32
    %c0_i32_0 = arith.constant 0 : i32
    %c0_i32_1 = arith.constant 0 : i32
    %c0_i32_2 = arith.constant 0 : i32
    return %c0_i32, %c0_i32_0, %c0_i32_1 : i32, i32, i32
  }
  func.func @transform_2(%arg0: i32) -> (i32, i32) {
    %c0_i32 = arith.constant 0 : i32
    %c0_i32_0 = arith.constant 0 : i32
    %c0_i32_1 = arith.constant 0 : i32
    return %c0_i32, %c0_i32_0 : i32, i32
  }
  func.func @transform_3(%arg0: i32) -> (i32, i32) {
    %c0_i32 = arith.constant 0 : i32
    %c0_i32_0 = arith.constant 0 : i32
    %c0_i32_1 = arith.constant 0 : i32
    return %c0_i32, %c0_i32_0 : i32, i32
  }
  func.func @transform_4(%arg0: i32) -> (i32, i32, i32) {
    %c0_i32 = arith.constant 0 : i32
    %c0_i32_0 = arith.constant 0 : i32
    %c0_i32_1 = arith.constant 0 : i32
    %c0_i32_2 = arith.constant 0 : i32
    return %c0_i32, %c0_i32_0, %c0_i32_1 : i32, i32, i32
  }
}

</mosaic_0001>

<llo_original>
// kernel: tpu_custom_call.1
$region0: #{tpu_custom_call.1}
  #allocation0 [shape = 'u32[]', space=smem, size = 0x4, offset = 0x4, fixed_abs, tag = 'smem constant byte address 0x4 - core index']
  #allocation1 [shape = 'u32[144,128]{1,0:T(1,128)}', space=vmem, size = 0x12000, scoped, tag = 'internal scratch']
  %s0 = inlined_call_operand.vmem [shape: s32[16,1], index: 0, kind: input, shape index: {}]
  %s1 = inlined_call_operand.vmem [shape: f32[2,8,128], index: 1, kind: input, shape index: {}]
  %s2 = inlined_call_operand.vmem [shape: f32[8,128], index: 2, kind: input, shape index: {}]
  %s3 = inlined_call_operand.hbm [shape: f32[544,128], index: 3, kind: input, shape index: {}]
  %s4 = inlined_call_operand.vmem [shape: f32[2,6,128], index: 4, kind: output, shape index: {}]
  %s5 = sld [smem:[#allocation0]]
  $region30: #{tpu_custom_call.1} parent=0
    _
  %s7 = ssub.s32 1, %s5
  %s8 = scalar_select 0, %s7, %s5
  $region1: #{tpu_custom_call.1} parent=0
    #allocation2 [shape = 'u8[278528]{0}', space=vmem, size = 0x44000, scoped, tag = 'input window, operand 3, single buffered']
    #allocation3 [shape = 's32[1]{0}', space=sflag, size = 0x4, scoped, tag = 'scoped memory for tpu_custom_call.1']
    %9 = vsyncpa [#allocation3], 0
    // Predicated region
    $region2: #{tpu_custom_call.1} parent=1 // pred_check
      _
    $region3: #{tpu_custom_call.1} parent=1 // pred_check_branch
      %11 = sbr.rel (0) target = $region5
    $region4: #{tpu_custom_call.1} parent=1 // pred_region
      _
    $region5: #{tpu_custom_call.1} parent=1 // pred_fallthru
      _
    // Predicated region
    $region6: #{tpu_custom_call.1} parent=1 // pred_check
      _
    $region7: #{tpu_custom_call.1} parent=1 // pred_check_branch
      %13 = sbr.rel (0) target = $region9
    $region8: #{tpu_custom_call.1} parent=1 // pred_region
      _
    $region9: #{tpu_custom_call.1} parent=1 // pred_fallthru
      _
    // Predicated region
    $region10: #{tpu_custom_call.1} parent=1 // pred_check
      _
    $region11: #{tpu_custom_call.1} parent=1 // pred_check_branch
      %15 = sbr.rel (0) target = $region13
    $region12: #{tpu_custom_call.1} parent=1 // pred_region
      _
    $region13: #{tpu_custom_call.1} parent=1 // pred_fallthru
      _
    // Predicated region
    $region14: #{tpu_custom_call.1} parent=1 // pred_check
      _
    $region15: #{tpu_custom_call.1} parent=1 // pred_check_branch
      %17 = sbr.rel (0) target = $region17
    $region16: #{tpu_custom_call.1} parent=1 // pred_region
      %s19 = ssub.s32 8704, 8704
      %20 = vsyncadd [#allocation3], %s19
      %s21 = sshll.u32 [#allocation2], 4
      %s22 = int_to_ptr.vmem [resolvable:$true] %s21
      %27 = dma.hbm_to_vmem [thread:$0]  %s3, 8704, %s22, [#allocation3], 128, 128, 8
    $region17: #{tpu_custom_call.1} parent=1 // pred_fallthru
      _
    // Predicated region
    $region18: #{tpu_custom_call.1} parent=1 // pred_check
      _
    $region19: #{tpu_custom_call.1} parent=1 // pred_check_branch
      %29 = sbr.rel (0) target = $region21
    $region20: #{tpu_custom_call.1} parent=1 // pred_region
      %30 = dma.done [#allocation3], 8704
    $region21: #{tpu_custom_call.1} parent=1 // pred_fallthru
      _
    %v31 = vld [vmem:[%s0] sm:$0xff]
    %v32 = vld [vmem:[%s0 + $0x8] sm:$0xff]
    %v33 = vlaneseq
    %v34 = vand.u32 %v33, 127
    %35 = vset.pattern.permute.xlu0 0
    %36 = vperm.xlu0 %35, %v31
    %v37 = vpop.permute.xlu0 %36
    %38 = vset.pattern.permute.xlu0 0
    %39 = vperm.xlu0 %38, %v32
    %v40 = vpop.permute.xlu0 %39
    %vm41 = vcmp.eq.s32.totalorder %v34, %v37
    %vm42 = vcmp.eq.s32.totalorder %v34, %v40
    %v43 = vsel %vm41, 1, 0
    %v44 = vsel %vm42, 1, 0
    %v45 = vcvt.s32.f32 %v43
    %v46 = vcvt.s32.f32 %v44
    %v47 = vld [vmem:[#allocation2 + $0x160] sm:$0xff]
    %v48 = vld [vmem:[#allocation2 + $0x168] sm:$0xff]
    %v49 = vld [vmem:[#allocation2 + $0x170] sm:$0xff]
    %v50 = vld [vmem:[#allocation2 + $0x178] sm:$0xff]
    %v51 = vld [vmem:[#allocation2 + $0x180] sm:$0xff]
    %v52 = vld [vmem:[#allocation2 + $0x188] sm:$0xff]
    %v53 = vld [vmem:[#allocation2 + $0x190] sm:$0xff]
    %v54 = vld [vmem:[#allocation2 + $0x198] sm:$0xff]
    %v55 = vld [vmem:[#allocation2 + $0x1a0] sm:$0xff]
    %v56 = vld [vmem:[#allocation2 + $0x1a8] sm:$0xff]
    %v57 = vld [vmem:[#allocation2 + $0x1b0] sm:$0xff]
    %v58 = vld [vmem:[#allocation2 + $0x1b8] sm:$0xff]
    %v59 = vld [vmem:[#allocation2 + $0x1c0] sm:$0xff]
    %v60 = vld [vmem:[#allocation2 + $0x1c8] sm:$0xff]
    %v61 = vld [vmem:[#allocation2 + $0x1d0] sm:$0xff]
    %v62 = vld [vmem:[#allocation2 + $0x1d8] sm:$0xff]
    %v63 = vld [vmem:[#allocation2 + $0x1e0] sm:$0xff]
    %64 = vmatprep.subr.mxu0 0.0
    %65 = vmatpush1.msra.mxu0 %v47
    %66 = vmatprep.subr.mxu0 0.0
    %67 = vmatpush1.msra.mxu0 %v48
    %68 = vmatprep.subr.mxu0 0.0
    %69 = vmatpush1.msra.mxu0 %v49
    %70 = vmatprep.subr.mxu0 0.0
    %71 = vmatpush1.msra.mxu0 %v50
    %72 = vmatprep.subr.mxu0 0.0
    %73 = vmatpush1.msra.mxu0 %v51
    %74 = vmatprep.subr.mxu0 0.0
    %75 = vmatpush1.msra.mxu0 %v52
    %76 = vmatprep.subr.mxu0 0.0
    %77 = vmatpush1.msra.mxu0 %v53
    %78 = vmatprep.subr.mxu0 0.0
    %79 = vmatpush1.msra.mxu0 %v54
    %80 = vmatprep.subr.mxu0 0.0
    %81 = vmatpush1.msra.mxu0 %v55
    %82 = vmatprep.subr.mxu0 0.0
    %83 = vmatpush1.msra.mxu0 %v56
    %84 = vmatprep.subr.mxu0 0.0
    %85 = vmatpush1.msra.mxu0 %v57
    %86 = vmatprep.subr.mxu0 0.0
    %87 = vmatpush1.msra.mxu0 %v58
    %88 = vmatprep.subr.mxu0 0.0
    %89 = vmatpush1.msra.mxu0 %v59
    %90 = vmatprep.subr.mxu0 0.0
    %91 = vmatpush1.msra.mxu0 %v60
    %92 = vmatprep.subr.mxu0 0.0
    %93 = vmatpush1.msra.mxu0 %v61
    %94 = vmatprep.subr.mxu0 0.0
    %95 = vmatpush1.msra.mxu0 %v62
    %96 = vmatprep.subr.mxu0 0.0
    %97 = vmatpush1.msra.mxu0 0.0
    %98 = vmatprep.subr.mxu0 0.0
    %99 = vmatpush1.msra.mxu0 0.0
    %100 = vmatprep.subr.mxu0 0.0
    %101 = vmatpush1.msra.mxu0 0.0
    %102 = vmatprep.subr.mxu0 0.0
    %103 = vmatpush1.msra.mxu0 0.0
    %104 = vmatprep.subr.mxu0 0.0
    %105 = vmatpush1.msra.mxu0 0.0
    %106 = vmatprep.subr.mxu0 0.0
    %107 = vmatpush1.msra.mxu0 0.0
    %108 = vmatprep.subr.mxu0 0.0
    %109 = vmatpush1.msra.mxu0 0.0
    %110 = vmatprep.subr.mxu0 0.0
    %111 = vmatpush1.msra.mxu0 0.0
    %112 = vmatprep.subr.mxu0 0.0
    %113 = vmatpush1.msra.mxu0 0.0
    %114 = vmatprep.subr.mxu0 0.0
    %115 = vmatpush1.msra.mxu0 0.0
    %116 = vmatprep.subr.mxu0 0.0
    %117 = vmatpush1.msra.mxu0 0.0
    %118 = vmatprep.subr.mxu0 0.0
    %119 = vmatpush1.msra.mxu0 0.0
    %120 = vmatprep.subr.mxu0 0.0
    %121 = vmatpush1.msra.mxu0 0.0
    %122 = vmatprep.subr.mxu0 0.0
    %123 = vmatpush1.msra.mxu0 0.0
    %124 = vmatprep.subr.mxu0 0.0
    %125 = vmatpush1.msra.mxu0 0.0
    %126 = vmatprep.subr.mxu0 0.0
    %127 = vmatpush1.msra.mxu0 0.0
    %128 = vmatprep.mubr.f32.mxu0 0.0
    %129 = vmatmul.mubr.f32.gmra.mrb[0].mxu0 %v45
    %v130 = vpop.f32.mrb[0].mxu0
    %v131 = vadd.f32 %v63, %v130
    %v132 = vpop.f32.mrb[0].mxu0
    %133 = vmatprep.mubr.f32.mxu0 0.0
    %134 = vmatmul.mubr.f32.gmra.mrb[0].mxu0 %v46
    %v135 = vpop.f32.mrb[0].mxu0
    %v136 = vadd.f32 %v63, %v135
    %v137 = vpop.f32.mrb[0].mxu0
    %138 = vdwg.mxu0
    %v139 = vld [vmem:[%s2] sm:$0x1]
    %v140 = vld [vmem:[%s2 + $0x1] sm:$0x1]
    %vm141 = vcmask 261120
    %v142 = vsel %vm141, %v131, 0.0
    %143 = vadd.xlane.f32.xlu0 %v142
    %v144 = vpop.xlane.xlu0 %143
    %v145 = vsel %vm141, %v136, 0.0
    %146 = vadd.xlane.f32.xlu0 %v145
    %v147 = vpop.xlane.xlu0 %146
    %v148 = vrcp.pop 32.0
    %v149 = vmul.f32 %v144, %v148
    %v150 = vmul.f32 %v147, %v148
    %v151 = vmul.f32 %v131, %v131
    %v152 = vmul.f32 %v136, %v136
    %v153 = vsel %vm141, %v151, 0.0
    %154 = vadd.xlane.f32.xlu0 %v153
    %v155 = vpop.xlane.xlu0 %154
    %v156 = vsel %vm141, %v152, 0.0
    %157 = vadd.xlane.f32.xlu0 %v156
    %v158 = vpop.xlane.xlu0 %157
    %v159 = vmul.f32 %v155, %v148
    %v160 = vmul.f32 %v158, %v148
    %v161 = vmul.f32 %v149, %v149
    %v162 = vmul.f32 %v150, %v150
    %v163 = vsub.f32 %v159, %v161
    %v164 = vsub.f32 %v160, %v162
    %v165 = vmax.f32 %v163, 0.0
    %v166 = vmax.f32 %v164, 0.0
    %v167 = vsub.f32 %v131, %v149
    %v168 = vsub.f32 %v136, %v150
    %v169 = vadd.f32 %v165, 1e-12
    %v170 = vadd.f32 %v166, 1e-12
    %v171 = vrsqrt.pop %v169
    %v172 = vrsqrt.pop %v170
    %v173 = vmul.f32 %v167, %v171
    %v174 = vmul.f32 %v168, %v172
    %v175 = vlaneseq
    %v176 = vshrl.u32 %v175, 7
    %v177 = vsub.s32 0, %v176
    %v178 = vrot.slane %v139, %v177
    %v179 = vmul.f32 %v173, %v178
    %v180 = vmul.f32 %v174, %v178
    %v181 = vlaneseq
    %v182 = vshrl.u32 %v181, 7
    %v183 = vsub.s32 0, %v182
    %v184 = vrot.slane %v140, %v183
    %v185 = vadd.f32 %v179, %v184
    %v186 = vadd.f32 %v180, %v184
    %v187 = vld [vmem:[#allocation2] sm:$0xff]
    %v188 = vld [vmem:[#allocation2 + $0x8] sm:$0xff]
    %v189 = vld [vmem:[#allocation2 + $0x10] sm:$0xff]
    %v190 = vld [vmem:[#allocation2 + $0x18] sm:$0xff]
    %v191 = vld [vmem:[#allocation2 + $0x40] sm:$0xff]
    %v192 = vld [vmem:[#allocation2 + $0x48] sm:$0xff]
    %v193 = vld [vmem:[#allocation2 + $0x50] sm:$0xff]
    %v194 = vld [vmem:[#allocation2 + $0x58] sm:$0xff]
    %v195 = vld [vmem:[#allocation2 + $0x60] sm:$0xff]
    %v196 = vld [vmem:[#allocation2 + $0x68] sm:$0xff]
    %v197 = vld [vmem:[#allocation2 + $0x70] sm:$0xff]
    %v198 = vld [vmem:[#allocation2 + $0x78] sm:$0xff]
    %v199 = vld [vmem:[#allocation2 + $0x80] sm:$0xff]
    %v200 = vld [vmem:[#allocation2 + $0x88] sm:$0xff]
    %v201 = vld [vmem:[#allocation2 + $0x90] sm:$0xff]
    %v202 = vld [vmem:[#allocation2 + $0x98] sm:$0xff]
    %v203 = vld [vmem:[%s1] sm:$0x1]
    %v204 = vld [vmem:[%s1 + $0x1] sm:$0x1]
    %v205 = vld [vmem:[%s1 + $0x2] sm:$0x1]
    %v206 = vld [vmem:[%s1 + $0x3] sm:$0x1]
    %v207 = vld [vmem:[%s1 + $0x4] sm:$0x1]
    %v208 = vld [vmem:[%s1 + $0x5] sm:$0x1]
    %v209 = vld [vmem:[%s1 + $0x6] sm:$0x1]
    %v210 = vld [vmem:[%s1 + $0x7] sm:$0x1]
    %v211 = vlaneseq
    %v212 = vshrl.u32 %v211, 7
    %v213 = vsub.s32 0, %v212
    %v214 = vrot.slane %v203, %v213
    %v216 = vsel %vm141, %v185, 0
    %v219 = vsel %vm141, %v186, 0
    %221 = vmatprep.subr.mxu0 0.0
    %222 = vmatpush1.msra.mxu0 %v187
    %223 = vmatprep.subr.mxu0 0.0
    %224 = vmatpush1.msra.mxu0 %v188
    %225 = vmatprep.subr.mxu0 0.0
    %226 = vmatpush1.msra.mxu0 %v189
    %227 = vmatprep.subr.mxu0 0.0
    %228 = vmatpush1.msra.mxu0 %v190
    %229 = vmatprep.subr.mxu0 0.0
    %230 = vmatpush1.msra.mxu0 0.0
    %231 = vmatprep.subr.mxu0 0.0
    %232 = vmatpush1.msra.mxu0 0.0
    %233 = vmatprep.subr.mxu0 0.0
    %234 = vmatpush1.msra.mxu0 0.0
    %235 = vmatprep.subr.mxu0 0.0
    %236 = vmatpush1.msra.mxu0 0.0
    %237 = vmatprep.subr.mxu0 0.0
    %238 = vmatpush1.msra.mxu0 0.0
    %239 = vmatprep.subr.mxu0 0.0
    %240 = vmatpush1.msra.mxu0 0.0
    %241 = vmatprep.subr.mxu0 0.0
    %242 = vmatpush1.msra.mxu0 0.0
    %243 = vmatprep.subr.mxu0 0.0
    %244 = vmatpush1.msra.mxu0 0.0
    %245 = vmatprep.subr.mxu0 0.0
    %246 = vmatpush1.msra.mxu0 0.0
    %247 = vmatprep.subr.mxu0 0.0
    %248 = vmatpush1.msra.mxu0 0.0
    %249 = vmatprep.subr.mxu0 0.0
    %250 = vmatpush1.msra.mxu0 0.0
    %251 = vmatprep.subr.mxu0 0.0
    %252 = vmatpush1.msra.mxu0 0.0
    %253 = vmatprep.subr.mxu0 0.0
    %254 = vmatpush1.msra.mxu0 0.0
    %255 = vmatprep.subr.mxu0 0.0
    %256 = vmatpush1.msra.mxu0 0.0
    %257 = vmatprep.subr.mxu0 0.0
    %258 = vmatpush1.msra.mxu0 0.0
    %259 = vmatprep.subr.mxu0 0.0
    %260 = vmatpush1.msra.mxu0 0.0
    %261 = vmatprep.subr.mxu0 0.0
    %262 = vmatpush1.msra.mxu0 0.0
    %263 = vmatprep.subr.mxu0 0.0
    %264 = vmatpush1.msra.mxu0 0.0
    %265 = vmatprep.subr.mxu0 0.0
    %266 = vmatpush1.msra.mxu0 0.0
    %267 = vmatprep.subr.mxu0 0.0
    %268 = vmatpush1.msra.mxu0 0.0
    %269 = vmatprep.subr.mxu0 0.0
    %270 = vmatpush1.msra.mxu0 0.0
    %271 = vmatprep.subr.mxu0 0.0
    %272 = vmatpush1.msra.mxu0 0.0
    %273 = vmatprep.subr.mxu0 0.0
    %274 = vmatpush1.msra.mxu0 0.0
    %275 = vmatprep.subr.mxu0 0.0
    %276 = vmatpush1.msra.mxu0 0.0
    %277 = vmatprep.subr.mxu0 0.0
    %278 = vmatpush1.msra.mxu0 0.0
    %279 = vmatprep.subr.mxu0 0.0
    %280 = vmatpush1.msra.mxu0 0.0
    %281 = vmatprep.subr.mxu0 0.0
    %282 = vmatpush1.msra.mxu0 0.0
    %283 = vmatprep.subr.mxu0 0.0
    %284 = vmatpush1.msra.mxu0 0.0
    %285 = vmatprep.mubr.f32.mxu0 0.0
    %286 = vmatmul.mubr.f32.gmra.mrb[0].mxu0 %v216
    %v287 = vpop.f32.mrb[0].mxu0
    %v288 = vadd.f32 %v214, %v287
    %v289 = vpop.f32.mrb[0].mxu0
    %290 = vmatprep.mubr.f32.mxu0 0.0
    %291 = vmatmul.mubr.f32.gmra.mrb[0].mxu0 %v219
    %v292 = vpop.f32.mrb[0].mxu0
    %v293 = vadd.f32 %v214, %v292
    %v294 = vpop.f32.mrb[0].mxu0
    %295 = vdwg.mxu0
    %297 = vrot.lane.b32.xlu0 %v288, 96
    %v298 = vpop.permute.xlu0 %297
    %vm299 = vcmask 130048
    %v300 = vsel %vm299, %v288, 0
    %v302 = vsel %vm299, %v298, 0
    %304 = vmatprep.subr.mxu0 0.0
    %305 = vmatpush1.xpose.msra.mxu0 %v302
    %306 = vmatprep.subr.mxu0 0.0
    %307 = vmatpush1.xpose.msra.mxu0 0.0
    %308 = vmatprep.subr.mxu0 0.0
    %309 = vmatpush1.xpose.msra.mxu0 0.0
    %310 = vmatprep.subr.mxu0 0.0
    %311 = vmatpush1.xpose.msra.mxu0 0.0
    %312 = vmatprep.subr.mxu0 0.0
    %313 = vmatpush1.xpose.msra.mxu0 0.0
    %314 = vmatprep.subr.mxu0 0.0
    %315 = vmatpush1.xpose.msra.mxu0 0.0
    %316 = vmatprep.subr.mxu0 0.0
    %317 = vmatpush1.xpose.msra.mxu0 0.0
    %318 = vmatprep.subr.mxu0 0.0
    %319 = vmatpush1.xpose.msra.mxu0 0.0
    %320 = vmatprep.subr.mxu0 0.0
    %321 = vmatpush1.xpose.msra.mxu0 0.0
    %322 = vmatprep.subr.mxu0 0.0
    %323 = vmatpush1.xpose.msra.mxu0 0.0
    %324 = vmatprep.subr.mxu0 0.0
    %325 = vmatpush1.xpose.msra.mxu0 0.0
    %326 = vmatprep.subr.mxu0 0.0
    %327 = vmatpush1.xpose.msra.mxu0 0.0
    %328 = vmatprep.subr.mxu0 0.0
    %329 = vmatpush1.xpose.msra.mxu0 0.0
    %330 = vmatprep.subr.mxu0 0.0
    %331 = vmatpush1.xpose.msra.mxu0 0.0
    %332 = vmatprep.subr.mxu0 0.0
    %333 = vmatpush1.xpose.msra.mxu0 0.0
    %334 = vmatprep.subr.mxu0 0.0
    %335 = vmatpush1.xpose.msra.mxu0 0.0
    %336 = vmatprep.subr.mxu0 0.0
    %337 = vmatpush1.xpose.msra.mxu0 0.0
    %338 = vmatprep.subr.mxu0 0.0
    %339 = vmatpush1.xpose.msra.mxu0 0.0
    %340 = vmatprep.subr.mxu0 0.0
    %341 = vmatpush1.xpose.msra.mxu0 0.0
    %342 = vmatprep.subr.mxu0 0.0
    %343 = vmatpush1.xpose.msra.mxu0 0.0
    %344 = vmatprep.subr.mxu0 0.0
    %345 = vmatpush1.xpose.msra.mxu0 0.0
    %346 = vmatprep.subr.mxu0 0.0
    %347 = vmatpush1.xpose.msra.mxu0 0.0
    %348 = vmatprep.subr.mxu0 0.0
    %349 = vmatpush1.xpose.msra.mxu0 0.0
    %350 = vmatprep.subr.mxu0 0.0
    %351 = vmatpush1.xpose.msra.mxu0 0.0
    %352 = vmatprep.subr.mxu0 0.0
    %353 = vmatpush1.xpose.msra.mxu0 0.0
    %354 = vmatprep.subr.mxu0 0.0
    %355 = vmatpush1.xpose.msra.mxu0 0.0
    %356 = vmatprep.subr.mxu0 0.0
    %357 = vmatpush1.xpose.msra.mxu0 0.0
    %358 = vmatprep.subr.mxu0 0.0
    %359 = vmatpush1.xpose.msra.mxu0 0.0
    %360 = vmatprep.subr.mxu0 0.0
    %361 = vmatpush1.xpose.msra.mxu0 0.0
    %362 = vmatprep.subr.mxu0 0.0
    %363 = vmatpush1.xpose.msra.mxu0 0.0
    %364 = vmatprep.subr.mxu0 0.0
    %365 = vmatpush1.xpose.msra.mxu0 0.0
    %366 = vmatprep.subr.mxu0 0.0
    %367 = vmatpush1.xpose.msra.mxu0 0.0
    %368 = vmatprep.mubr.f32.mxu0 0.0
    %369 = vmatmul.mubr.f32.gmra.mrb[0].mxu0 %v300
    %v370 = vpop.f32.mrb[0].mxu0
    %v371 = vadd.f32 0.0, %v370
    %v372 = vpop.f32.mrb[0].mxu0
    %373 = vdwg.mxu0
    %375 = vrot.lane.b32.xlu0 %v293, 96
    %v376 = vpop.permute.xlu0 %375
    %v377 = vsel %vm299, %v293, 0
    %v379 = vsel %vm299, %v376, 0
    %381 = vmatprep.subr.mxu0 0.0
    %382 = vmatpush1.xpose.msra.mxu0 %v379
    %383 = vmatprep.subr.mxu0 0.0
    %384 = vmatpush1.xpose.msra.mxu0 0.0
    %385 = vmatprep.subr.mxu0 0.0
    %386 = vmatpush1.xpose.msra.mxu0 0.0
    %387 = vmatprep.subr.mxu0 0.0
    %388 = vmatpush1.xpose.msra.mxu0 0.0
    %389 = vmatprep.subr.mxu0 0.0
    %390 = vmatpush1.xpose.msra.mxu0 0.0
    %391 = vmatprep.subr.mxu0 0.0
    %392 = vmatpush1.xpose.msra.mxu0 0.0
    %393 = vmatprep.subr.mxu0 0.0
    %394 = vmatpush1.xpose.msra.mxu0 0.0
    %395 = vmatprep.subr.mxu0 0.0
    %396 = vmatpush1.xpose.msra.mxu0 0.0
    %397 = vmatprep.subr.mxu0 0.0
    %398 = vmatpush1.xpose.msra.mxu0 0.0
    %399 = vmatprep.subr.mxu0 0.0
    %400 = vmatpush1.xpose.msra.mxu0 0.0
    %401 = vmatprep.subr.mxu0 0.0
    %402 = vmatpush1.xpose.msra.mxu0 0.0
    %403 = vmatprep.subr.mxu0 0.0
    %404 = vmatpush1.xpose.msra.mxu0 0.0
    %405 = vmatprep.subr.mxu0 0.0
    %406 = vmatpush1.xpose.msra.mxu0 0.0
    %407 = vmatprep.subr.mxu0 0.0
    %408 = vmatpush1.xpose.msra.mxu0 0.0
    %409 = vmatprep.subr.mxu0 0.0
    %410 = vmatpush1.xpose.msra.mxu0 0.0
    %411 = vmatprep.subr.mxu0 0.0
    %412 = vmatpush1.xpose.msra.mxu0 0.0
    %413 = vmatprep.subr.mxu0 0.0
    %414 = vmatpush1.xpose.msra.mxu0 0.0
    %415 = vmatprep.subr.mxu0 0.0
    %416 = vmatpush1.xpose.msra.mxu0 0.0
    %417 = vmatprep.subr.mxu0 0.0
    %418 = vmatpush1.xpose.msra.mxu0 0.0
    %419 = vmatprep.subr.mxu0 0.0
    %420 = vmatpush1.xpose.msra.mxu0 0.0
    %421 = vmatprep.subr.mxu0 0.0
    %422 = vmatpush1.xpose.msra.mxu0 0.0
    %423 = vmatprep.subr.mxu0 0.0
    %424 = vmatpush1.xpose.msra.mxu0 0.0
    %425 = vmatprep.subr.mxu0 0.0
    %426 = vmatpush1.xpose.msra.mxu0 0.0
    %427 = vmatprep.subr.mxu0 0.0
    %428 = vmatpush1.xpose.msra.mxu0 0.0
    %429 = vmatprep.subr.mxu0 0.0
    %430 = vmatpush1.xpose.msra.mxu0 0.0
    %431 = vmatprep.subr.mxu0 0.0
    %432 = vmatpush1.xpose.msra.mxu0 0.0
    %433 = vmatprep.subr.mxu0 0.0
    %434 = vmatpush1.xpose.msra.mxu0 0.0
    %435 = vmatprep.subr.mxu0 0.0
    %436 = vmatpush1.xpose.msra.mxu0 0.0
    %437 = vmatprep.subr.mxu0 0.0
    %438 = vmatpush1.xpose.msra.mxu0 0.0
    %439 = vmatprep.subr.mxu0 0.0
    %440 = vmatpush1.xpose.msra.mxu0 0.0
    %441 = vmatprep.subr.mxu0 0.0
    %442 = vmatpush1.xpose.msra.mxu0 0.0
    %443 = vmatprep.subr.mxu0 0.0
    %444 = vmatpush1.xpose.msra.mxu0 0.0
    %445 = vmatprep.mubr.f32.mxu0 0.0
    %446 = vmatmul.mubr.f32.gmra.mrb[0].mxu0 %v377
    %v447 = vpop.f32.mrb[0].mxu0
    %v448 = vadd.f32 0.0, %v447
    %v449 = vpop.f32.mrb[0].mxu0
    %450 = vdwg.mxu0
    %vm451 = vcmask 64512
    %v452 = vsel %vm451, %v371, -inf
    %453 = vmax.xlane.f32.xlu0 %v452
    %v454 = vpop.xlane.xlu0 %453
    %v455 = vsel %vm451, %v448, -inf
    %456 = vmax.xlane.f32.xlu0 %v455
    %v457 = vpop.xlane.xlu0 %456
    %v458 = vsub.f32 %v371, %v454
    %v459 = vsub.f32 %v448, %v457
    %v460 = vmul.f32 %v458, 1.442695
    %v461 = vpow.pop %v460
    %v462 = vmul.f32 %v459, 1.442695
    %v463 = vpow.pop %v462
    %v464 = vsel %vm451, %v461, 0.0
    %465 = vadd.xlane.f32.xlu0 %v464
    %v466 = vpop.xlane.xlu0 %465
    %v467 = vsel %vm451, %v463, 0.0
    %468 = vadd.xlane.f32.xlu0 %v467
    %v469 = vpop.xlane.xlu0 %468
    %v470 = vrcp.pop %v466
    %v471 = vrcp.pop %v469
    %v472 = vmul.f32 %v461, %v470
    %v473 = vmul.f32 %v463, %v471
    %474 = vrot.lane.b32.xlu0 %v288, 64
    %v475 = vpop.permute.xlu0 %474
    %v478 = vsel %vm451, %v472, 0
    %480 = vmatprep.subr.mxu0 0.0
    %481 = vmatpush1.msra.mxu0 %v475
    %482 = vmatprep.subr.mxu0 0.0
    %483 = vmatpush1.msra.mxu0 0.0
    %484 = vmatprep.subr.mxu0 0.0
    %485 = vmatpush1.msra.mxu0 0.0
    %486 = vmatprep.subr.mxu0 0.0
    %487 = vmatpush1.msra.mxu0 0.0
    %488 = vmatprep.subr.mxu0 0.0
    %489 = vmatpush1.msra.mxu0 0.0
    %490 = vmatprep.subr.mxu0 0.0
    %491 = vmatpush1.msra.mxu0 0.0
    %492 = vmatprep.subr.mxu0 0.0
    %493 = vmatpush1.msra.mxu0 0.0
    %494 = vmatprep.subr.mxu0 0.0
    %495 = vmatpush1.msra.mxu0 0.0
    %496 = vmatprep.subr.mxu0 0.0
    %497 = vmatpush1.msra.mxu0 0.0
    %498 = vmatprep.subr.mxu0 0.0
    %499 = vmatpush1.msra.mxu0 0.0
    %500 = vmatprep.subr.mxu0 0.0
    %501 = vmatpush1.msra.mxu0 0.0
    %502 = vmatprep.subr.mxu0 0.0
    %503 = vmatpush1.msra.mxu0 0.0
    %504 = vmatprep.subr.mxu0 0.0
    %505 = vmatpush1.msra.mxu0 0.0
    %506 = vmatprep.subr.mxu0 0.0
    %507 = vmatpush1.msra.mxu0 0.0
    %508 = vmatprep.subr.mxu0 0.0
    %509 = vmatpush1.msra.mxu0 0.0
    %510 = vmatprep.subr.mxu0 0.0
    %511 = vmatpush1.msra.mxu0 0.0
    %512 = vmatprep.subr.mxu0 0.0
    %513 = vmatpush1.msra.mxu0 0.0
    %514 = vmatprep.subr.mxu0 0.0
    %515 = vmatpush1.msra.mxu0 0.0
    %516 = vmatprep.subr.mxu0 0.0
    %517 = vmatpush1.msra.mxu0 0.0
    %518 = vmatprep.subr.mxu0 0.0
    %519 = vmatpush1.msra.mxu0 0.0
    %520 = vmatprep.subr.mxu0 0.0
    %521 = vmatpush1.msra.mxu0 0.0
    %522 = vmatprep.subr.mxu0 0.0
    %523 = vmatpush1.msra.mxu0 0.0
    %524 = vmatprep.subr.mxu0 0.0
    %525 = vmatpush1.msra.mxu0 0.0
    %526 = vmatprep.subr.mxu0 0.0
    %527 = vmatpush1.msra.mxu0 0.0
    %528 = vmatprep.subr.mxu0 0.0
    %529 = vmatpush1.msra.mxu0 0.0
    %530 = vmatprep.subr.mxu0 0.0
    %531 = vmatpush1.msra.mxu0 0.0
    %532 = vmatprep.subr.mxu0 0.0
    %533 = vmatpush1.msra.mxu0 0.0
    %534 = vmatprep.subr.mxu0 0.0
    %535 = vmatpush1.msra.mxu0 0.0
    %536 = vmatprep.subr.mxu0 0.0
    %537 = vmatpush1.msra.mxu0 0.0
    %538 = vmatprep.subr.mxu0 0.0
    %539 = vmatpush1.msra.mxu0 0.0
    %540 = vmatprep.subr.mxu0 0.0
    %541 = vmatpush1.msra.mxu0 0.0
    %542 = vmatprep.subr.mxu0 0.0
    %543 = vmatpush1.msra.mxu0 0.0
    %544 = vmatprep.mubr.f32.mxu0 0.0
    %545 = vmatmul.mubr.f32.gmra.mrb[0].mxu0 %v478
    %v546 = vpop.f32.mrb[0].mxu0
    %v547 = vadd.f32 0.0, %v546
    %v548 = vpop.f32.mrb[0].mxu0
    %549 = vdwg.mxu0
    %550 = vrot.lane.b32.xlu0 %v293, 64
    %v551 = vpop.permute.xlu0 %550
    %v554 = vsel %vm451, %v473, 0
    %556 = vmatprep.subr.mxu0 0.0
    %557 = vmatpush1.msra.mxu0 %v551
    %558 = vmatprep.subr.mxu0 0.0
    %559 = vmatpush1.msra.mxu0 0.0
    %560 = vmatprep.subr.mxu0 0.0
    %561 = vmatpush1.msra.mxu0 0.0
    %562 = vmatprep.subr.mxu0 0.0
    %563 = vmatpush1.msra.mxu0 0.0
    %564 = vmatprep.subr.mxu0 0.0
    %565 = vmatpush1.msra.mxu0 0.0
    %566 = vmatprep.subr.mxu0 0.0
    %567 = vmatpush1.msra.mxu0 0.0
    %568 = vmatprep.subr.mxu0 0.0
    %569 = vmatpush1.msra.mxu0 0.0
    %570 = vmatprep.subr.mxu0 0.0
    %571 = vmatpush1.msra.mxu0 0.0
    %572 = vmatprep.subr.mxu0 0.0
    %573 = vmatpush1.msra.mxu0 0.0
    %574 = vmatprep.subr.mxu0 0.0
    %575 = vmatpush1.msra.mxu0 0.0
    %576 = vmatprep.subr.mxu0 0.0
    %577 = vmatpush1.msra.mxu0 0.0
    %578 = vmatprep.subr.mxu0 0.0
    %579 = vmatpush1.msra.mxu0 0.0
    %580 = vmatprep.subr.mxu0 0.0
    %581 = vmatpush1.msra.mxu0 0.0
    %582 = vmatprep.subr.mxu0 0.0
    %583 = vmatpush1.msra.mxu0 0.0
    %584 = vmatprep.subr.mxu0 0.0
    %585 = vmatpush1.msra.mxu0 0.0
    %586 = vmatprep.subr.mxu0 0.0
    %587 = vmatpush1.msra.mxu0 0.0
    %588 = vmatprep.subr.mxu0 0.0
    %589 = vmatpush1.msra.mxu0 0.0
    %590 = vmatprep.subr.mxu0 0.0
    %591 = vmatpush1.msra.mxu0 0.0
    %592 = vmatprep.subr.mxu0 0.0
    %593 = vmatpush1.msra.mxu0 0.0
    %594 = vmatprep.subr.mxu0 0.0
    %595 = vmatpush1.msra.mxu0 0.0
    %596 = vmatprep.subr.mxu0 0.0
    %597 = vmatpush1.msra.mxu0 0.0
    %598 = vmatprep.subr.mxu0 0.0
    %599 = vmatpush1.msra.mxu0 0.0
    %600 = vmatprep.subr.mxu0 0.0
    %601 = vmatpush1.msra.mxu0 0.0
    %602 = vmatprep.subr.mxu0 0.0
    %603 = vmatpush1.msra.mxu0 0.0
    %604 = vmatprep.subr.mxu0 0.0
    %605 = vmatpush1.msra.mxu0 0.0
    %606 = vmatprep.subr.mxu0 0.0
    %607 = vmatpush1.msra.mxu0 0.0
    %608 = vmatprep.subr.mxu0 0.0
    %609 = vmatpush1.msra.mxu0 0.0
    %610 = vmatprep.subr.mxu0 0.0
    %611 = vmatpush1.msra.mxu0 0.0
    %612 = vmatprep.subr.mxu0 0.0
    %613 = vmatpush1.msra.mxu0 0.0
    %614 = vmatprep.subr.mxu0 0.0
    %615 = vmatpush1.msra.mxu0 0.0
    %616 = vmatprep.subr.mxu0 0.0
    %617 = vmatpush1.msra.mxu0 0.0
    %618 = vmatprep.subr.mxu0 0.0
    %619 = vmatpush1.msra.mxu0 0.0
    %620 = vmatprep.mubr.f32.mxu0 0.0
    %621 = vmatmul.mubr.f32.gmra.mrb[0].mxu0 %v554
    %v622 = vpop.f32.mrb[0].mxu0
    %v623 = vadd.f32 0.0, %v622
    %v624 = vpop.f32.mrb[0].mxu0
    %625 = vdwg.mxu0
    %v626 = vld [vmem:[#allocation2 + $0x20] sm:$0xff]
    %v627 = vld [vmem:[#allocation2 + $0x28] sm:$0xff]
    %628 = vrot.lane.b32.xlu0 %v288, 112
    %v629 = vpop.permute.xlu0 %628
    %630 = vrot.lane.b32.xlu0 %v288, 80
    %v631 = vpop.permute.xlu0 %630
    %v632 = vsel %vm299, %v629, 0
    %v634 = vsel %vm299, %v631, 0
    %636 = vmatprep.subr.mxu0 0.0
    %637 = vmatpush1.xpose.msra.mxu0 %v634
    %638 = vmatprep.subr.mxu0 0.0
    %639 = vmatpush1.xpose.msra.mxu0 0.0
    %640 = vmatprep.subr.mxu0 0.0
    %641 = vmatpush1.xpose.msra.mxu0 0.0
    %642 = vmatprep.subr.mxu0 0.0
    %643 = vmatpush1.xpose.msra.mxu0 0.0
    %644 = vmatprep.subr.mxu0 0.0
    %645 = vmatpush1.xpose.msra.mxu0 0.0
    %646 = vmatprep.subr.mxu0 0.0
    %647 = vmatpush1.xpose.msra.mxu0 0.0
    %648 = vmatprep.subr.mxu0 0.0
    %649 = vmatpush1.xpose.msra.mxu0 0.0
    %650 = vmatprep.subr.mxu0 0.0
    %651 = vmatpush1.xpose.msra.mxu0 0.0
    %652 = vmatprep.subr.mxu0 0.0
    %653 = vmatpush1.xpose.msra.mxu0 0.0
    %654 = vmatprep.subr.mxu0 0.0
    %655 = vmatpush1.xpose.msra.mxu0 0.0
    %656 = vmatprep.subr.mxu0 0.0
    %657 = vmatpush1.xpose.msra.mxu0 0.0
    %658 = vmatprep.subr.mxu0 0.0
    %659 = vmatpush1.xpose.msra.mxu0 0.0
    %660 = vmatprep.subr.mxu0 0.0
    %661 = vmatpush1.xpose.msra.mxu0 0.0
    %662 = vmatprep.subr.mxu0 0.0
    %663 = vmatpush1.xpose.msra.mxu0 0.0
    %664 = vmatprep.subr.mxu0 0.0
    %665 = vmatpush1.xpose.msra.mxu0 0.0
    %666 = vmatprep.subr.mxu0 0.0
    %667 = vmatpush1.xpose.msra.mxu0 0.0
    %668 = vmatprep.subr.mxu0 0.0
    %669 = vmatpush1.xpose.msra.mxu0 0.0
    %670 = vmatprep.subr.mxu0 0.0
    %671 = vmatpush1.xpose.msra.mxu0 0.0
    %672 = vmatprep.subr.mxu0 0.0
    %673 = vmatpush1.xpose.msra.mxu0 0.0
    %674 = vmatprep.subr.mxu0 0.0
    %675 = vmatpush1.xpose.msra.mxu0 0.0
    %676 = vmatprep.subr.mxu0 0.0
    %677 = vmatpush1.xpose.msra.mxu0 0.0
    %678 = vmatprep.subr.mxu0 0.0
    %679 = vmatpush1.xpose.msra.mxu0 0.0
    %680 = vmatprep.subr.mxu0 0.0
    %681 = vmatpush1.xpose.msra.mxu0 0.0
    %682 = vmatprep.subr.mxu0 0.0
    %683 = vmatpush1.xpose.msra.mxu0 0.0
    %684 = vmatprep.subr.mxu0 0.0
    %685 = vmatpush1.xpose.msra.mxu0 0.0
    %686 = vmatprep.subr.mxu0 0.0
    %687 = vmatpush1.xpose.msra.mxu0 0.0
    %688 = vmatprep.subr.mxu0 0.0
    %689 = vmatpush1.xpose.msra.mxu0 0.0
    %690 = vmatprep.subr.mxu0 0.0
    %691 = vmatpush1.xpose.msra.mxu0 0.0
    %692 = vmatprep.subr.mxu0 0.0
    %693 = vmatpush1.xpose.msra.mxu0 0.0
    %694 = vmatprep.subr.mxu0 0.0
    %695 = vmatpush1.xpose.msra.mxu0 0.0
    %696 = vmatprep.subr.mxu0 0.0
    %697 = vmatpush1.xpose.msra.mxu0 0.0
    %698 = vmatprep.subr.mxu0 0.0
    %699 = vmatpush1.xpose.msra.mxu0 0.0
    %700 = vmatprep.mubr.f32.mxu0 0.0
    %701 = vmatmul.mubr.f32.gmra.mrb[0].mxu0 %v632
    %v702 = vpop.f32.mrb[0].mxu0
    %v703 = vadd.f32 0.0, %v702
    %v704 = vpop.f32.mrb[0].mxu0
    %705 = vdwg.mxu0
    %706 = vrot.lane.b32.xlu0 %v293, 112
    %v707 = vpop.permute.xlu0 %706
    %708 = vrot.lane.b32.xlu0 %v293, 80
    %v709 = vpop.permute.xlu0 %708
    %v710 = vsel %vm299, %v707, 0
    %v712 = vsel %vm299, %v709, 0
    %714 = vmatprep.subr.mxu0 0.0
    %715 = vmatpush1.xpose.msra.mxu0 %v712
    %716 = vmatprep.subr.mxu0 0.0
    %717 = vmatpush1.xpose.msra.mxu0 0.0
    %718 = vmatprep.subr.mxu0 0.0
    %719 = vmatpush1.xpose.msra.mxu0 0.0
    %720 = vmatprep.subr.mxu0 0.0
    %721 = vmatpush1.xpose.msra.mxu0 0.0
    %722 = vmatprep.subr.mxu0 0.0
    %723 = vmatpush1.xpose.msra.mxu0 0.0
    %724 = vmatprep.subr.mxu0 0.0
    %725 = vmatpush1.xpose.msra.mxu0 0.0
    %726 = vmatprep.subr.mxu0 0.0
    %727 = vmatpush1.xpose.msra.mxu0 0.0
    %728 = vmatprep.subr.mxu0 0.0
    %729 = vmatpush1.xpose.msra.mxu0 0.0
    %730 = vmatprep.subr.mxu0 0.0
    %731 = vmatpush1.xpose.msra.mxu0 0.0
    %732 = vmatprep.subr.mxu0 0.0
    %733 = vmatpush1.xpose.msra.mxu0 0.0
    %734 = vmatprep.subr.mxu0 0.0
    %735 = vmatpush1.xpose.msra.mxu0 0.0
    %736 = vmatprep.subr.mxu0 0.0
    %737 = vmatpush1.xpose.msra.mxu0 0.0
    %738 = vmatprep.subr.mxu0 0.0
    %739 = vmatpush1.xpose.msra.mxu0 0.0
    %740 = vmatprep.subr.mxu0 0.0
    %741 = vmatpush1.xpose.msra.mxu0 0.0
    %742 = vmatprep.subr.mxu0 0.0
    %743 = vmatpush1.xpose.msra.mxu0 0.0
    %744 = vmatprep.subr.mxu0 0.0
    %745 = vmatpush1.xpose.msra.mxu0 0.0
    %746 = vmatprep.subr.mxu0 0.0
    %747 = vmatpush1.xpose.msra.mxu0 0.0
    %748 = vmatprep.subr.mxu0 0.0
    %749 = vmatpush1.xpose.msra.mxu0 0.0
    %750 = vmatprep.subr.mxu0 0.0
    %751 = vmatpush1.xpose.msra.mxu0 0.0
    %752 = vmatprep.subr.mxu0 0.0
    %753 = vmatpush1.xpose.msra.mxu0 0.0
    %754 = vmatprep.subr.mxu0 0.0
    %755 = vmatpush1.xpose.msra.mxu0 0.0
    %756 = vmatprep.subr.mxu0 0.0
    %757 = vmatpush1.xpose.msra.mxu0 0.0
    %758 = vmatprep.subr.mxu0 0.0
    %759 = vmatpush1.xpose.msra.mxu0 0.0
    %760 = vmatprep.subr.mxu0 0.0
    %761 = vmatpush1.xpose.msra.mxu0 0.0
    %762 = vmatprep.subr.mxu0 0.0
    %763 = vmatpush1.xpose.msra.mxu0 0.0
    %764 = vmatprep.subr.mxu0 0.0
    %765 = vmatpush1.xpose.msra.mxu0 0.0
    %766 = vmatprep.subr.mxu0 0.0
    %767 = vmatpush1.xpose.msra.mxu0 0.0
    %768 = vmatprep.subr.mxu0 0.0
    %769 = vmatpush1.xpose.msra.mxu0 0.0
    %770 = vmatprep.subr.mxu0 0.0
    %771 = vmatpush1.xpose.msra.mxu0 0.0
    %772 = vmatprep.subr.mxu0 0.0
    %773 = vmatpush1.xpose.msra.mxu0 0.0
    %774 = vmatprep.subr.mxu0 0.0
    %775 = vmatpush1.xpose.msra.mxu0 0.0
    %776 = vmatprep.subr.mxu0 0.0
    %777 = vmatpush1.xpose.msra.mxu0 0.0
    %778 = vmatprep.mubr.f32.mxu0 0.0
    %779 = vmatmul.mubr.f32.gmra.mrb[0].mxu0 %v710
    %v780 = vpop.f32.mrb[0].mxu0
    %v781 = vadd.f32 0.0, %v780
    %v782 = vpop.f32.mrb[0].mxu0
    %783 = vdwg.mxu0
    %v784 = vsel %vm451, %v703, -inf
    %785 = vmax.xlane.f32.xlu0 %v784
    %v786 = vpop.xlane.xlu0 %785
    %v787 = vsel %vm451, %v781, -inf
    %788 = vmax.xlane.f32.xlu0 %v787
    %v789 = vpop.xlane.xlu0 %788
    %v790 = vsub.f32 %v703, %v786
    %v791 = vsub.f32 %v781, %v789
    %v792 = vmul.f32 %v790, 1.442695
    %v793 = vpow.pop %v792
    %v794 = vmul.f32 %v791, 1.442695
    %v795 = vpow.pop %v794
    %v796 = vsel %vm451, %v793, 0.0
    %797 = vadd.xlane.f32.xlu0 %v796
    %v798 = vpop.xlane.xlu0 %797
    %v799 = vsel %vm451, %v795, 0.0
    %800 = vadd.xlane.f32.xlu0 %v799
    %v801 = vpop.xlane.xlu0 %800
    %v802 = vrcp.pop %v798
    %v803 = vrcp.pop %v801
    %v804 = vmul.f32 %v793, %v802
    %v805 = vmul.f32 %v795, %v803
    %806 = vrot.lane.b32.xlu0 %v288, 48
    %v807 = vpop.permute.xlu0 %806
    %v810 = vsel %vm451, %v804, 0
    %812 = vmatprep.subr.mxu0 0.0
    %813 = vmatpush1.msra.mxu0 %v807
    %814 = vmatprep.subr.mxu0 0.0
    %815 = vmatpush1.msra.mxu0 0.0
    %816 = vmatprep.subr.mxu0 0.0
    %817 = vmatpush1.msra.mxu0 0.0
    %818 = vmatprep.subr.mxu0 0.0
    %819 = vmatpush1.msra.mxu0 0.0
    %820 = vmatprep.subr.mxu0 0.0
    %821 = vmatpush1.msra.mxu0 0.0
    %822 = vmatprep.subr.mxu0 0.0
    %823 = vmatpush1.msra.mxu0 0.0
    %824 = vmatprep.subr.mxu0 0.0
    %825 = vmatpush1.msra.mxu0 0.0
    %826 = vmatprep.subr.mxu0 0.0
    %827 = vmatpush1.msra.mxu0 0.0
    %828 = vmatprep.subr.mxu0 0.0
    %829 = vmatpush1.msra.mxu0 0.0
    %830 = vmatprep.subr.mxu0 0.0
    %831 = vmatpush1.msra.mxu0 0.0
    %832 = vmatprep.subr.mxu0 0.0
    %833 = vmatpush1.msra.mxu0 0.0
    %834 = vmatprep.subr.mxu0 0.0
    %835 = vmatpush1.msra.mxu0 0.0
    %836 = vmatprep.subr.mxu0 0.0
    %837 = vmatpush1.msra.mxu0 0.0
    %838 = vmatprep.subr.mxu0 0.0
    %839 = vmatpush1.msra.mxu0 0.0
    %840 = vmatprep.subr.mxu0 0.0
    %841 = vmatpush1.msra.mxu0 0.0
    %842 = vmatprep.subr.mxu0 0.0
    %843 = vmatpush1.msra.mxu0 0.0
    %844 = vmatprep.subr.mxu0 0.0
    %845 = vmatpush1.msra.mxu0 0.0
    %846 = vmatprep.subr.mxu0 0.0
    %847 = vmatpush1.msra.mxu0 0.0
    %848 = vmatprep.subr.mxu0 0.0
    %849 = vmatpush1.msra.mxu0 0.0
    %850 = vmatprep.subr.mxu0 0.0
    %851 = vmatpush1.msra.mxu0 0.0
    %852 = vmatprep.subr.mxu0 0.0
    %853 = vmatpush1.msra.mxu0 0.0
    %854 = vmatprep.subr.mxu0 0.0
    %855 = vmatpush1.msra.mxu0 0.0
    %856 = vmatprep.subr.mxu0 0.0
    %857 = vmatpush1.msra.mxu0 0.0
    %858 = vmatprep.subr.mxu0 0.0
    %859 = vmatpush1.msra.mxu0 0.0
    %860 = vmatprep.subr.mxu0 0.0
    %861 = vmatpush1.msra.mxu0 0.0
    %862 = vmatprep.subr.mxu0 0.0
    %863 = vmatpush1.msra.mxu0 0.0
    %864 = vmatprep.subr.mxu0 0.0
    %865 = vmatpush1.msra.mxu0 0.0
    %866 = vmatprep.subr.mxu0 0.0
    %867 = vmatpush1.msra.mxu0 0.0
    %868 = vmatprep.subr.mxu0 0.0
    %869 = vmatpush1.msra.mxu0 0.0
    %870 = vmatprep.subr.mxu0 0.0
    %871 = vmatpush1.msra.mxu0 0.0
    %872 = vmatprep.subr.mxu0 0.0
    %873 = vmatpush1.msra.mxu0 0.0
    %874 = vmatprep.subr.mxu0 0.0
    %875 = vmatpush1.msra.mxu0 0.0
    %876 = vmatprep.mubr.f32.mxu0 0.0
    %877 = vmatmul.mubr.f32.gmra.mrb[0].mxu0 %v810
    %v878 = vpop.f32.mrb[0].mxu0
    %v879 = vadd.f32 0.0, %v878
    %v880 = vpop.f32.mrb[0].mxu0
    %881 = vdwg.mxu0
    %882 = vrot.lane.b32.xlu0 %v293, 48
    %v883 = vpop.permute.xlu0 %882
    %v886 = vsel %vm451, %v805, 0
    %888 = vmatprep.subr.mxu0 0.0
    %889 = vmatpush1.msra.mxu0 %v883
    %890 = vmatprep.subr.mxu0 0.0
    %891 = vmatpush1.msra.mxu0 0.0
    %892 = vmatprep.subr.mxu0 0.0
    %893 = vmatpush1.msra.mxu0 0.0
    %894 = vmatprep.subr.mxu0 0.0
    %895 = vmatpush1.msra.mxu0 0.0
    %896 = vmatprep.subr.mxu0 0.0
    %897 = vmatpush1.msra.mxu0 0.0
    %898 = vmatprep.subr.mxu0 0.0
    %899 = vmatpush1.msra.mxu0 0.0
    %900 = vmatprep.subr.mxu0 0.0
    %901 = vmatpush1.msra.mxu0 0.0
    %902 = vmatprep.subr.mxu0 0.0
    %903 = vmatpush1.msra.mxu0 0.0
    %904 = vmatprep.subr.mxu0 0.0
    %905 = vmatpush1.msra.mxu0 0.0
    %906 = vmatprep.subr.mxu0 0.0
    %907 = vmatpush1.msra.mxu0 0.0
    %908 = vmatprep.subr.mxu0 0.0
    %909 = vmatpush1.msra.mxu0 0.0
    %910 = vmatprep.subr.mxu0 0.0
    %911 = vmatpush1.msra.mxu0 0.0
    %912 = vmatprep.subr.mxu0 0.0
    %913 = vmatpush1.msra.mxu0 0.0
    %914 = vmatprep.subr.mxu0 0.0
    %915 = vmatpush1.msra.mxu0 0.0
    %916 = vmatprep.subr.mxu0 0.0
    %917 = vmatpush1.msra.mxu0 0.0
    %918 = vmatprep.subr.mxu0 0.0
    %919 = vmatpush1.msra.mxu0 0.0
    %920 = vmatprep.subr.mxu0 0.0
    %921 = vmatpush1.msra.mxu0 0.0
    %922 = vmatprep.subr.mxu0 0.0
    %923 = vmatpush1.msra.mxu0 0.0
    %924 = vmatprep.subr.mxu0 0.0
    %925 = vmatpush1.msra.mxu0 0.0
    %926 = vmatprep.subr.mxu0 0.0
    %927 = vmatpush1.msra.mxu0 0.0
    %928 = vmatprep.subr.mxu0 0.0
    %929 = vmatpush1.msra.mxu0 0.0
    %930 = vmatprep.subr.mxu0 0.0
    %931 = vmatpush1.msra.mxu0 0.0
    %932 = vmatprep.subr.mxu0 0.0
    %933 = vmatpush1.msra.mxu0 0.0
    %934 = vmatprep.subr.mxu0 0.0
    %935 = vmatpush1.msra.mxu0 0.0
    %936 = vmatprep.subr.mxu0 0.0
    %937 = vmatpush1.msra.mxu0 0.0
    %938 = vmatprep.subr.mxu0 0.0
    %939 = vmatpush1.msra.mxu0 0.0
    %940 = vmatprep.subr.mxu0 0.0
    %941 = vmatpush1.msra.mxu0 0.0
    %942 = vmatprep.subr.mxu0 0.0
    %943 = vmatpush1.msra.mxu0 0.0
    %944 = vmatprep.subr.mxu0 0.0
    %945 = vmatpush1.msra.mxu0 0.0
    %946 = vmatprep.subr.mxu0 0.0
    %947 = vmatpush1.msra.mxu0 0.0
    %948 = vmatprep.subr.mxu0 0.0
    %949 = vmatpush1.msra.mxu0 0.0
    %950 = vmatprep.subr.mxu0 0.0
    %951 = vmatpush1.msra.mxu0 0.0
    %952 = vmatprep.mubr.f32.mxu0 0.0
    %953 = vmatmul.mubr.f32.gmra.mrb[0].mxu0 %v886
    %v954 = vpop.f32.mrb[0].mxu0
    %v955 = vadd.f32 0.0, %v954
    %v956 = vpop.f32.mrb[0].mxu0
    %957 = vdwg.mxu0
    %v958 = vld [vmem:[#allocation2 + $0x30] sm:$0xff]
    %v959 = vld [vmem:[#allocation2 + $0x38] sm:$0xff]
    %v961 = vsel %vm299, %v879, 0
    %v964 = vsel %vm299, %v955, 0
    %966 = vmatprep.subr.mxu0 0.0
    %967 = vmatpush1.msra.mxu0 %v958
    %968 = vmatprep.subr.mxu0 0.0
    %969 = vmatpush1.msra.mxu0 %v959
    %970 = vmatprep.subr.mxu0 0.0
    %971 = vmatpush1.msra.mxu0 0.0
    %972 = vmatprep.subr.mxu0 0.0
    %973 = vmatpush1.msra.mxu0 0.0
    %974 = vmatprep.subr.mxu0 0.0
    %975 = vmatpush1.msra.mxu0 0.0
    %976 = vmatprep.subr.mxu0 0.0
    %977 = vmatpush1.msra.mxu0 0.0
    %978 = vmatprep.subr.mxu0 0.0
    %979 = vmatpush1.msra.mxu0 0.0
    %980 = vmatprep.subr.mxu0 0.0
    %981 = vmatpush1.msra.mxu0 0.0
    %982 = vmatprep.subr.mxu0 0.0
    %983 = vmatpush1.msra.mxu0 0.0
    %984 = vmatprep.subr.mxu0 0.0
    %985 = vmatpush1.msra.mxu0 0.0
    %986 = vmatprep.subr.mxu0 0.0
    %987 = vmatpush1.msra.mxu0 0.0
    %988 = vmatprep.subr.mxu0 0.0
    %989 = vmatpush1.msra.mxu0 0.0
    %990 = vmatprep.subr.mxu0 0.0
    %991 = vmatpush1.msra.mxu0 0.0
    %992 = vmatprep.subr.mxu0 0.0
    %993 = vmatpush1.msra.mxu0 0.0
    %994 = vmatprep.subr.mxu0 0.0
    %995 = vmatpush1.msra.mxu0 0.0
    %996 = vmatprep.subr.mxu0 0.0
    %997 = vmatpush1.msra.mxu0 0.0
    %998 = vmatprep.subr.mxu0 0.0
    %999 = vmatpush1.msra.mxu0 0.0
    %1000 = vmatprep.subr.mxu0 0.0
    %1001 = vmatpush1.msra.mxu0 0.0
    %1002 = vmatprep.subr.mxu0 0.0
    %1003 = vmatpush1.msra.mxu0 0.0
    %1004 = vmatprep.subr.mxu0 0.0
    %1005 = vmatpush1.msra.mxu0 0.0
    %1006 = vmatprep.subr.mxu0 0.0
    %1007 = vmatpush1.msra.mxu0 0.0
    %1008 = vmatprep.subr.mxu0 0.0
    %1009 = vmatpush1.msra.mxu0 0.0
    %1010 = vmatprep.subr.mxu0 0.0
    %1011 = vmatpush1.msra.mxu0 0.0
    %1012 = vmatprep.subr.mxu0 0.0
    %1013 = vmatpush1.msra.mxu0 0.0
    %1014 = vmatprep.subr.mxu0 0.0
    %1015 = vmatpush1.msra.mxu0 0.0
    %1016 = vmatprep.subr.mxu0 0.0
    %1017 = vmatpush1.msra.mxu0 0.0
    %1018 = vmatprep.subr.mxu0 0.0
    %1019 = vmatpush1.msra.mxu0 0.0
    %1020 = vmatprep.subr.mxu0 0.0
    %1021 = vmatpush1.msra.mxu0 0.0
    %1022 = vmatprep.subr.mxu0 0.0
    %1023 = vmatpush1.msra.mxu0 0.0
    %1024 = vmatprep.subr.mxu0 0.0
    %1025 = vmatpush1.msra.mxu0 0.0
    %1026 = vmatprep.subr.mxu0 0.0
    %1027 = vmatpush1.msra.mxu0 0.0
    %1028 = vmatprep.subr.mxu0 0.0
    %1029 = vmatpush1.msra.mxu0 0.0
    %1030 = vmatprep.mubr.f32.mxu0 0.0
    %1031 = vmatmul.mubr.f32.gmra.mrb[0].mxu0 %v961
    %v1032 = vpop.f32.mrb[0].mxu0
    %v1033 = vadd.f32 0.0, %v1032
    %v1034 = vpop.f32.mrb[0].mxu0
    %1035 = vmatprep.mubr.f32.mxu0 0.0
    %1036 = vmatmul.mubr.f32.gmra.mrb[0].mxu0 %v964
    %v1037 = vpop.f32.mrb[0].mxu0
    %v1038 = vadd.f32 0.0, %v1037
    %v1039 = vpop.f32.mrb[0].mxu0
    %1040 = vdwg.mxu0
    %v1042 = vsel %vm299, %v547, 0
    %v1045 = vsel %vm299, %v623, 0
    %1047 = vmatprep.subr.mxu0 0.0
    %1048 = vmatpush1.msra.mxu0 %v626
    %1049 = vmatprep.subr.mxu0 0.0
    %1050 = vmatpush1.msra.mxu0 %v627
    %1051 = vmatprep.subr.mxu0 0.0
    %1052 = vmatpush1.msra.mxu0 0.0
    %1053 = vmatprep.subr.mxu0 0.0
    %1054 = vmatpush1.msra.mxu0 0.0
    %1055 = vmatprep.subr.mxu0 0.0
    %1056 = vmatpush1.msra.mxu0 0.0
    %1057 = vmatprep.subr.mxu0 0.0
    %1058 = vmatpush1.msra.mxu0 0.0
    %1059 = vmatprep.subr.mxu0 0.0
    %1060 = vmatpush1.msra.mxu0 0.0
    %1061 = vmatprep.subr.mxu0 0.0
    %1062 = vmatpush1.msra.mxu0 0.0
    %1063 = vmatprep.subr.mxu0 0.0
    %1064 = vmatpush1.msra.mxu0 0.0
    %1065 = vmatprep.subr.mxu0 0.0
    %1066 = vmatpush1.msra.mxu0 0.0
    %1067 = vmatprep.subr.mxu0 0.0
    %1068 = vmatpush1.msra.mxu0 0.0
    %1069 = vmatprep.subr.mxu0 0.0
    %1070 = vmatpush1.msra.mxu0 0.0
    %1071 = vmatprep.subr.mxu0 0.0
    %1072 = vmatpush1.msra.mxu0 0.0
    %1073 = vmatprep.subr.mxu0 0.0
    %1074 = vmatpush1.msra.mxu0 0.0
    %1075 = vmatprep.subr.mxu0 0.0
    %1076 = vmatpush1.msra.mxu0 0.0
    %1077 = vmatprep.subr.mxu0 0.0
    %1078 = vmatpush1.msra.mxu0 0.0
    %1079 = vmatprep.subr.mxu0 0.0
    %1080 = vmatpush1.msra.mxu0 0.0
    %1081 = vmatprep.subr.mxu0 0.0
    %1082 = vmatpush1.msra.mxu0 0.0
    %1083 = vmatprep.subr.mxu0 0.0
    %1084 = vmatpush1.msra.mxu0 0.0
    %1085 = vmatprep.subr.mxu0 0.0
    %1086 = vmatpush1.msra.mxu0 0.0
    %1087 = vmatprep.subr.mxu0 0.0
    %1088 = vmatpush1.msra.mxu0 0.0
    %1089 = vmatprep.subr.mxu0 0.0
    %1090 = vmatpush1.msra.mxu0 0.0
    %1091 = vmatprep.subr.mxu0 0.0
    %1092 = vmatpush1.msra.mxu0 0.0
    %1093 = vmatprep.subr.mxu0 0.0
    %1094 = vmatpush1.msra.mxu0 0.0
    %1095 = vmatprep.subr.mxu0 0.0
    %1096 = vmatpush1.msra.mxu0 0.0
    %1097 = vmatprep.subr.mxu0 0.0
    %1098 = vmatpush1.msra.mxu0 0.0
    %1099 = vmatprep.subr.mxu0 0.0
    %1100 = vmatpush1.msra.mxu0 0.0
    %1101 = vmatprep.subr.mxu0 0.0
    %1102 = vmatpush1.msra.mxu0 0.0
    %1103 = vmatprep.subr.mxu0 0.0
    %1104 = vmatpush1.msra.mxu0 0.0
    %1105 = vmatprep.subr.mxu0 0.0
    %1106 = vmatpush1.msra.mxu0 0.0
    %1107 = vmatprep.subr.mxu0 0.0
    %1108 = vmatpush1.msra.mxu0 0.0
    %1109 = vmatprep.subr.mxu0 0.0
    %1110 = vmatpush1.msra.mxu0 0.0
    %1111 = vmatprep.mubr.f32.mxu0 0.0
    %1112 = vmatmul.mubr.f32.gmra.mrb[0].mxu0 %v1042
    %v1113 = vpop.f32.mrb[0].mxu0
    %v1114 = vadd.f32 %v1033, %v1113
    %v1115 = vpop.f32.mrb[0].mxu0
    %1116 = vmatprep.mubr.f32.mxu0 0.0
    %1117 = vmatmul.mubr.f32.gmra.mrb[0].mxu0 %v1045
    %v1118 = vpop.f32.mrb[0].mxu0
    %v1119 = vadd.f32 %v1038, %v1118
    %v1120 = vpop.f32.mrb[0].mxu0
    %1121 = vdwg.mxu0
    %v1122 = vlaneseq
    %v1123 = vshrl.u32 %v1122, 7
    %v1124 = vsub.s32 0, %v1123
    %v1125 = vrot.slane %v204, %v1124
    %v1126 = vadd.f32 %v1114, %v1125
    %v1127 = vadd.f32 %v1119, %v1125
    %v1128 = vadd.f32 %v185, %v1126
    %v1129 = vadd.f32 %v186, %v1127
    %v1130 = vsel %vm141, %v1128, 0.0
    %1131 = vadd.xlane.f32.xlu0 %v1130
    %v1132 = vpop.xlane.xlu0 %1131
    %v1133 = vsel %vm141, %v1129, 0.0
    %1134 = vadd.xlane.f32.xlu0 %v1133
    %v1135 = vpop.xlane.xlu0 %1134
    %v1136 = vmul.f32 %v1132, %v148
    %v1137 = vmul.f32 %v1135, %v148
    %v1138 = vmul.f32 %v1128, %v1128
    %v1139 = vmul.f32 %v1129, %v1129
    %v1140 = vsel %vm141, %v1138, 0.0
    %1141 = vadd.xlane.f32.xlu0 %v1140
    %v1142 = vpop.xlane.xlu0 %1141
    %v1143 = vsel %vm141, %v1139, 0.0
    %1144 = vadd.xlane.f32.xlu0 %v1143
    %v1145 = vpop.xlane.xlu0 %1144
    %v1146 = vmul.f32 %v1142, %v148
    %v1147 = vmul.f32 %v1145, %v148
    %v1148 = vmul.f32 %v1136, %v1136
    %v1149 = vmul.f32 %v1137, %v1137
    %v1150 = vsub.f32 %v1146, %v1148
    %v1151 = vsub.f32 %v1147, %v1149
    %v1152 = vmax.f32 %v1150, 0.0
    %v1153 = vmax.f32 %v1151, 0.0
    %v1154 = vsub.f32 %v1128, %v1136
    %v1155 = vsub.f32 %v1129, %v1137
    %v1156 = vadd.f32 %v1152, 1e-12
    %v1157 = vadd.f32 %v1153, 1e-12
    %v1158 = vrsqrt.pop %v1156
    %v1159 = vrsqrt.pop %v1157
    %v1160 = vmul.f32 %v1154, %v1158
    %v1161 = vmul.f32 %v1155, %v1159
    %v1162 = vlaneseq
    %v1163 = vshrl.u32 %v1162, 7
    %v1164 = vsub.s32 0, %v1163
    %v1165 = vrot.slane %v205, %v1164
    %v1166 = vmul.f32 %v1160, %v1165
    %v1167 = vmul.f32 %v1161, %v1165
    %v1168 = vlaneseq
    %v1169 = vshrl.u32 %v1168, 7
    %v1170 = vsub.s32 0, %v1169
    %v1171 = vrot.slane %v206, %v1170
    %v1172 = vadd.f32 %v1166, %v1171
    %v1173 = vadd.f32 %v1167, %v1171
    %v1174 = vlaneseq
    %v1175 = vshrl.u32 %v1174, 7
    %v1176 = vsub.s32 0, %v1175
    %v1177 = vrot.slane %v207, %v1176
    %v1179 = vsel %vm141, %v1172, 0
    %v1182 = vsel %vm141, %v1173, 0
    %1184 = vmatprep.subr.mxu0 0.0
    %1185 = vmatpush1.msra.mxu0 %v191
    %1186 = vmatprep.subr.mxu0 0.0
    %1187 = vmatpush1.msra.mxu0 %v192
    %1188 = vmatprep.subr.mxu0 0.0
    %1189 = vmatpush1.msra.mxu0 %v193
    %1190 = vmatprep.subr.mxu0 0.0
    %1191 = vmatpush1.msra.mxu0 %v194
    %1192 = vmatprep.subr.mxu0 0.0
    %1193 = vmatpush1.msra.mxu0 0.0
    %1194 = vmatprep.subr.mxu0 0.0
    %1195 = vmatpush1.msra.mxu0 0.0
    %1196 = vmatprep.subr.mxu0 0.0
    %1197 = vmatpush1.msra.mxu0 0.0
    %1198 = vmatprep.subr.mxu0 0.0
    %1199 = vmatpush1.msra.mxu0 0.0
    %1200 = vmatprep.subr.mxu0 0.0
    %1201 = vmatpush1.msra.mxu0 0.0
    %1202 = vmatprep.subr.mxu0 0.0
    %1203 = vmatpush1.msra.mxu0 0.0
    %1204 = vmatprep.subr.mxu0 0.0
    %1205 = vmatpush1.msra.mxu0 0.0
    %1206 = vmatprep.subr.mxu0 0.0
    %1207 = vmatpush1.msra.mxu0 0.0
    %1208 = vmatprep.subr.mxu0 0.0
    %1209 = vmatpush1.msra.mxu0 0.0
    %1210 = vmatprep.subr.mxu0 0.0
    %1211 = vmatpush1.msra.mxu0 0.0
    %1212 = vmatprep.subr.mxu0 0.0
    %1213 = vmatpush1.msra.mxu0 0.0
    %1214 = vmatprep.subr.mxu0 0.0
    %1215 = vmatpush1.msra.mxu0 0.0
    %1216 = vmatprep.subr.mxu0 0.0
    %1217 = vmatpush1.msra.mxu0 0.0
    %1218 = vmatprep.subr.mxu0 0.0
    %1219 = vmatpush1.msra.mxu0 0.0
    %1220 = vmatprep.subr.mxu0 0.0
    %1221 = vmatpush1.msra.mxu0 0.0
    %1222 = vmatprep.subr.mxu0 0.0
    %1223 = vmatpush1.msra.mxu0 0.0
    %1224 = vmatprep.subr.mxu0 0.0
    %1225 = vmatpush1.msra.mxu0 0.0
    %1226 = vmatprep.subr.mxu0 0.0
    %1227 = vmatpush1.msra.mxu0 0.0
    %1228 = vmatprep.subr.mxu0 0.0
    %1229 = vmatpush1.msra.mxu0 0.0
    %1230 = vmatprep.subr.mxu0 0.0
    %1231 = vmatpush1.msra.mxu0 0.0
    %1232 = vmatprep.subr.mxu0 0.0
    %1233 = vmatpush1.msra.mxu0 0.0
    %1234 = vmatprep.subr.mxu0 0.0
    %1235 = vmatpush1.msra.mxu0 0.0
    %1236 = vmatprep.subr.mxu0 0.0
    %1237 = vmatpush1.msra.mxu0 0.0
    %1238 = vmatprep.subr.mxu0 0.0
    %1239 = vmatpush1.msra.mxu0 0.0
    %1240 = vmatprep.subr.mxu0 0.0
    %1241 = vmatpush1.msra.mxu0 0.0
    %1242 = vmatprep.subr.mxu0 0.0
    %1243 = vmatpush1.msra.mxu0 0.0
    %1244 = vmatprep.subr.mxu0 0.0
    %1245 = vmatpush1.msra.mxu0 0.0
    %1246 = vmatprep.subr.mxu0 0.0
    %1247 = vmatpush1.msra.mxu0 0.0
    %1248 = vmatprep.mubr.f32.mxu0 0.0
    %1249 = vmatmul.mubr.f32.gmra.mrb[0].mxu0 %v1179
    %v1250 = vpop.f32.mrb[0].mxu0
    %v1251 = vadd.f32 %v1177, %v1250
    %v1252 = vpop.f32.mrb[0].mxu0
    %1253 = vmatprep.mubr.f32.mxu0 0.0
    %1254 = vmatmul.mubr.f32.gmra.mrb[0].mxu0 %v1182
    %v1255 = vpop.f32.mrb[0].mxu0
    %v1256 = vadd.f32 %v1177, %v1255
    %v1257 = vpop.f32.mrb[0].mxu0
    %1258 = vdwg.mxu0
    %v1259 = vmul.f32 %v1251, %v1251
    %v1260 = vmul.f32 %v1256, %v1256
    %v1261 = vmul.f32 %v1251, %v1259
    %v1262 = vmul.f32 %v1256, %v1260
    %v1263 = vmul.f32 %v1261, 0.044715
    %v1264 = vmul.f32 %v1262, 0.044715
    %v1265 = vadd.f32 %v1251, %v1263
    %v1266 = vadd.f32 %v1256, %v1264
    %v1267 = vmul.f32 %v1265, 0.7978846
    %v1268 = vmul.f32 %v1266, 0.7978846
    %v1269 = vtanh.pop %v1267
    %v1270 = vtanh.pop %v1268
    %v1271 = vadd.f32 %v1269, 1.0
    %v1272 = vadd.f32 %v1270, 1.0
    %v1273 = vmul.f32 %v1271, 0.5
    %v1274 = vmul.f32 %v1272, 0.5
    %v1275 = vmul.f32 %v1251, %v1273
    %v1276 = vmul.f32 %v1256, %v1274
    %v1277 = vlaneseq
    %v1278 = vshrl.u32 %v1277, 7
    %v1279 = vsub.s32 0, %v1278
    %v1280 = vrot.slane %v208, %v1279
    %vm1281 = vcmask 523264
    %v1283 = vsel %vm1281, %v1275, 0
    %v1286 = vsel %vm1281, %v1276, 0
    %1288 = vmatprep.subr.mxu0 0.0
    %1289 = vmatpush1.msra.mxu0 %v195
    %1290 = vmatprep.subr.mxu0 0.0
    %1291 = vmatpush1.msra.mxu0 %v196
    %1292 = vmatprep.subr.mxu0 0.0
    %1293 = vmatpush1.msra.mxu0 %v197
    %1294 = vmatprep.subr.mxu0 0.0
    %1295 = vmatpush1.msra.mxu0 %v198
    %1296 = vmatprep.subr.mxu0 0.0
    %1297 = vmatpush1.msra.mxu0 %v199
    %1298 = vmatprep.subr.mxu0 0.0
    %1299 = vmatpush1.msra.mxu0 %v200
    %1300 = vmatprep.subr.mxu0 0.0
    %1301 = vmatpush1.msra.mxu0 %v201
    %1302 = vmatprep.subr.mxu0 0.0
    %1303 = vmatpush1.msra.mxu0 %v202
    %1304 = vmatprep.subr.mxu0 0.0
    %1305 = vmatpush1.msra.mxu0 0.0
    %1306 = vmatprep.subr.mxu0 0.0
    %1307 = vmatpush1.msra.mxu0 0.0
    %1308 = vmatprep.subr.mxu0 0.0
    %1309 = vmatpush1.msra.mxu0 0.0
    %1310 = vmatprep.subr.mxu0 0.0
    %1311 = vmatpush1.msra.mxu0 0.0
    %1312 = vmatprep.subr.mxu0 0.0
    %1313 = vmatpush1.msra.mxu0 0.0
    %1314 = vmatprep.subr.mxu0 0.0
    %1315 = vmatpush1.msra.mxu0 0.0
    %1316 = vmatprep.subr.mxu0 0.0
    %1317 = vmatpush1.msra.mxu0 0.0
    %1318 = vmatprep.subr.mxu0 0.0
    %1319 = vmatpush1.msra.mxu0 0.0
    %1320 = vmatprep.subr.mxu0 0.0
    %1321 = vmatpush1.msra.mxu0 0.0
    %1322 = vmatprep.subr.mxu0 0.0
    %1323 = vmatpush1.msra.mxu0 0.0
    %1324 = vmatprep.subr.mxu0 0.0
    %1325 = vmatpush1.msra.mxu0 0.0
    %1326 = vmatprep.subr.mxu0 0.0
    %1327 = vmatpush1.msra.mxu0 0.0
    %1328 = vmatprep.subr.mxu0 0.0
    %1329 = vmatpush1.msra.mxu0 0.0
    %1330 = vmatprep.subr.mxu0 0.0
    %1331 = vmatpush1.msra.mxu0 0.0
    %1332 = vmatprep.subr.mxu0 0.0
    %1333 = vmatpush1.msra.mxu0 0.0
    %1334 = vmatprep.subr.mxu0 0.0
    %1335 = vmatpush1.msra.mxu0 0.0
    %1336 = vmatprep.subr.mxu0 0.0
    %1337 = vmatpush1.msra.mxu0 0.0
    %1338 = vmatprep.subr.mxu0 0.0
    %1339 = vmatpush1.msra.mxu0 0.0
    %1340 = vmatprep.subr.mxu0 0.0
    %1341 = vmatpush1.msra.mxu0 0.0
    %1342 = vmatprep.subr.mxu0 0.0
    %1343 = vmatpush1.msra.mxu0 0.0
    %1344 = vmatprep.subr.mxu0 0.0
    %1345 = vmatpush1.msra.mxu0 0.0
    %1346 = vmatprep.subr.mxu0 0.0
    %1347 = vmatpush1.msra.mxu0 0.0
    %1348 = vmatprep.subr.mxu0 0.0
    %1349 = vmatpush1.msra.mxu0 0.0
    %1350 = vmatprep.subr.mxu0 0.0
    %1351 = vmatpush1.msra.mxu0 0.0
    %1352 = vmatprep.mubr.f32.mxu0 0.0
    %1353 = vmatmul.mubr.f32.gmra.mrb[0].mxu0 %v1283
    %v1354 = vpop.f32.mrb[0].mxu0
    %v1355 = vadd.f32 %v1280, %v1354
    %v1356 = vpop.f32.mrb[0].mxu0
    %1357 = vmatprep.mubr.f32.mxu0 0.0
    %1358 = vmatmul.mubr.f32.gmra.mrb[0].mxu0 %v1286
    %v1359 = vpop.f32.mrb[0].mxu0
    %v1360 = vadd.f32 %v1280, %v1359
    %v1361 = vpop.f32.mrb[0].mxu0
    %1362 = vdwg.mxu0
    %v1363 = vadd.f32 %v1172, %v1355
    %v1364 = vadd.f32 %v1173, %v1360
    %v1365 = vsel %vm141, %v1363, 0.0
    %1366 = vadd.xlane.f32.xlu0 %v1365
    %v1367 = vpop.xlane.xlu0 %1366
    %v1368 = vsel %vm141, %v1364, 0.0
    %1369 = vadd.xlane.f32.xlu0 %v1368
    %v1370 = vpop.xlane.xlu0 %1369
    %v1371 = vmul.f32 %v1367, %v148
    %v1372 = vmul.f32 %v1370, %v148
    %v1373 = vmul.f32 %v1363, %v1363
    %v1374 = vmul.f32 %v1364, %v1364
    %v1375 = vsel %vm141, %v1373, 0.0
    %1376 = vadd.xlane.f32.xlu0 %v1375
    %v1377 = vpop.xlane.xlu0 %1376
    %v1378 = vsel %vm141, %v1374, 0.0
    %1379 = vadd.xlane.f32.xlu0 %v1378
    %v1380 = vpop.xlane.xlu0 %1379
    %v1381 = vmul.f32 %v1377, %v148
    %v1382 = vmul.f32 %v1380, %v148
    %v1383 = vmul.f32 %v1371, %v1371
    %v1384 = vmul.f32 %v1372, %v1372
    %v1385 = vsub.f32 %v1381, %v1383
    %v1386 = vsub.f32 %v1382, %v1384
    %v1387 = vmax.f32 %v1385, 0.0
    %v1388 = vmax.f32 %v1386, 0.0
    %v1389 = vsub.f32 %v1363, %v1371
    %v1390 = vsub.f32 %v1364, %v1372
    %v1391 = vadd.f32 %v1387, 1e-12
    %v1392 = vadd.f32 %v1388, 1e-12
    %v1393 = vrsqrt.pop %v1391
    %v1394 = vrsqrt.pop %v1392
    %v1395 = vmul.f32 %v1389, %v1393
    %v1396 = vmul.f32 %v1390, %v1394
    %v1397 = vlaneseq
    %v1398 = vshrl.u32 %v1397, 7
    %v1399 = vsub.s32 0, %v1398
    %v1400 = vrot.slane %v209, %v1399
    %v1401 = vmul.f32 %v1395, %v1400
    %v1402 = vmul.f32 %v1396, %v1400
    %v1403 = vlaneseq
    %v1404 = vshrl.u32 %v1403, 7
    %v1405 = vsub.s32 0, %v1404
    %v1406 = vrot.slane %v210, %v1405
    %v1407 = vadd.f32 %v1401, %v1406
    %v1408 = vadd.f32 %v1402, %v1406
    %v1409 = vld [vmem:[#allocation2 + $0xa0] sm:$0xff]
    %v1410 = vld [vmem:[#allocation2 + $0xa8] sm:$0xff]
    %v1411 = vld [vmem:[#allocation2 + $0xb0] sm:$0xff]
    %v1412 = vld [vmem:[#allocation2 + $0xb8] sm:$0xff]
    %v1413 = vld [vmem:[#allocation2 + $0xe0] sm:$0xff]
    %v1414 = vld [vmem:[#allocation2 + $0xe8] sm:$0xff]
    %v1415 = vld [vmem:[#allocation2 + $0xf0] sm:$0xff]
    %v1416 = vld [vmem:[#allocation2 + $0xf8] sm:$0xff]
    %v1417 = vld [vmem:[#allocation2 + $0x100] sm:$0xff]
    %v1418 = vld [vmem:[#allocation2 + $0x108] sm:$0xff]
    %v1419 = vld [vmem:[#allocation2 + $0x110] sm:$0xff]
    %v1420 = vld [vmem:[#allocation2 + $0x118] sm:$0xff]
    %v1421 = vld [vmem:[#allocation2 + $0x120] sm:$0xff]
    %v1422 = vld [vmem:[#allocation2 + $0x128] sm:$0xff]
    %v1423 = vld [vmem:[#allocation2 + $0x130] sm:$0xff]
    %v1424 = vld [vmem:[#allocation2 + $0x138] sm:$0xff]
    %s1425 = scalar_lea.vmem %s1, 8
    %v1426 = vld [vmem:[%s1425] sm:$0x1]
    %v1427 = vld [vmem:[%s1425 + $0x1] sm:$0x1]
    %v1428 = vld [vmem:[%s1425 + $0x2] sm:$0x1]
    %v1429 = vld [vmem:[%s1425 + $0x3] sm:$0x1]
    %v1430 = vld [vmem:[%s1425 + $0x4] sm:$0x1]
    %v1431 = vld [vmem:[%s1425 + $0x5] sm:$0x1]
    %v1432 = vld [vmem:[%s1425 + $0x6] sm:$0x1]
    %v1433 = vld [vmem:[%s1425 + $0x7] sm:$0x1]
    %v1434 = vlaneseq
    %v1435 = vshrl.u32 %v1434, 7
    %v1436 = vsub.s32 0, %v1435
    %v1437 = vrot.slane %v1426, %v1436
    %v1439 = vsel %vm141, %v1407, 0
    %v1442 = vsel %vm141, %v1408, 0
    %1444 = vmatprep.subr.mxu0 0.0
    %1445 = vmatpush1.msra.mxu0 %v1409
    %1446 = vmatprep.subr.mxu0 0.0
    %1447 = vmatpush1.msra.mxu0 %v1410
    %1448 = vmatprep.subr.mxu0 0.0
    %1449 = vmatpush1.msra.mxu0 %v1411
    %1450 = vmatprep.subr.mxu0 0.0
    %1451 = vmatpush1.msra.mxu0 %v1412
    %1452 = vmatprep.subr.mxu0 0.0
    %1453 = vmatpush1.msra.mxu0 0.0
    %1454 = vmatprep.subr.mxu0 0.0
    %1455 = vmatpush1.msra.mxu0 0.0
    %1456 = vmatprep.subr.mxu0 0.0
    %1457 = vmatpush1.msra.mxu0 0.0
    %1458 = vmatprep.subr.mxu0 0.0
    %1459 = vmatpush1.msra.mxu0 0.0
    %1460 = vmatprep.subr.mxu0 0.0
    %1461 = vmatpush1.msra.mxu0 0.0
    %1462 = vmatprep.subr.mxu0 0.0
    %1463 = vmatpush1.msra.mxu0 0.0
    %1464 = vmatprep.subr.mxu0 0.0
    %1465 = vmatpush1.msra.mxu0 0.0
    %1466 = vmatprep.subr.mxu0 0.0
    %1467 = vmatpush1.msra.mxu0 0.0
    %1468 = vmatprep.subr.mxu0 0.0
    %1469 = vmatpush1.msra.mxu0 0.0
    %1470 = vmatprep.subr.mxu0 0.0
    %1471 = vmatpush1.msra.mxu0 0.0
    %1472 = vmatprep.subr.mxu0 0.0
    %1473 = vmatpush1.msra.mxu0 0.0
    %1474 = vmatprep.subr.mxu0 0.0
    %1475 = vmatpush1.msra.mxu0 0.0
    %1476 = vmatprep.subr.mxu0 0.0
    %1477 = vmatpush1.msra.mxu0 0.0
    %1478 = vmatprep.subr.mxu0 0.0
    %1479 = vmatpush1.msra.mxu0 0.0
    %1480 = vmatprep.subr.mxu0 0.0
    %1481 = vmatpush1.msra.mxu0 0.0
    %1482 = vmatprep.subr.mxu0 0.0
    %1483 = vmatpush1.msra.mxu0 0.0
    %1484 = vmatprep.subr.mxu0 0.0
    %1485 = vmatpush1.msra.mxu0 0.0
    %1486 = vmatprep.subr.mxu0 0.0
    %1487 = vmatpush1.msra.mxu0 0.0
    %1488 = vmatprep.subr.mxu0 0.0
    %1489 = vmatpush1.msra.mxu0 0.0
    %1490 = vmatprep.subr.mxu0 0.0
    %1491 = vmatpush1.msra.mxu0 0.0
    %1492 = vmatprep.subr.mxu0 0.0
    %1493 = vmatpush1.msra.mxu0 0.0
    %1494 = vmatprep.subr.mxu0 0.0
    %1495 = vmatpush1.msra.mxu0 0.0
    %1496 = vmatprep.subr.mxu0 0.0
    %1497 = vmatpush1.msra.mxu0 0.0
    %1498 = vmatprep.subr.mxu0 0.0
    %1499 = vmatpush1.msra.mxu0 0.0
    %1500 = vmatprep.subr.mxu0 0.0
    %1501 = vmatpush1.msra.mxu0 0.0
    %1502 = vmatprep.subr.mxu0 0.0
    %1503 = vmatpush1.msra.mxu0 0.0
    %1504 = vmatprep.subr.mxu0 0.0
    %1505 = vmatpush1.msra.mxu0 0.0
    %1506 = vmatprep.subr.mxu0 0.0
    %1507 = vmatpush1.msra.mxu0 0.0
    %1508 = vmatprep.mubr.f32.mxu0 0.0
    %1509 = vmatmul.mubr.f32.gmra.mrb[0].mxu0 %v1439
    %v1510 = vpop.f32.mrb[0].mxu0
    %v1511 = vadd.f32 %v1437, %v1510
    %v1512 = vpop.f32.mrb[0].mxu0
    %1513 = vmatprep.mubr.f32.mxu0 0.0
    %1514 = vmatmul.mubr.f32.gmra.mrb[0].mxu0 %v1442
    %v1515 = vpop.f32.mrb[0].mxu0
    %v1516 = vadd.f32 %v1437, %v1515
    %v1517 = vpop.f32.mrb[0].mxu0
    %1518 = vdwg.mxu0
    %1520 = vrot.lane.b32.xlu0 %v1511, 96
    %v1521 = vpop.permute.xlu0 %1520
    %v1522 = vsel %vm299, %v1511, 0
    %v1524 = vsel %vm299, %v1521, 0
    %1526 = vmatprep.subr.mxu0 0.0
    %1527 = vmatpush1.xpose.msra.mxu0 %v1524
    %1528 = vmatprep.subr.mxu0 0.0
    %1529 = vmatpush1.xpose.msra.mxu0 0.0
    %1530 = vmatprep.subr.mxu0 0.0
    %1531 = vmatpush1.xpose.msra.mxu0 0.0
    %1532 = vmatprep.subr.mxu0 0.0
    %1533 = vmatpush1.xpose.msra.mxu0 0.0
    %1534 = vmatprep.subr.mxu0 0.0
    %1535 = vmatpush1.xpose.msra.mxu0 0.0
    %1536 = vmatprep.subr.mxu0 0.0
    %1537 = vmatpush1.xpose.msra.mxu0 0.0
    %1538 = vmatprep.subr.mxu0 0.0
    %1539 = vmatpush1.xpose.msra.mxu0 0.0
    %1540 = vmatprep.subr.mxu0 0.0
    %1541 = vmatpush1.xpose.msra.mxu0 0.0
    %1542 = vmatprep.subr.mxu0 0.0
    %1543 = vmatpush1.xpose.msra.mxu0 0.0
    %1544 = vmatprep.subr.mxu0 0.0
    %1545 = vmatpush1.xpose.msra.mxu0 0.0
    %1546 = vmatprep.subr.mxu0 0.0
    %1547 = vmatpush1.xpose.msra.mxu0 0.0
    %1548 = vmatprep.subr.mxu0 0.0
    %1549 = vmatpush1.xpose.msra.mxu0 0.0
    %1550 = vmatprep.subr.mxu0 0.0
    %1551 = vmatpush1.xpose.msra.mxu0 0.0
    %1552 = vmatprep.subr.mxu0 0.0
    %1553 = vmatpush1.xpose.msra.mxu0 0.0
    %1554 = vmatprep.subr.mxu0 0.0
    %1555 = vmatpush1.xpose.msra.mxu0 0.0
    %1556 = vmatprep.subr.mxu0 0.0
    %1557 = vmatpush1.xpose.msra.mxu0 0.0
    %1558 = vmatprep.subr.mxu0 0.0
    %1559 = vmatpush1.xpose.msra.mxu0 0.0
    %1560 = vmatprep.subr.mxu0 0.0
    %1561 = vmatpush1.xpose.msra.mxu0 0.0
    %1562 = vmatprep.subr.mxu0 0.0
    %1563 = vmatpush1.xpose.msra.mxu0 0.0
    %1564 = vmatprep.subr.mxu0 0.0
    %1565 = vmatpush1.xpose.msra.mxu0 0.0
    %1566 = vmatprep.subr.mxu0 0.0
    %1567 = vmatpush1.xpose.msra.mxu0 0.0
    %1568 = vmatprep.subr.mxu0 0.0
    %1569 = vmatpush1.xpose.msra.mxu0 0.0
    %1570 = vmatprep.subr.mxu0 0.0
    %1571 = vmatpush1.xpose.msra.mxu0 0.0
    %1572 = vmatprep.subr.mxu0 0.0
    %1573 = vmatpush1.xpose.msra.mxu0 0.0
    %1574 = vmatprep.subr.mxu0 0.0
    %1575 = vmatpush1.xpose.msra.mxu0 0.0
    %1576 = vmatprep.subr.mxu0 0.0
    %1577 = vmatpush1.xpose.msra.mxu0 0.0
    %1578 = vmatprep.subr.mxu0 0.0
    %1579 = vmatpush1.xpose.msra.mxu0 0.0
    %1580 = vmatprep.subr.mxu0 0.0
    %1581 = vmatpush1.xpose.msra.mxu0 0.0
    %1582 = vmatprep.subr.mxu0 0.0
    %1583 = vmatpush1.xpose.msra.mxu0 0.0
    %1584 = vmatprep.subr.mxu0 0.0
    %1585 = vmatpush1.xpose.msra.mxu0 0.0
    %1586 = vmatprep.subr.mxu0 0.0
    %1587 = vmatpush1.xpose.msra.mxu0 0.0
    %1588 = vmatprep.subr.mxu0 0.0
    %1589 = vmatpush1.xpose.msra.mxu0 0.0
    %1590 = vmatprep.mubr.f32.mxu0 0.0
    %1591 = vmatmul.mubr.f32.gmra.mrb[0].mxu0 %v1522
    %v1592 = vpop.f32.mrb[0].mxu0
    %v1593 = vadd.f32 0.0, %v1592
    %v1594 = vpop.f32.mrb[0].mxu0
    %1595 = vdwg.mxu0
    %1597 = vrot.lane.b32.xlu0 %v1516, 96
    %v1598 = vpop.permute.xlu0 %1597
    %v1599 = vsel %vm299, %v1516, 0
    %v1601 = vsel %vm299, %v1598, 0
    %1603 = vmatprep.subr.mxu0 0.0
    %1604 = vmatpush1.xpose.msra.mxu0 %v1601
    %1605 = vmatprep.subr.mxu0 0.0
    %1606 = vmatpush1.xpose.msra.mxu0 0.0
    %1607 = vmatprep.subr.mxu0 0.0
    %1608 = vmatpush1.xpose.msra.mxu0 0.0
    %1609 = vmatprep.subr.mxu0 0.0
    %1610 = vmatpush1.xpose.msra.mxu0 0.0
    %1611 = vmatprep.subr.mxu0 0.0
    %1612 = vmatpush1.xpose.msra.mxu0 0.0
    %1613 = vmatprep.subr.mxu0 0.0
    %1614 = vmatpush1.xpose.msra.mxu0 0.0
    %1615 = vmatprep.subr.mxu0 0.0
    %1616 = vmatpush1.xpose.msra.mxu0 0.0
    %1617 = vmatprep.subr.mxu0 0.0
    %1618 = vmatpush1.xpose.msra.mxu0 0.0
    %1619 = vmatprep.subr.mxu0 0.0
    %1620 = vmatpush1.xpose.msra.mxu0 0.0
    %1621 = vmatprep.subr.mxu0 0.0
    %1622 = vmatpush1.xpose.msra.mxu0 0.0
    %1623 = vmatprep.subr.mxu0 0.0
    %1624 = vmatpush1.xpose.msra.mxu0 0.0
    %1625 = vmatprep.subr.mxu0 0.0
    %1626 = vmatpush1.xpose.msra.mxu0 0.0
    %1627 = vmatprep.subr.mxu0 0.0
    %1628 = vmatpush1.xpose.msra.mxu0 0.0
    %1629 = vmatprep.subr.mxu0 0.0
    %1630 = vmatpush1.xpose.msra.mxu0 0.0
    %1631 = vmatprep.subr.mxu0 0.0
    %1632 = vmatpush1.xpose.msra.mxu0 0.0
    %1633 = vmatprep.subr.mxu0 0.0
    %1634 = vmatpush1.xpose.msra.mxu0 0.0
    %1635 = vmatprep.subr.mxu0 0.0
    %1636 = vmatpush1.xpose.msra.mxu0 0.0
    %1637 = vmatprep.subr.mxu0 0.0
    %1638 = vmatpush1.xpose.msra.mxu0 0.0
    %1639 = vmatprep.subr.mxu0 0.0
    %1640 = vmatpush1.xpose.msra.mxu0 0.0
    %1641 = vmatprep.subr.mxu0 0.0
    %1642 = vmatpush1.xpose.msra.mxu0 0.0
    %1643 = vmatprep.subr.mxu0 0.0
    %1644 = vmatpush1.xpose.msra.mxu0 0.0
    %1645 = vmatprep.subr.mxu0 0.0
    %1646 = vmatpush1.xpose.msra.mxu0 0.0
    %1647 = vmatprep.subr.mxu0 0.0
    %1648 = vmatpush1.xpose.msra.mxu0 0.0
    %1649 = vmatprep.subr.mxu0 0.0
    %1650 = vmatpush1.xpose.msra.mxu0 0.0
    %1651 = vmatprep.subr.mxu0 0.0
    %1652 = vmatpush1.xpose.msra.mxu0 0.0
    %1653 = vmatprep.subr.mxu0 0.0
    %1654 = vmatpush1.xpose.msra.mxu0 0.0
    %1655 = vmatprep.subr.mxu0 0.0
    %1656 = vmatpush1.xpose.msra.mxu0 0.0
    %1657 = vmatprep.subr.mxu0 0.0
    %1658 = vmatpush1.xpose.msra.mxu0 0.0
    %1659 = vmatprep.subr.mxu0 0.0
    %1660 = vmatpush1.xpose.msra.mxu0 0.0
    %1661 = vmatprep.subr.mxu0 0.0
    %1662 = vmatpush1.xpose.msra.mxu0 0.0
    %1663 = vmatprep.subr.mxu0 0.0
    %1664 = vmatpush1.xpose.msra.mxu0 0.0
    %1665 = vmatprep.subr.mxu0 0.0
    %1666 = vmatpush1.xpose.msra.mxu0 0.0
    %1667 = vmatprep.mubr.f32.mxu0 0.0
    %1668 = vmatmul.mubr.f32.gmra.mrb[0].mxu0 %v1599
    %v1669 = vpop.f32.mrb[0].mxu0
    %v1670 = vadd.f32 0.0, %v1669
    %v1671 = vpop.f32.mrb[0].mxu0
    %1672 = vdwg.mxu0
    %v1673 = vsel %vm451, %v1593, -inf
    %1674 = vmax.xlane.f32.xlu0 %v1673
    %v1675 = vpop.xlane.xlu0 %1674
    %v1676 = vsel %vm451, %v1670, -inf
    %1677 = vmax.xlane.f32.xlu0 %v1676
    %v1678 = vpop.xlane.xlu0 %1677
    %v1679 = vsub.f32 %v1593, %v1675
    %v1680 = vsub.f32 %v1670, %v1678
    %v1681 = vmul.f32 %v1679, 1.442695
    %v1682 = vpow.pop %v1681
    %v1683 = vmul.f32 %v1680, 1.442695
    %v1684 = vpow.pop %v1683
    %v1685 = vsel %vm451, %v1682, 0.0
    %1686 = vadd.xlane.f32.xlu0 %v1685
    %v1687 = vpop.xlane.xlu0 %1686
    %v1688 = vsel %vm451, %v1684, 0.0
    %1689 = vadd.xlane.f32.xlu0 %v1688
    %v1690 = vpop.xlane.xlu0 %1689
    %v1691 = vrcp.pop %v1687
    %v1692 = vrcp.pop %v1690
    %v1693 = vmul.f32 %v1682, %v1691
    %v1694 = vmul.f32 %v1684, %v1692
    %1695 = vrot.lane.b32.xlu0 %v1511, 64
    %v1696 = vpop.permute.xlu0 %1695
    %v1699 = vsel %vm451, %v1693, 0
    %1701 = vmatprep.subr.mxu0 0.0
    %1702 = vmatpush1.msra.mxu0 %v1696
    %1703 = vmatprep.subr.mxu0 0.0
    %1704 = vmatpush1.msra.mxu0 0.0
    %1705 = vmatprep.subr.mxu0 0.0
    %1706 = vmatpush1.msra.mxu0 0.0
    %1707 = vmatprep.subr.mxu0 0.0
    %1708 = vmatpush1.msra.mxu0 0.0
    %1709 = vmatprep.subr.mxu0 0.0
    %1710 = vmatpush1.msra.mxu0 0.0
    %1711 = vmatprep.subr.mxu0 0.0
    %1712 = vmatpush1.msra.mxu0 0.0
    %1713 = vmatprep.subr.mxu0 0.0
    %1714 = vmatpush1.msra.mxu0 0.0
    %1715 = vmatprep.subr.mxu0 0.0
    %1716 = vmatpush1.msra.mxu0 0.0
    %1717 = vmatprep.subr.mxu0 0.0
    %1718 = vmatpush1.msra.mxu0 0.0
    %1719 = vmatprep.subr.mxu0 0.0
    %1720 = vmatpush1.msra.mxu0 0.0
    %1721 = vmatprep.subr.mxu0 0.0
    %1722 = vmatpush1.msra.mxu0 0.0
    %1723 = vmatprep.subr.mxu0 0.0
    %1724 = vmatpush1.msra.mxu0 0.0
    %1725 = vmatprep.subr.mxu0 0.0
    %1726 = vmatpush1.msra.mxu0 0.0
    %1727 = vmatprep.subr.mxu0 0.0
    %1728 = vmatpush1.msra.mxu0 0.0
    %1729 = vmatprep.subr.mxu0 0.0
    %1730 = vmatpush1.msra.mxu0 0.0
    %1731 = vmatprep.subr.mxu0 0.0
    %1732 = vmatpush1.msra.mxu0 0.0
    %1733 = vmatprep.subr.mxu0 0.0
    %1734 = vmatpush1.msra.mxu0 0.0
    %1735 = vmatprep.subr.mxu0 0.0
    %1736 = vmatpush1.msra.mxu0 0.0
    %1737 = vmatprep.subr.mxu0 0.0
    %1738 = vmatpush1.msra.mxu0 0.0
    %1739 = vmatprep.subr.mxu0 0.0
    %1740 = vmatpush1.msra.mxu0 0.0
    %1741 = vmatprep.subr.mxu0 0.0
    %1742 = vmatpush1.msra.mxu0 0.0
    %1743 = vmatprep.subr.mxu0 0.0
    %1744 = vmatpush1.msra.mxu0 0.0
    %1745 = vmatprep.subr.mxu0 0.0
    %1746 = vmatpush1.msra.mxu0 0.0
    %1747 = vmatprep.subr.mxu0 0.0
    %1748 = vmatpush1.msra.mxu0 0.0
    %1749 = vmatprep.subr.mxu0 0.0
    %1750 = vmatpush1.msra.mxu0 0.0
    %1751 = vmatprep.subr.mxu0 0.0
    %1752 = vmatpush1.msra.mxu0 0.0
    %1753 = vmatprep.subr.mxu0 0.0
    %1754 = vmatpush1.msra.mxu0 0.0
    %1755 = vmatprep.subr.mxu0 0.0
    %1756 = vmatpush1.msra.mxu0 0.0
    %1757 = vmatprep.subr.mxu0 0.0
    %1758 = vmatpush1.msra.mxu0 0.0
    %1759 = vmatprep.subr.mxu0 0.0
    %1760 = vmatpush1.msra.mxu0 0.0
    %1761 = vmatprep.subr.mxu0 0.0
    %1762 = vmatpush1.msra.mxu0 0.0
    %1763 = vmatprep.subr.mxu0 0.0
    %1764 = vmatpush1.msra.mxu0 0.0
    %1765 = vmatprep.mubr.f32.mxu0 0.0
    %1766 = vmatmul.mubr.f32.gmra.mrb[0].mxu0 %v1699
    %v1767 = vpop.f32.mrb[0].mxu0
    %v1768 = vadd.f32 0.0, %v1767
    %v1769 = vpop.f32.mrb[0].mxu0
    %1770 = vdwg.mxu0
    %1771 = vrot.lane.b32.xlu0 %v1516, 64
    %v1772 = vpop.permute.xlu0 %1771
    %v1775 = vsel %vm451, %v1694, 0
    %1777 = vmatprep.subr.mxu0 0.0
    %1778 = vmatpush1.msra.mxu0 %v1772
    %1779 = vmatprep.subr.mxu0 0.0
    %1780 = vmatpush1.msra.mxu0 0.0
    %1781 = vmatprep.subr.mxu0 0.0
    %1782 = vmatpush1.msra.mxu0 0.0
    %1783 = vmatprep.subr.mxu0 0.0
    %1784 = vmatpush1.msra.mxu0 0.0
    %1785 = vmatprep.subr.mxu0 0.0
    %1786 = vmatpush1.msra.mxu0 0.0
    %1787 = vmatprep.subr.mxu0 0.0
    %1788 = vmatpush1.msra.mxu0 0.0
    %1789 = vmatprep.subr.mxu0 0.0
    %1790 = vmatpush1.msra.mxu0 0.0
    %1791 = vmatprep.subr.mxu0 0.0
    %1792 = vmatpush1.msra.mxu0 0.0
    %1793 = vmatprep.subr.mxu0 0.0
    %1794 = vmatpush1.msra.mxu0 0.0
    %1795 = vmatprep.subr.mxu0 0.0
    %1796 = vmatpush1.msra.mxu0 0.0
    %1797 = vmatprep.subr.mxu0 0.0
    %1798 = vmatpush1.msra.mxu0 0.0
    %1799 = vmatprep.subr.mxu0 0.0
    %1800 = vmatpush1.msra.mxu0 0.0
    %1801 = vmatprep.subr.mxu0 0.0
    %1802 = vmatpush1.msra.mxu0 0.0
    %1803 = vmatprep.subr.mxu0 0.0
    %1804 = vmatpush1.msra.mxu0 0.0
    %1805 = vmatprep.subr.mxu0 0.0
    %1806 = vmatpush1.msra.mxu0 0.0
    %1807 = vmatprep.subr.mxu0 0.0
    %1808 = vmatpush1.msra.mxu0 0.0
    %1809 = vmatprep.subr.mxu0 0.0
    %1810 = vmatpush1.msra.mxu0 0.0
    %1811 = vmatprep.subr.mxu0 0.0
    %1812 = vmatpush1.msra.mxu0 0.0
    %1813 = vmatprep.subr.mxu0 0.0
    %1814 = vmatpush1.msra.mxu0 0.0
    %1815 = vmatprep.subr.mxu0 0.0
    %1816 = vmatpush1.msra.mxu0 0.0
    %1817 = vmatprep.subr.mxu0 0.0
    %1818 = vmatpush1.msra.mxu0 0.0
    %1819 = vmatprep.subr.mxu0 0.0
    %1820 = vmatpush1.msra.mxu0 0.0
    %1821 = vmatprep.subr.mxu0 0.0
    %1822 = vmatpush1.msra.mxu0 0.0
    %1823 = vmatprep.subr.mxu0 0.0
    %1824 = vmatpush1.msra.mxu0 0.0
    %1825 = vmatprep.subr.mxu0 0.0
    %1826 = vmatpush1.msra.mxu0 0.0
    %1827 = vmatprep.subr.mxu0 0.0
    %1828 = vmatpush1.msra.mxu0 0.0
    %1829 = vmatprep.subr.mxu0 0.0
    %1830 = vmatpush1.msra.mxu0 0.0
    %1831 = vmatprep.subr.mxu0 0.0
    %1832 = vmatpush1.msra.mxu0 0.0
    %1833 = vmatprep.subr.mxu0 0.0
    %1834 = vmatpush1.msra.mxu0 0.0
    %1835 = vmatprep.subr.mxu0 0.0
    %1836 = vmatpush1.msra.mxu0 0.0
    %1837 = vmatprep.subr.mxu0 0.0
    %1838 = vmatpush1.msra.mxu0 0.0
    %1839 = vmatprep.subr.mxu0 0.0
    %1840 = vmatpush1.msra.mxu0 0.0
    %1841 = vmatprep.mubr.f32.mxu0 0.0
    %1842 = vmatmul.mubr.f32.gmra.mrb[0].mxu0 %v1775
    %v1843 = vpop.f32.mrb[0].mxu0
    %v1844 = vadd.f32 0.0, %v1843
    %v1845 = vpop.f32.mrb[0].mxu0
    %1846 = vdwg.mxu0
    %v1847 = vld [vmem:[#allocation2 + $0xc0] sm:$0xff]
    %v1848 = vld [vmem:[#allocation2 + $0xc8] sm:$0xff]
    %1849 = vrot.lane.b32.xlu0 %v1511, 112
    %v1850 = vpop.permute.xlu0 %1849
    %1851 = vrot.lane.b32.xlu0 %v1511, 80
    %v1852 = vpop.permute.xlu0 %1851
    %v1853 = vsel %vm299, %v1850, 0
    %v1855 = vsel %vm299, %v1852, 0
    %1857 = vmatprep.subr.mxu0 0.0
    %1858 = vmatpush1.xpose.msra.mxu0 %v1855
    %1859 = vmatprep.subr.mxu0 0.0
    %1860 = vmatpush1.xpose.msra.mxu0 0.0
    %1861 = vmatprep.subr.mxu0 0.0
    %1862 = vmatpush1.xpose.msra.mxu0 0.0
    %1863 = vmatprep.subr.mxu0 0.0
    %1864 = vmatpush1.xpose.msra.mxu0 0.0
    %1865 = vmatprep.subr.mxu0 0.0
    %1866 = vmatpush1.xpose.msra.mxu0 0.0
    %1867 = vmatprep.subr.mxu0 0.0
    %1868 = vmatpush1.xpose.msra.mxu0 0.0
    %1869 = vmatprep.subr.mxu0 0.0
    %1870 = vmatpush1.xpose.msra.mxu0 0.0
    %1871 = vmatprep.subr.mxu0 0.0
    %1872 = vmatpush1.xpose.msra.mxu0 0.0
    %1873 = vmatprep.subr.mxu0 0.0
    %1874 = vmatpush1.xpose.msra.mxu0 0.0
    %1875 = vmatprep.subr.mxu0 0.0
    %1876 = vmatpush1.xpose.msra.mxu0 0.0
    %1877 = vmatprep.subr.mxu0 0.0
    %1878 = vmatpush1.xpose.msra.mxu0 0.0
    %1879 = vmatprep.subr.mxu0 0.0
    %1880 = vmatpush1.xpose.msra.mxu0 0.0
    %1881 = vmatprep.subr.mxu0 0.0
    %1882 = vmatpush1.xpose.msra.mxu0 0.0
    %1883 = vmatprep.subr.mxu0 0.0
    %1884 = vmatpush1.xpose.msra.mxu0 0.0
    %1885 = vmatprep.subr.mxu0 0.0
    %1886 = vmatpush1.xpose.msra.mxu0 0.0
    %1887 = vmatprep.subr.mxu0 0.0
    %1888 = vmatpush1.xpose.msra.mxu0 0.0
    %1889 = vmatprep.subr.mxu0 0.0
    %1890 = vmatpush1.xpose.msra.mxu0 0.0
    %1891 = vmatprep.subr.mxu0 0.0
    %1892 = vmatpush1.xpose.msra.mxu0 0.0
    %1893 = vmatprep.subr.mxu0 0.0
    %1894 = vmatpush1.xpose.msra.mxu0 0.0
    %1895 = vmatprep.subr.mxu0 0.0
    %1896 = vmatpush1.xpose.msra.mxu0 0.0
    %1897 = vmatprep.subr.mxu0 0.0
    %1898 = vmatpush1.xpose.msra.mxu0 0.0
    %1899 = vmatprep.subr.mxu0 0.0
    %1900 = vmatpush1.xpose.msra.mxu0 0.0
    %1901 = vmatprep.subr.mxu0 0.0
    %1902 = vmatpush1.xpose.msra.mxu0 0.0
    %1903 = vmatprep.subr.mxu0 0.0
    %1904 = vmatpush1.xpose.msra.mxu0 0.0
    %1905 = vmatprep.subr.mxu0 0.0
    %1906 = vmatpush1.xpose.msra.mxu0 0.0
    %1907 = vmatprep.subr.mxu0 0.0
    %1908 = vmatpush1.xpose.msra.mxu0 0.0
    %1909 = vmatprep.subr.mxu0 0.0
    %1910 = vmatpush1.xpose.msra.mxu0 0.0
    %1911 = vmatprep.subr.mxu0 0.0
    %1912 = vmatpush1.xpose.msra.mxu0 0.0
    %1913 = vmatprep.subr.mxu0 0.0
    %1914 = vmatpush1.xpose.msra.mxu0 0.0
    %1915 = vmatprep.subr.mxu0 0.0
    %1916 = vmatpush1.xpose.msra.mxu0 0.0
    %1917 = vmatprep.subr.mxu0 0.0
    %1918 = vmatpush1.xpose.msra.mxu0 0.0
    %1919 = vmatprep.subr.mxu0 0.0
    %1920 = vmatpush1.xpose.msra.mxu0 0.0
    %1921 = vmatprep.mubr.f32.mxu0 0.0
    %1922 = vmatmul.mubr.f32.gmra.mrb[0].mxu0 %v1853
    %v1923 = vpop.f32.mrb[0].mxu0
    %v1924 = vadd.f32 0.0, %v1923
    %v1925 = vpop.f32.mrb[0].mxu0
    %1926 = vdwg.mxu0
    %1927 = vrot.lane.b32.xlu0 %v1516, 112
    %v1928 = vpop.permute.xlu0 %1927
    %1929 = vrot.lane.b32.xlu0 %v1516, 80
    %v1930 = vpop.permute.xlu0 %1929
    %v1931 = vsel %vm299, %v1928, 0
    %v1933 = vsel %vm299, %v1930, 0
    %1935 = vmatprep.subr.mxu0 0.0
    %1936 = vmatpush1.xpose.msra.mxu0 %v1933
    %1937 = vmatprep.subr.mxu0 0.0
    %1938 = vmatpush1.xpose.msra.mxu0 0.0
    %1939 = vmatprep.subr.mxu0 0.0
    %1940 = vmatpush1.xpose.msra.mxu0 0.0
    %1941 = vmatprep.subr.mxu0 0.0
    %1942 = vmatpush1.xpose.msra.mxu0 0.0
    %1943 = vmatprep.subr.mxu0 0.0
    %1944 = vmatpush1.xpose.msra.mxu0 0.0
    %1945 = vmatprep.subr.mxu0 0.0
    %1946 = vmatpush1.xpose.msra.mxu0 0.0
    %1947 = vmatprep.subr.mxu0 0.0
    %1948 = vmatpush1.xpose.msra.mxu0 0.0
    %1949 = vmatprep.subr.mxu0 0.0
    %1950 = vmatpush1.xpose.msra.mxu0 0.0
    %1951 = vmatprep.subr.mxu0 0.0
    %1952 = vmatpush1.xpose.msra.mxu0 0.0
    %1953 = vmatprep.subr.mxu0 0.0
    %1954 = vmatpush1.xpose.msra.mxu0 0.0
    %1955 = vmatprep.subr.mxu0 0.0
    %1956 = vmatpush1.xpose.msra.mxu0 0.0
    %1957 = vmatprep.subr.mxu0 0.0
    %1958 = vmatpush1.xpose.msra.mxu0 0.0
    %1959 = vmatprep.subr.mxu0 0.0
    %1960 = vmatpush1.xpose.msra.mxu0 0.0
    %1961 = vmatprep.subr.mxu0 0.0
    %1962 = vmatpush1.xpose.msra.mxu0 0.0
    %1963 = vmatprep.subr.mxu0 0.0
    %1964 = vmatpush1.xpose.msra.mxu0 0.0
    %1965 = vmatprep.subr.mxu0 0.0
    %1966 = vmatpush1.xpose.msra.mxu0 0.0
    %1967 = vmatprep.subr.mxu0 0.0
    %1968 = vmatpush1.xpose.msra.mxu0 0.0
    %1969 = vmatprep.subr.mxu0 0.0
    %1970 = vmatpush1.xpose.msra.mxu0 0.0
    %1971 = vmatprep.subr.mxu0 0.0
    %1972 = vmatpush1.xpose.msra.mxu0 0.0
    %1973 = vmatprep.subr.mxu0 0.0
    %1974 = vmatpush1.xpose.msra.mxu0 0.0
    %1975 = vmatprep.subr.mxu0 0.0
    %1976 = vmatpush1.xpose.msra.mxu0 0.0
    %1977 = vmatprep.subr.mxu0 0.0
    %1978 = vmatpush1.xpose.msra.mxu0 0.0
    %1979 = vmatprep.subr.mxu0 0.0
    %1980 = vmatpush1.xpose.msra.mxu0 0.0
    %1981 = vmatprep.subr.mxu0 0.0
    %1982 = vmatpush1.xpose.msra.mxu0 0.0
    %1983 = vmatprep.subr.mxu0 0.0
    %1984 = vmatpush1.xpose.msra.mxu0 0.0
    %1985 = vmatprep.subr.mxu0 0.0
    %1986 = vmatpush1.xpose.msra.mxu0 0.0
    %1987 = vmatprep.subr.mxu0 0.0
    %1988 = vmatpush1.xpose.msra.mxu0 0.0
    %1989 = vmatprep.subr.mxu0 0.0
    %1990 = vmatpush1.xpose.msra.mxu0 0.0
    %1991 = vmatprep.subr.mxu0 0.0
    %1992 = vmatpush1.xpose.msra.mxu0 0.0
    %1993 = vmatprep.subr.mxu0 0.0
    %1994 = vmatpush1.xpose.msra.mxu0 0.0
    %1995 = vmatprep.subr.mxu0 0.0
    %1996 = vmatpush1.xpose.msra.mxu0 0.0
    %1997 = vmatprep.subr.mxu0 0.0
    %1998 = vmatpush1.xpose.msra.mxu0 0.0
    %1999 = vmatprep.mubr.f32.mxu0 0.0
    %2000 = vmatmul.mubr.f32.gmra.mrb[0].mxu0 %v1931
    %v2001 = vpop.f32.mrb[0].mxu0
    %v2002 = vadd.f32 0.0, %v2001
    %v2003 = vpop.f32.mrb[0].mxu0
    %2004 = vdwg.mxu0
    %v2005 = vsel %vm451, %v1924, -inf
    %2006 = vmax.xlane.f32.xlu0 %v2005
    %v2007 = vpop.xlane.xlu0 %2006
    %v2008 = vsel %vm451, %v2002, -inf
    %2009 = vmax.xlane.f32.xlu0 %v2008
    %v2010 = vpop.xlane.xlu0 %2009
    %v2011 = vsub.f32 %v1924, %v2007
    %v2012 = vsub.f32 %v2002, %v2010
    %v2013 = vmul.f32 %v2011, 1.442695
    %v2014 = vpow.pop %v2013
    %v2015 = vmul.f32 %v2012, 1.442695
    %v2016 = vpow.pop %v2015
    %v2017 = vsel %vm451, %v2014, 0.0
    %2018 = vadd.xlane.f32.xlu0 %v2017
    %v2019 = vpop.xlane.xlu0 %2018
    %v2020 = vsel %vm451, %v2016, 0.0
    %2021 = vadd.xlane.f32.xlu0 %v2020
    %v2022 = vpop.xlane.xlu0 %2021
    %v2023 = vrcp.pop %v2019
    %v2024 = vrcp.pop %v2022
    %v2025 = vmul.f32 %v2014, %v2023
    %v2026 = vmul.f32 %v2016, %v2024
    %2027 = vrot.lane.b32.xlu0 %v1511, 48
    %v2028 = vpop.permute.xlu0 %2027
    %v2031 = vsel %vm451, %v2025, 0
    %2033 = vmatprep.subr.mxu0 0.0
    %2034 = vmatpush1.msra.mxu0 %v2028
    %2035 = vmatprep.subr.mxu0 0.0
    %2036 = vmatpush1.msra.mxu0 0.0
    %2037 = vmatprep.subr.mxu0 0.0
    %2038 = vmatpush1.msra.mxu0 0.0
    %2039 = vmatprep.subr.mxu0 0.0
    %2040 = vmatpush1.msra.mxu0 0.0
    %2041 = vmatprep.subr.mxu0 0.0
    %2042 = vmatpush1.msra.mxu0 0.0
    %2043 = vmatprep.subr.mxu0 0.0
    %2044 = vmatpush1.msra.mxu0 0.0
    %2045 = vmatprep.subr.mxu0 0.0
    %2046 = vmatpush1.msra.mxu0 0.0
    %2047 = vmatprep.subr.mxu0 0.0
    %2048 = vmatpush1.msra.mxu0 0.0
    %2049 = vmatprep.subr.mxu0 0.0
    %2050 = vmatpush1.msra.mxu0 0.0
    %2051 = vmatprep.subr.mxu0 0.0
    %2052 = vmatpush1.msra.mxu0 0.0
    %2053 = vmatprep.subr.mxu0 0.0
    %2054 = vmatpush1.msra.mxu0 0.0
    %2055 = vmatprep.subr.mxu0 0.0
    %2056 = vmatpush1.msra.mxu0 0.0
    %2057 = vmatprep.subr.mxu0 0.0
    %2058 = vmatpush1.msra.mxu0 0.0
    %2059 = vmatprep.subr.mxu0 0.0
    %2060 = vmatpush1.msra.mxu0 0.0
    %2061 = vmatprep.subr.mxu0 0.0
    %2062 = vmatpush1.msra.mxu0 0.0
    %2063 = vmatprep.subr.mxu0 0.0
    %2064 = vmatpush1.msra.mxu0 0.0
    %2065 = vmatprep.subr.mxu0 0.0
    %2066 = vmatpush1.msra.mxu0 0.0
    %2067 = vmatprep.subr.mxu0 0.0
    %2068 = vmatpush1.msra.mxu0 0.0
    %2069 = vmatprep.subr.mxu0 0.0
    %2070 = vmatpush1.msra.mxu0 0.0
    %2071 = vmatprep.subr.mxu0 0.0
    %2072 = vmatpush1.msra.mxu0 0.0
    %2073 = vmatprep.subr.mxu0 0.0
    %2074 = vmatpush1.msra.mxu0 0.0
    %2075 = vmatprep.subr.mxu0 0.0
    %2076 = vmatpush1.msra.mxu0 0.0
    %2077 = vmatprep.subr.mxu0 0.0
    %2078 = vmatpush1.msra.mxu0 0.0
    %2079 = vmatprep.subr.mxu0 0.0
    %2080 = vmatpush1.msra.mxu0 0.0
    %2081 = vmatprep.subr.mxu0 0.0
    %2082 = vmatpush1.msra.mxu0 0.0
    %2083 = vmatprep.subr.mxu0 0.0
    %2084 = vmatpush1.msra.mxu0 0.0
    %2085 = vmatprep.subr.mxu0 0.0
    %2086 = vmatpush1.msra.mxu0 0.0
    %2087 = vmatprep.subr.mxu0 0.0
    %2088 = vmatpush1.msra.mxu0 0.0
    %2089 = vmatprep.subr.mxu0 0.0
    %2090 = vmatpush1.msra.mxu0 0.0
    %2091 = vmatprep.subr.mxu0 0.0
    %2092 = vmatpush1.msra.mxu0 0.0
    %2093 = vmatprep.subr.mxu0 0.0
    %2094 = vmatpush1.msra.mxu0 0.0
    %2095 = vmatprep.subr.mxu0 0.0
    %2096 = vmatpush1.msra.mxu0 0.0
    %2097 = vmatprep.mubr.f32.mxu0 0.0
    %2098 = vmatmul.mubr.f32.gmra.mrb[0].mxu0 %v2031
    %v2099 = vpop.f32.mrb[0].mxu0
    %v2100 = vadd.f32 0.0, %v2099
    %v2101 = vpop.f32.mrb[0].mxu0
    %2102 = vdwg.mxu0
    %2103 = vrot.lane.b32.xlu0 %v1516, 48
    %v2104 = vpop.permute.xlu0 %2103
    %v2107 = vsel %vm451, %v2026, 0
    %2109 = vmatprep.subr.mxu0 0.0
    %2110 = vmatpush1.msra.mxu0 %v2104
    %2111 = vmatprep.subr.mxu0 0.0
    %2112 = vmatpush1.msra.mxu0 0.0
    %2113 = vmatprep.subr.mxu0 0.0
    %2114 = vmatpush1.msra.mxu0 0.0
    %2115 = vmatprep.subr.mxu0 0.0
    %2116 = vmatpush1.msra.mxu0 0.0
    %2117 = vmatprep.subr.mxu0 0.0
    %2118 = vmatpush1.msra.mxu0 0.0
    %2119 = vmatprep.subr.mxu0 0.0
    %2120 = vmatpush1.msra.mxu0 0.0
    %2121 = vmatprep.subr.mxu0 0.0
    %2122 = vmatpush1.msra.mxu0 0.0
    %2123 = vmatprep.subr.mxu0 0.0
    %2124 = vmatpush1.msra.mxu0 0.0
    %2125 = vmatprep.subr.mxu0 0.0
    %2126 = vmatpush1.msra.mxu0 0.0
    %2127 = vmatprep.subr.mxu0 0.0
    %2128 = vmatpush1.msra.mxu0 0.0
    %2129 = vmatprep.subr.mxu0 0.0
    %2130 = vmatpush1.msra.mxu0 0.0
    %2131 = vmatprep.subr.mxu0 0.0
    %2132 = vmatpush1.msra.mxu0 0.0
    %2133 = vmatprep.subr.mxu0 0.0
    %2134 = vmatpush1.msra.mxu0 0.0
    %2135 = vmatprep.subr.mxu0 0.0
    %2136 = vmatpush1.msra.mxu0 0.0
    %2137 = vmatprep.subr.mxu0 0.0
    %2138 = vmatpush1.msra.mxu0 0.0
    %2139 = vmatprep.subr.mxu0 0.0
    %2140 = vmatpush1.msra.mxu0 0.0
    %2141 = vmatprep.subr.mxu0 0.0
    %2142 = vmatpush1.msra.mxu0 0.0
    %2143 = vmatprep.subr.mxu0 0.0
    %2144 = vmatpush1.msra.mxu0 0.0
    %2145 = vmatprep.subr.mxu0 0.0
    %2146 = vmatpush1.msra.mxu0 0.0
    %2147 = vmatprep.subr.mxu0 0.0
    %2148 = vmatpush1.msra.mxu0 0.0
    %2149 = vmatprep.subr.mxu0 0.0
    %2150 = vmatpush1.msra.mxu0 0.0
    %2151 = vmatprep.subr.mxu0 0.0
    %2152 = vmatpush1.msra.mxu0 0.0
    %2153 = vmatprep.subr.mxu0 0.0
    %2154 = vmatpush1.msra.mxu0 0.0
    %2155 = vmatprep.subr.mxu0 0.0
    %2156 = vmatpush1.msra.mxu0 0.0
    %2157 = vmatprep.subr.mxu0 0.0
    %2158 = vmatpush1.msra.mxu0 0.0
    %2159 = vmatprep.subr.mxu0 0.0
    %2160 = vmatpush1.msra.mxu0 0.0
    %2161 = vmatprep.subr.mxu0 0.0
    %2162 = vmatpush1.msra.mxu0 0.0
    %2163 = vmatprep.subr.mxu0 0.0
    %2164 = vmatpush1.msra.mxu0 0.0
    %2165 = vmatprep.subr.mxu0 0.0
    %2166 = vmatpush1.msra.mxu0 0.0
    %2167 = vmatprep.subr.mxu0 0.0
    %2168 = vmatpush1.msra.mxu0 0.0
    %2169 = vmatprep.subr.mxu0 0.0
    %2170 = vmatpush1.msra.mxu0 0.0
    %2171 = vmatprep.subr.mxu0 0.0
    %2172 = vmatpush1.msra.mxu0 0.0
    %2173 = vmatprep.mubr.f32.mxu0 0.0
    %2174 = vmatmul.mubr.f32.gmra.mrb[0].mxu0 %v2107
    %v2175 = vpop.f32.mrb[0].mxu0
    %v2176 = vadd.f32 0.0, %v2175
    %v2177 = vpop.f32.mrb[0].mxu0
    %2178 = vdwg.mxu0
    %v2179 = vld [vmem:[#allocation2 + $0xd0] sm:$0xff]
    %v2180 = vld [vmem:[#allocation2 + $0xd8] sm:$0xff]
    %v2182 = vsel %vm299, %v2100, 0
    %v2185 = vsel %vm299, %v2176, 0
    %2187 = vmatprep.subr.mxu0 0.0
    %2188 = vmatpush1.msra.mxu0 %v2179
    %2189 = vmatprep.subr.mxu0 0.0
    %2190 = vmatpush1.msra.mxu0 %v2180
    %2191 = vmatprep.subr.mxu0 0.0
    %2192 = vmatpush1.msra.mxu0 0.0
    %2193 = vmatprep.subr.mxu0 0.0
    %2194 = vmatpush1.msra.mxu0 0.0
    %2195 = vmatprep.subr.mxu0 0.0
    %2196 = vmatpush1.msra.mxu0 0.0
    %2197 = vmatprep.subr.mxu0 0.0
    %2198 = vmatpush1.msra.mxu0 0.0
    %2199 = vmatprep.subr.mxu0 0.0
    %2200 = vmatpush1.msra.mxu0 0.0
    %2201 = vmatprep.subr.mxu0 0.0
    %2202 = vmatpush1.msra.mxu0 0.0
    %2203 = vmatprep.subr.mxu0 0.0
    %2204 = vmatpush1.msra.mxu0 0.0
    %2205 = vmatprep.subr.mxu0 0.0
    %2206 = vmatpush1.msra.mxu0 0.0
    %2207 = vmatprep.subr.mxu0 0.0
    %2208 = vmatpush1.msra.mxu0 0.0
    %2209 = vmatprep.subr.mxu0 0.0
    %2210 = vmatpush1.msra.mxu0 0.0
    %2211 = vmatprep.subr.mxu0 0.0
    %2212 = vmatpush1.msra.mxu0 0.0
    %2213 = vmatprep.subr.mxu0 0.0
    %2214 = vmatpush1.msra.mxu0 0.0
    %2215 = vmatprep.subr.mxu0 0.0
    %2216 = vmatpush1.msra.mxu0 0.0
    %2217 = vmatprep.subr.mxu0 0.0
    %2218 = vmatpush1.msra.mxu0 0.0
    %2219 = vmatprep.subr.mxu0 0.0
    %2220 = vmatpush1.msra.mxu0 0.0
    %2221 = vmatprep.subr.mxu0 0.0
    %2222 = vmatpush1.msra.mxu0 0.0
    %2223 = vmatprep.subr.mxu0 0.0
    %2224 = vmatpush1.msra.mxu0 0.0
    %2225 = vmatprep.subr.mxu0 0.0
    %2226 = vmatpush1.msra.mxu0 0.0
    %2227 = vmatprep.subr.mxu0 0.0
    %2228 = vmatpush1.msra.mxu0 0.0
    %2229 = vmatprep.subr.mxu0 0.0
    %2230 = vmatpush1.msra.mxu0 0.0
    %2231 = vmatprep.subr.mxu0 0.0
    %2232 = vmatpush1.msra.mxu0 0.0
    %2233 = vmatprep.subr.mxu0 0.0
    %2234 = vmatpush1.msra.mxu0 0.0
    %2235 = vmatprep.subr.mxu0 0.0
    %2236 = vmatpush1.msra.mxu0 0.0
    %2237 = vmatprep.subr.mxu0 0.0
    %2238 = vmatpush1.msra.mxu0 0.0
    %2239 = vmatprep.subr.mxu0 0.0
    %2240 = vmatpush1.msra.mxu0 0.0
    %2241 = vmatprep.subr.mxu0 0.0
    %2242 = vmatpush1.msra.mxu0 0.0
    %2243 = vmatprep.subr.mxu0 0.0
    %2244 = vmatpush1.msra.mxu0 0.0
    %2245 = vmatprep.subr.mxu0 0.0
    %2246 = vmatpush1.msra.mxu0 0.0
    %2247 = vmatprep.subr.mxu0 0.0
    %2248 = vmatpush1.msra.mxu0 0.0
    %2249 = vmatprep.subr.mxu0 0.0
    %2250 = vmatpush1.msra.mxu0 0.0
    %2251 = vmatprep.mubr.f32.mxu0 0.0
    %2252 = vmatmul.mubr.f32.gmra.mrb[0].mxu0 %v2182
    %v2253 = vpop.f32.mrb[0].mxu0
    %v2254 = vadd.f32 0.0, %v2253
    %v2255 = vpop.f32.mrb[0].mxu0
    %2256 = vmatprep.mubr.f32.mxu0 0.0
    %2257 = vmatmul.mubr.f32.gmra.mrb[0].mxu0 %v2185
    %v2258 = vpop.f32.mrb[0].mxu0
    %v2259 = vadd.f32 0.0, %v2258
    %v2260 = vpop.f32.mrb[0].mxu0
    %2261 = vdwg.mxu0
    %v2263 = vsel %vm299, %v1768, 0
    %v2266 = vsel %vm299, %v1844, 0
    %2268 = vmatprep.subr.mxu0 0.0
    %2269 = vmatpush1.msra.mxu0 %v1847
    %2270 = vmatprep.subr.mxu0 0.0
    %2271 = vmatpush1.msra.mxu0 %v1848
    %2272 = vmatprep.subr.mxu0 0.0
    %2273 = vmatpush1.msra.mxu0 0.0
    %2274 = vmatprep.subr.mxu0 0.0
    %2275 = vmatpush1.msra.mxu0 0.0
    %2276 = vmatprep.subr.mxu0 0.0
    %2277 = vmatpush1.msra.mxu0 0.0
    %2278 = vmatprep.subr.mxu0 0.0
    %2279 = vmatpush1.msra.mxu0 0.0
    %2280 = vmatprep.subr.mxu0 0.0
    %2281 = vmatpush1.msra.mxu0 0.0
    %2282 = vmatprep.subr.mxu0 0.0
    %2283 = vmatpush1.msra.mxu0 0.0
    %2284 = vmatprep.subr.mxu0 0.0
    %2285 = vmatpush1.msra.mxu0 0.0
    %2286 = vmatprep.subr.mxu0 0.0
    %2287 = vmatpush1.msra.mxu0 0.0
    %2288 = vmatprep.subr.mxu0 0.0
    %2289 = vmatpush1.msra.mxu0 0.0
    %2290 = vmatprep.subr.mxu0 0.0
    %2291 = vmatpush1.msra.mxu0 0.0
    %2292 = vmatprep.subr.mxu0 0.0
    %2293 = vmatpush1.msra.mxu0 0.0
    %2294 = vmatprep.subr.mxu0 0.0
    %2295 = vmatpush1.msra.mxu0 0.0
    %2296 = vmatprep.subr.mxu0 0.0
    %2297 = vmatpush1.msra.mxu0 0.0
    %2298 = vmatprep.subr.mxu0 0.0
    %2299 = vmatpush1.msra.mxu0 0.0
    %2300 = vmatprep.subr.mxu0 0.0
    %2301 = vmatpush1.msra.mxu0 0.0
    %2302 = vmatprep.subr.mxu0 0.0
    %2303 = vmatpush1.msra.mxu0 0.0
    %2304 = vmatprep.subr.mxu0 0.0
    %2305 = vmatpush1.msra.mxu0 0.0
    %2306 = vmatprep.subr.mxu0 0.0
    %2307 = vmatpush1.msra.mxu0 0.0
    %2308 = vmatprep.subr.mxu0 0.0
    %2309 = vmatpush1.msra.mxu0 0.0
    %2310 = vmatprep.subr.mxu0 0.0
    %2311 = vmatpush1.msra.mxu0 0.0
    %2312 = vmatprep.subr.mxu0 0.0
    %2313 = vmatpush1.msra.mxu0 0.0
    %2314 = vmatprep.subr.mxu0 0.0
    %2315 = vmatpush1.msra.mxu0 0.0
    %2316 = vmatprep.subr.mxu0 0.0
    %2317 = vmatpush1.msra.mxu0 0.0
    %2318 = vmatprep.subr.mxu0 0.0
    %2319 = vmatpush1.msra.mxu0 0.0
    %2320 = vmatprep.subr.mxu0 0.0
    %2321 = vmatpush1.msra.mxu0 0.0
    %2322 = vmatprep.subr.mxu0 0.0
    %2323 = vmatpush1.msra.mxu0 0.0
    %2324 = vmatprep.subr.mxu0 0.0
    %2325 = vmatpush1.msra.mxu0 0.0
    %2326 = vmatprep.subr.mxu0 0.0
    %2327 = vmatpush1.msra.mxu0 0.0
    %2328 = vmatprep.subr.mxu0 0.0
    %2329 = vmatpush1.msra.mxu0 0.0
    %2330 = vmatprep.subr.mxu0 0.0
    %2331 = vmatpush1.msra.mxu0 0.0
    %2332 = vmatprep.mubr.f32.mxu0 0.0
    %2333 = vmatmul.mubr.f32.gmra.mrb[0].mxu0 %v2263
    %v2334 = vpop.f32.mrb[0].mxu0
    %v2335 = vadd.f32 %v2254, %v2334
    %v2336 = vpop.f32.mrb[0].mxu0
    %2337 = vmatprep.mubr.f32.mxu0 0.0
    %2338 = vmatmul.mubr.f32.gmra.mrb[0].mxu0 %v2266
    %v2339 = vpop.f32.mrb[0].mxu0
    %v2340 = vadd.f32 %v2259, %v2339
    %v2341 = vpop.f32.mrb[0].mxu0
    %2342 = vdwg.mxu0
    %v2343 = vlaneseq
    %v2344 = vshrl.u32 %v2343, 7
    %v2345 = vsub.s32 0, %v2344
    %v2346 = vrot.slane %v1427, %v2345
    %v2347 = vadd.f32 %v2335, %v2346
    %v2348 = vadd.f32 %v2340, %v2346
    %v2349 = vadd.f32 %v1407, %v2347
    %v2350 = vadd.f32 %v1408, %v2348
    %v2351 = vsel %vm141, %v2349, 0.0
    %2352 = vadd.xlane.f32.xlu0 %v2351
    %v2353 = vpop.xlane.xlu0 %2352
    %v2354 = vsel %vm141, %v2350, 0.0
    %2355 = vadd.xlane.f32.xlu0 %v2354
    %v2356 = vpop.xlane.xlu0 %2355
    %v2357 = vmul.f32 %v2353, %v148
    %v2358 = vmul.f32 %v2356, %v148
    %v2359 = vmul.f32 %v2349, %v2349
    %v2360 = vmul.f32 %v2350, %v2350
    %v2361 = vsel %vm141, %v2359, 0.0
    %2362 = vadd.xlane.f32.xlu0 %v2361
    %v2363 = vpop.xlane.xlu0 %2362
    %v2364 = vsel %vm141, %v2360, 0.0
    %2365 = vadd.xlane.f32.xlu0 %v2364
    %v2366 = vpop.xlane.xlu0 %2365
    %v2367 = vmul.f32 %v2363, %v148
    %v2368 = vmul.f32 %v2366, %v148
    %v2369 = vmul.f32 %v2357, %v2357
    %v2370 = vmul.f32 %v2358, %v2358
    %v2371 = vsub.f32 %v2367, %v2369
    %v2372 = vsub.f32 %v2368, %v2370
    %v2373 = vmax.f32 %v2371, 0.0
    %v2374 = vmax.f32 %v2372, 0.0
    %v2375 = vsub.f32 %v2349, %v2357
    %v2376 = vsub.f32 %v2350, %v2358
    %v2377 = vadd.f32 %v2373, 1e-12
    %v2378 = vadd.f32 %v2374, 1e-12
    %v2379 = vrsqrt.pop %v2377
    %v2380 = vrsqrt.pop %v2378
    %v2381 = vmul.f32 %v2375, %v2379
    %v2382 = vmul.f32 %v2376, %v2380
    %v2383 = vlaneseq
    %v2384 = vshrl.u32 %v2383, 7
    %v2385 = vsub.s32 0, %v2384
    %v2386 = vrot.slane %v1428, %v2385
    %v2387 = vmul.f32 %v2381, %v2386
    %v2388 = vmul.f32 %v2382, %v2386
    %v2389 = vlaneseq
    %v2390 = vshrl.u32 %v2389, 7
    %v2391 = vsub.s32 0, %v2390
    %v2392 = vrot.slane %v1429, %v2391
    %v2393 = vadd.f32 %v2387, %v2392
    %v2394 = vadd.f32 %v2388, %v2392
    %v2395 = vlaneseq
    %v2396 = vshrl.u32 %v2395, 7
    %v2397 = vsub.s32 0, %v2396
    %v2398 = vrot.slane %v1430, %v2397
    %v2400 = vsel %vm141, %v2393, 0
    %v2403 = vsel %vm141, %v2394, 0
    %2405 = vmatprep.subr.mxu0 0.0
    %2406 = vmatpush1.msra.mxu0 %v1413
    %2407 = vmatprep.subr.mxu0 0.0
    %2408 = vmatpush1.msra.mxu0 %v1414
    %2409 = vmatprep.subr.mxu0 0.0
    %2410 = vmatpush1.msra.mxu0 %v1415
    %2411 = vmatprep.subr.mxu0 0.0
    %2412 = vmatpush1.msra.mxu0 %v1416
    %2413 = vmatprep.subr.mxu0 0.0
    %2414 = vmatpush1.msra.mxu0 0.0
    %2415 = vmatprep.subr.mxu0 0.0
    %2416 = vmatpush1.msra.mxu0 0.0
    %2417 = vmatprep.subr.mxu0 0.0
    %2418 = vmatpush1.msra.mxu0 0.0
    %2419 = vmatprep.subr.mxu0 0.0
    %2420 = vmatpush1.msra.mxu0 0.0
    %2421 = vmatprep.subr.mxu0 0.0
    %2422 = vmatpush1.msra.mxu0 0.0
    %2423 = vmatprep.subr.mxu0 0.0
    %2424 = vmatpush1.msra.mxu0 0.0
    %2425 = vmatprep.subr.mxu0 0.0
    %2426 = vmatpush1.msra.mxu0 0.0
    %2427 = vmatprep.subr.mxu0 0.0
    %2428 = vmatpush1.msra.mxu0 0.0
    %2429 = vmatprep.subr.mxu0 0.0
    %2430 = vmatpush1.msra.mxu0 0.0
    %2431 = vmatprep.subr.mxu0 0.0
    %2432 = vmatpush1.msra.mxu0 0.0
    %2433 = vmatprep.subr.mxu0 0.0
    %2434 = vmatpush1.msra.mxu0 0.0
    %2435 = vmatprep.subr.mxu0 0.0
    %2436 = vmatpush1.msra.mxu0 0.0
    %2437 = vmatprep.subr.mxu0 0.0
    %2438 = vmatpush1.msra.mxu0 0.0
    %2439 = vmatprep.subr.mxu0 0.0
    %2440 = vmatpush1.msra.mxu0 0.0
    %2441 = vmatprep.subr.mxu0 0.0
    %2442 = vmatpush1.msra.mxu0 0.0
    %2443 = vmatprep.subr.mxu0 0.0
    %2444 = vmatpush1.msra.mxu0 0.0
    %2445 = vmatprep.subr.mxu0 0.0
    %2446 = vmatpush1.msra.mxu0 0.0
    %2447 = vmatprep.subr.mxu0 0.0
    %2448 = vmatpush1.msra.mxu0 0.0
    %2449 = vmatprep.subr.mxu0 0.0
    %2450 = vmatpush1.msra.mxu0 0.0
    %2451 = vmatprep.subr.mxu0 0.0
    %2452 = vmatpush1.msra.mxu0 0.0
    %2453 = vmatprep.subr.mxu0 0.0
    %2454 = vmatpush1.msra.mxu0 0.0
    %2455 = vmatprep.subr.mxu0 0.0
    %2456 = vmatpush1.msra.mxu0 0.0
    %2457 = vmatprep.subr.mxu0 0.0
    %2458 = vmatpush1.msra.mxu0 0.0
    %2459 = vmatprep.subr.mxu0 0.0
    %2460 = vmatpush1.msra.mxu0 0.0
    %2461 = vmatprep.subr.mxu0 0.0
    %2462 = vmatpush1.msra.mxu0 0.0
    %2463 = vmatprep.subr.mxu0 0.0
    %2464 = vmatpush1.msra.mxu0 0.0
    %2465 = vmatprep.subr.mxu0 0.0
    %2466 = vmatpush1.msra.mxu0 0.0
    %2467 = vmatprep.subr.mxu0 0.0
    %2468 = vmatpush1.msra.mxu0 0.0
    %2469 = vmatprep.mubr.f32.mxu0 0.0
    %2470 = vmatmul.mubr.f32.gmra.mrb[0].mxu0 %v2400
    %v2471 = vpop.f32.mrb[0].mxu0
    %v2472 = vadd.f32 %v2398, %v2471
    %v2473 = vpop.f32.mrb[0].mxu0
    %2474 = vmatprep.mubr.f32.mxu0 0.0
    %2475 = vmatmul.mubr.f32.gmra.mrb[0].mxu0 %v2403
    %v2476 = vpop.f32.mrb[0].mxu0
    %v2477 = vadd.f32 %v2398, %v2476
    %v2478 = vpop.f32.mrb[0].mxu0
    %2479 = vdwg.mxu0
    %v2480 = vmul.f32 %v2472, %v2472
    %v2481 = vmul.f32 %v2477, %v2477
    %v2482 = vmul.f32 %v2472, %v2480
    %v2483 = vmul.f32 %v2477, %v2481
    %v2484 = vmul.f32 %v2482, 0.044715
    %v2485 = vmul.f32 %v2483, 0.044715
    %v2486 = vadd.f32 %v2472, %v2484
    %v2487 = vadd.f32 %v2477, %v2485
    %v2488 = vmul.f32 %v2486, 0.7978846
    %v2489 = vmul.f32 %v2487, 0.7978846
    %v2490 = vtanh.pop %v2488
    %v2491 = vtanh.pop %v2489
    %v2492 = vadd.f32 %v2490, 1.0
    %v2493 = vadd.f32 %v2491, 1.0
    %v2494 = vmul.f32 %v2492, 0.5
    %v2495 = vmul.f32 %v2493, 0.5
    %v2496 = vmul.f32 %v2472, %v2494
    %v2497 = vmul.f32 %v2477, %v2495
    %v2498 = vlaneseq
    %v2499 = vshrl.u32 %v2498, 7
    %v2500 = vsub.s32 0, %v2499
    %v2501 = vrot.slane %v1431, %v2500
    %v2503 = vsel %vm1281, %v2496, 0
    %v2506 = vsel %vm1281, %v2497, 0
    %2508 = vmatprep.subr.mxu0 0.0
    %2509 = vmatpush1.msra.mxu0 %v1417
    %2510 = vmatprep.subr.mxu0 0.0
    %2511 = vmatpush1.msra.mxu0 %v1418
    %2512 = vmatprep.subr.mxu0 0.0
    %2513 = vmatpush1.msra.mxu0 %v1419
    %2514 = vmatprep.subr.mxu0 0.0
    %2515 = vmatpush1.msra.mxu0 %v1420
    %2516 = vmatprep.subr.mxu0 0.0
    %2517 = vmatpush1.msra.mxu0 %v1421
    %2518 = vmatprep.subr.mxu0 0.0
    %2519 = vmatpush1.msra.mxu0 %v1422
    %2520 = vmatprep.subr.mxu0 0.0
    %2521 = vmatpush1.msra.mxu0 %v1423
    %2522 = vmatprep.subr.mxu0 0.0
    %2523 = vmatpush1.msra.mxu0 %v1424
    %2524 = vmatprep.subr.mxu0 0.0
    %2525 = vmatpush1.msra.mxu0 0.0
    %2526 = vmatprep.subr.mxu0 0.0
    %2527 = vmatpush1.msra.mxu0 0.0
    %2528 = vmatprep.subr.mxu0 0.0
    %2529 = vmatpush1.msra.mxu0 0.0
    %2530 = vmatprep.subr.mxu0 0.0
    %2531 = vmatpush1.msra.mxu0 0.0
    %2532 = vmatprep.subr.mxu0 0.0
    %2533 = vmatpush1.msra.mxu0 0.0
    %2534 = vmatprep.subr.mxu0 0.0
    %2535 = vmatpush1.msra.mxu0 0.0
    %2536 = vmatprep.subr.mxu0 0.0
    %2537 = vmatpush1.msra.mxu0 0.0
    %2538 = vmatprep.subr.mxu0 0.0
    %2539 = vmatpush1.msra.mxu0 0.0
    %2540 = vmatprep.subr.mxu0 0.0
    %2541 = vmatpush1.msra.mxu0 0.0
    %2542 = vmatprep.subr.mxu0 0.0
    %2543 = vmatpush1.msra.mxu0 0.0
    %2544 = vmatprep.subr.mxu0 0.0
    %2545 = vmatpush1.msra.mxu0 0.0
    %2546 = vmatprep.subr.mxu0 0.0
    %2547 = vmatpush1.msra.mxu0 0.0
    %2548 = vmatprep.subr.mxu0 0.0
    %2549 = vmatpush1.msra.mxu0 0.0
    %2550 = vmatprep.subr.mxu0 0.0
    %2551 = vmatpush1.msra.mxu0 0.0
    %2552 = vmatprep.subr.mxu0 0.0
    %2553 = vmatpush1.msra.mxu0 0.0
    %2554 = vmatprep.subr.mxu0 0.0
    %2555 = vmatpush1.msra.mxu0 0.0
    %2556 = vmatprep.subr.mxu0 0.0
    %2557 = vmatpush1.msra.mxu0 0.0
    %2558 = vmatprep.subr.mxu0 0.0
    %2559 = vmatpush1.msra.mxu0 0.0
    %2560 = vmatprep.subr.mxu0 0.0
    %2561 = vmatpush1.msra.mxu0 0.0
    %2562 = vmatprep.subr.mxu0 0.0
    %2563 = vmatpush1.msra.mxu0 0.0
    %2564 = vmatprep.subr.mxu0 0.0
    %2565 = vmatpush1.msra.mxu0 0.0
    %2566 = vmatprep.subr.mxu0 0.0
    %2567 = vmatpush1.msra.mxu0 0.0
    %2568 = vmatprep.subr.mxu0 0.0
    %2569 = vmatpush1.msra.mxu0 0.0
    %2570 = vmatprep.subr.mxu0 0.0
    %2571 = vmatpush1.msra.mxu0 0.0
    %2572 = vmatprep.mubr.f32.mxu0 0.0
    %2573 = vmatmul.mubr.f32.gmra.mrb[0].mxu0 %v2503
    %v2574 = vpop.f32.mrb[0].mxu0
    %v2575 = vadd.f32 %v2501, %v2574
    %v2576 = vpop.f32.mrb[0].mxu0
    %2577 = vmatprep.mubr.f32.mxu0 0.0
    %2578 = vmatmul.mubr.f32.gmra.mrb[0].mxu0 %v2506
    %v2579 = vpop.f32.mrb[0].mxu0
    %v2580 = vadd.f32 %v2501, %v2579
    %v2581 = vpop.f32.mrb[0].mxu0
    %2582 = vdwg.mxu0
    %v2583 = vadd.f32 %v2393, %v2575
    %v2584 = vadd.f32 %v2394, %v2580
    %v2585 = vsel %vm141, %v2583, 0.0
    %2586 = vadd.xlane.f32.xlu0 %v2585
    %v2587 = vpop.xlane.xlu0 %2586
    %v2588 = vsel %vm141, %v2584, 0.0
    %2589 = vadd.xlane.f32.xlu0 %v2588
    %v2590 = vpop.xlane.xlu0 %2589
    %v2591 = vmul.f32 %v2587, %v148
    %v2592 = vmul.f32 %v2590, %v148
    %v2593 = vmul.f32 %v2583, %v2583
    %v2594 = vmul.f32 %v2584, %v2584
    %v2595 = vsel %vm141, %v2593, 0.0
    %2596 = vadd.xlane.f32.xlu0 %v2595
    %v2597 = vpop.xlane.xlu0 %2596
    %v2598 = vsel %vm141, %v2594, 0.0
    %2599 = vadd.xlane.f32.xlu0 %v2598
    %v2600 = vpop.xlane.xlu0 %2599
    %v2601 = vmul.f32 %v2597, %v148
    %v2602 = vmul.f32 %v2600, %v148
    %v2603 = vmul.f32 %v2591, %v2591
    %v2604 = vmul.f32 %v2592, %v2592
    %v2605 = vsub.f32 %v2601, %v2603
    %v2606 = vsub.f32 %v2602, %v2604
    %v2607 = vmax.f32 %v2605, 0.0
    %v2608 = vmax.f32 %v2606, 0.0
    %v2609 = vsub.f32 %v2583, %v2591
    %v2610 = vsub.f32 %v2584, %v2592
    %v2611 = vadd.f32 %v2607, 1e-12
    %v2612 = vadd.f32 %v2608, 1e-12
    %v2613 = vrsqrt.pop %v2611
    %v2614 = vrsqrt.pop %v2612
    %v2615 = vmul.f32 %v2609, %v2613
    %v2616 = vmul.f32 %v2610, %v2614
    %v2617 = vlaneseq
    %v2618 = vshrl.u32 %v2617, 7
    %v2619 = vsub.s32 0, %v2618
    %v2620 = vrot.slane %v1432, %v2619
    %v2621 = vmul.f32 %v2615, %v2620
    %v2622 = vmul.f32 %v2616, %v2620
    %v2623 = vlaneseq
    %v2624 = vshrl.u32 %v2623, 7
    %v2625 = vsub.s32 0, %v2624
    %v2626 = vrot.slane %v1433, %v2625
    %v2627 = vadd.f32 %v2621, %v2626
    %v2628 = vadd.f32 %v2622, %v2626
    %v2629 = vld [vmem:[#allocation2 + $0x140] sm:$0xff]
    %v2630 = vld [vmem:[#allocation2 + $0x148] sm:$0xff]
    %v2631 = vld [vmem:[#allocation2 + $0x150] sm:$0xff]
    %v2632 = vld [vmem:[#allocation2 + $0x158] sm:$0xff]
    %v2633 = vld [vmem:[%s2 + $0x2] sm:$0x1]
    %v2634 = vlaneseq
    %v2635 = vshrl.u32 %v2634, 7
    %v2636 = vsub.s32 0, %v2635
    %v2637 = vrot.slane %v2633, %v2636
    %v2639 = vrot.slane %v2627, 1
    %v2640 = vsel %vm141, %v2639, 0
    %2642 = vmatprep.subr.mxu0 0.0
    %2643 = vmatpush1.msra.mxu0 %v2629
    %2644 = vmatprep.subr.mxu0 0.0
    %2645 = vmatpush1.msra.mxu0 %v2630
    %2646 = vmatprep.subr.mxu0 0.0
    %2647 = vmatpush1.msra.mxu0 %v2631
    %2648 = vmatprep.subr.mxu0 0.0
    %2649 = vmatpush1.msra.mxu0 %v2632
    %2650 = vmatprep.subr.mxu0 0.0
    %2651 = vmatpush1.msra.mxu0 0.0
    %2652 = vmatprep.subr.mxu0 0.0
    %2653 = vmatpush1.msra.mxu0 0.0
    %2654 = vmatprep.subr.mxu0 0.0
    %2655 = vmatpush1.msra.mxu0 0.0
    %2656 = vmatprep.subr.mxu0 0.0
    %2657 = vmatpush1.msra.mxu0 0.0
    %2658 = vmatprep.subr.mxu0 0.0
    %2659 = vmatpush1.msra.mxu0 0.0
    %2660 = vmatprep.subr.mxu0 0.0
    %2661 = vmatpush1.msra.mxu0 0.0
    %2662 = vmatprep.subr.mxu0 0.0
    %2663 = vmatpush1.msra.mxu0 0.0
    %2664 = vmatprep.subr.mxu0 0.0
    %2665 = vmatpush1.msra.mxu0 0.0
    %2666 = vmatprep.subr.mxu0 0.0
    %2667 = vmatpush1.msra.mxu0 0.0
    %2668 = vmatprep.subr.mxu0 0.0
    %2669 = vmatpush1.msra.mxu0 0.0
    %2670 = vmatprep.subr.mxu0 0.0
    %2671 = vmatpush1.msra.mxu0 0.0
    %2672 = vmatprep.subr.mxu0 0.0
    %2673 = vmatpush1.msra.mxu0 0.0
    %2674 = vmatprep.subr.mxu0 0.0
    %2675 = vmatpush1.msra.mxu0 0.0
    %2676 = vmatprep.subr.mxu0 0.0
    %2677 = vmatpush1.msra.mxu0 0.0
    %2678 = vmatprep.subr.mxu0 0.0
    %2679 = vmatpush1.msra.mxu0 0.0
    %2680 = vmatprep.subr.mxu0 0.0
    %2681 = vmatpush1.msra.mxu0 0.0
    %2682 = vmatprep.subr.mxu0 0.0
    %2683 = vmatpush1.msra.mxu0 0.0
    %2684 = vmatprep.subr.mxu0 0.0
    %2685 = vmatpush1.msra.mxu0 0.0
    %2686 = vmatprep.subr.mxu0 0.0
    %2687 = vmatpush1.msra.mxu0 0.0
    %2688 = vmatprep.subr.mxu0 0.0
    %2689 = vmatpush1.msra.mxu0 0.0
    %2690 = vmatprep.subr.mxu0 0.0
    %2691 = vmatpush1.msra.mxu0 0.0
    %2692 = vmatprep.subr.mxu0 0.0
    %2693 = vmatpush1.msra.mxu0 0.0
    %2694 = vmatprep.subr.mxu0 0.0
    %2695 = vmatpush1.msra.mxu0 0.0
    %2696 = vmatprep.subr.mxu0 0.0
    %2697 = vmatpush1.msra.mxu0 0.0
    %2698 = vmatprep.subr.mxu0 0.0
    %2699 = vmatpush1.msra.mxu0 0.0
    %2700 = vmatprep.subr.mxu0 0.0
    %2701 = vmatpush1.msra.mxu0 0.0
    %2702 = vmatprep.subr.mxu0 0.0
    %2703 = vmatpush1.msra.mxu0 0.0
    %2704 = vmatprep.subr.mxu0 0.0
    %2705 = vmatpush1.msra.mxu0 0.0
    %2706 = vmatprep.mubr.f32.mxu0 0.0
    %2707 = vmatmul.mubr.f32.gmra.mrb[0].mxu0 %v2640
    %v2708 = vpop.f32.mrb[0].mxu0
    %v2709 = vadd.f32 %v2637, %v2708
    %v2710 = vpop.f32.mrb[0].mxu0
    %2711 = vdwg.mxu0
    %2712 = vst [vmem:[%s4] sm:$0x3f] %v2709
    %v2714 = vrot.slane %v2628, 1
    %v2715 = vsel %vm141, %v2714, 0
    %2717 = vmatprep.subr.mxu0 0.0
    %2718 = vmatpush1.msra.mxu0 %v2629
    %2719 = vmatprep.subr.mxu0 0.0
    %2720 = vmatpush1.msra.mxu0 %v2630
    %2721 = vmatprep.subr.mxu0 0.0
    %2722 = vmatpush1.msra.mxu0 %v2631
    %2723 = vmatprep.subr.mxu0 0.0
    %2724 = vmatpush1.msra.mxu0 %v2632
    %2725 = vmatprep.subr.mxu0 0.0
    %2726 = vmatpush1.msra.mxu0 0.0
    %2727 = vmatprep.subr.mxu0 0.0
    %2728 = vmatpush1.msra.mxu0 0.0
    %2729 = vmatprep.subr.mxu0 0.0
    %2730 = vmatpush1.msra.mxu0 0.0
    %2731 = vmatprep.subr.mxu0 0.0
    %2732 = vmatpush1.msra.mxu0 0.0
    %2733 = vmatprep.subr.mxu0 0.0
    %2734 = vmatpush1.msra.mxu0 0.0
    %2735 = vmatprep.subr.mxu0 0.0
    %2736 = vmatpush1.msra.mxu0 0.0
    %2737 = vmatprep.subr.mxu0 0.0
    %2738 = vmatpush1.msra.mxu0 0.0
    %2739 = vmatprep.subr.mxu0 0.0
    %2740 = vmatpush1.msra.mxu0 0.0
    %2741 = vmatprep.subr.mxu0 0.0
    %2742 = vmatpush1.msra.mxu0 0.0
    %2743 = vmatprep.subr.mxu0 0.0
    %2744 = vmatpush1.msra.mxu0 0.0
    %2745 = vmatprep.subr.mxu0 0.0
    %2746 = vmatpush1.msra.mxu0 0.0
    %2747 = vmatprep.subr.mxu0 0.0
    %2748 = vmatpush1.msra.mxu0 0.0
    %2749 = vmatprep.subr.mxu0 0.0
    %2750 = vmatpush1.msra.mxu0 0.0
    %2751 = vmatprep.subr.mxu0 0.0
    %2752 = vmatpush1.msra.mxu0 0.0
    %2753 = vmatprep.subr.mxu0 0.0
    %2754 = vmatpush1.msra.mxu0 0.0
    %2755 = vmatprep.subr.mxu0 0.0
    %2756 = vmatpush1.msra.mxu0 0.0
    %2757 = vmatprep.subr.mxu0 0.0
    %2758 = vmatpush1.msra.mxu0 0.0
    %2759 = vmatprep.subr.mxu0 0.0
    %2760 = vmatpush1.msra.mxu0 0.0
    %2761 = vmatprep.subr.mxu0 0.0
    %2762 = vmatpush1.msra.mxu0 0.0
    %2763 = vmatprep.subr.mxu0 0.0
    %2764 = vmatpush1.msra.mxu0 0.0
    %2765 = vmatprep.subr.mxu0 0.0
    %2766 = vmatpush1.msra.mxu0 0.0
    %2767 = vmatprep.subr.mxu0 0.0
    %2768 = vmatpush1.msra.mxu0 0.0
    %2769 = vmatprep.subr.mxu0 0.0
    %2770 = vmatpush1.msra.mxu0 0.0
    %2771 = vmatprep.subr.mxu0 0.0
    %2772 = vmatpush1.msra.mxu0 0.0
    %2773 = vmatprep.subr.mxu0 0.0
    %2774 = vmatpush1.msra.mxu0 0.0
    %2775 = vmatprep.subr.mxu0 0.0
    %2776 = vmatpush1.msra.mxu0 0.0
    %2777 = vmatprep.subr.mxu0 0.0
    %2778 = vmatpush1.msra.mxu0 0.0
    %2779 = vmatprep.subr.mxu0 0.0
    %2780 = vmatpush1.msra.mxu0 0.0
    %2781 = vmatprep.mubr.f32.mxu0 0.0
    %2782 = vmatmul.mubr.f32.gmra.mrb[0].mxu0 %v2715
    %v2783 = vpop.f32.mrb[0].mxu0
    %v2784 = vadd.f32 %v2637, %v2783
    %v2785 = vpop.f32.mrb[0].mxu0
    %2786 = vdwg.mxu0
    %s2787 = scalar_lea.vmem %s4, 8
    %2788 = vst [vmem:[%s2787] sm:$0x3f] %v2784
    // Predicated region
    $region22: #{tpu_custom_call.1} parent=1 // pred_check
      _
    $region23: #{tpu_custom_call.1} parent=1 // pred_check_branch
      %2790 = sbr.rel (0) target = $region25
    $region24: #{tpu_custom_call.1} parent=1 // pred_region
      _
    $region25: #{tpu_custom_call.1} parent=1 // pred_fallthru
      _
    // Predicated region
    $region26: #{tpu_custom_call.1} parent=1 // pred_check
      _
    $region27: #{tpu_custom_call.1} parent=1 // pred_check_branch
      %2792 = sbr.rel (0) target = $region29
    $region28: #{tpu_custom_call.1} parent=1 // pred_region
      _
    $region29: #{tpu_custom_call.1} parent=1 // pred_fallthru
      _
    %2793 = vsyncpa [#allocation3], 1

</llo_original>
